<compile_context>
chip_gen: v7x
topology: tpu7x:2x2x1
jax: 0.10.0
libtpu: 0.0.40
codegen_flags: <defaults>
</compile_context>

<pallas_src>
import functools

import jax
import jax.numpy as jnp
from jax.experimental import pallas as pl
from jax.experimental.pallas import tpu as pltpu


def se_gate_matmul_kernel(xse_ref, w1_ref, b1_ref, x_ref, w2_ref, o_ref):
    k = pl.program_id(0)

    # conv2d245 chunk (1x1 conv on 1x1 spatial input) == mat-vec:
    #   W1[k-chunk] @ x_se + b1[k-chunk]  -> [Kblk, 1]
    s = jnp.dot(w1_ref[...], xse_ref[...].astype(jnp.bfloat16),
                preferred_element_type=jnp.float32) + b1_ref[...]
    gate = jax.nn.sigmoid(s)                                      # [Kblk, 1] f32 (EUP)

    # gate broadcast across the spatial (lane) axis; bf16 for full-rate MXU matmul
    gated = (x_ref[...] * gate).astype(jnp.bfloat16)              # [Kblk, HW]

    # conv2d246 partial sum, canonical [M,K]x[K,N]:
    #   [Cout, Kblk] x [Kblk, HW] -> [Cout, HW]  (already NCHW channel-major order)
    partial = jax.lax.dot_general(
        w2_ref[...], gated,
        dimension_numbers=(((1,), (0,)), ((), ())),
        preferred_element_type=jnp.float32)

    @pl.when(k == 0)
    def _():
        o_ref[...] = jnp.zeros_like(o_ref)
    o_ref[...] += partial


def prepare_params(w1, b1, w2, *, n_k_blocks=2):
    """One-time parameter prep (reshape / pre-block / bf16 cast) — out of the hot path."""
    cmid, cin = w1.shape[0], w1.shape[1]
    cout = w2.shape[0]
    if cmid % n_k_blocks != 0:
        n_k_blocks = 1
    k_blk = cmid // n_k_blocks
    w1_2d = jnp.asarray(w1).reshape(cmid, cin).astype(jnp.bfloat16)       # [Cmid, Cin]
    b1_col = jnp.asarray(b1).reshape(cmid, 1).astype(jnp.float32)         # [Cmid, 1]
    # Native [Cout, Cmid] layout (no transpose), pre-blocked along Cmid so each grid
    # step's weight DMA is a single contiguous [Cout, Kblk] slab.
    w2_blk = (jnp.asarray(w2).reshape(cout, cmid).astype(jnp.bfloat16)
              .reshape(cout, n_k_blocks, k_blk)
              .transpose(1, 0, 2))                                        # [n_k, Cout, Kblk]
    return w1_2d, b1_col, w2_blk


@jax.jit
def se_block(x_se, x_feat, w1_2d, b1_col, w2_blk):
    """x_se: [1,Cin,1,1] f32, x_feat: [1,Cmid,H,W] f32, w1_2d: [Cmid,Cin] bf16,
       b1_col: [Cmid,1] f32, w2_blk: [n_k,Cout,Kblk] bf16  ->  [1,Cout,H,W] f32."""
    n, cmid, h, w = x_feat.shape
    assert n == 1
    cin = x_se.shape[1]
    n_k, cout, k_blk = w2_blk.shape
    assert n_k * k_blk == cmid
    hw = h * w

    xse_col = x_se.reshape(cin, 1)       # natural reshapes, no transposes in the hot path
    x_2d = x_feat.reshape(cmid, hw)

    flops = 2 * cmid * cin + 2 * cout * cmid * hw
    bytes_accessed = (cmid * hw * x_2d.dtype.itemsize     # feature map (f32)
                      + cmid * cin * 2 + cout * cmid * 2  # bf16 weights
                      + cmid * 4 + cin * 4                # bias + se input
                      + cout * hw * 4)                    # output

    out_2d = pl.pallas_call(
        se_gate_matmul_kernel,
        out_shape=jax.ShapeDtypeStruct((cout, hw), jnp.float32),
        grid=(n_k,),
        in_specs=[
            pl.BlockSpec((cin, 1), lambda k: (0, 0)),                       # x_se (invariant)
            pl.BlockSpec((k_blk, cin), lambda k: (k, 0)),                   # w1 chunk
            pl.BlockSpec((k_blk, 1), lambda k: (k, 0)),                     # b1 chunk
            pl.BlockSpec((k_blk, hw), lambda k: (k, 0)),                    # feature chunk
            pl.BlockSpec((pl.Squeezed(), cout, k_blk), lambda k: (k, 0, 0)),  # w2 chunk
        ],
        out_specs=pl.BlockSpec((cout, hw), lambda k: (0, 0)),               # resident accumulator
        compiler_params=pltpu.CompilerParams(
            dimension_semantics=("arbitrary",)),
        cost_estimate=pl.CostEstimate(
            flops=flops, transcendentals=cmid, bytes_accessed=bytes_accessed),
    )(xse_col, w1_2d, b1_col, x_2d, w2_blk)

    # [Cout, HW] is already channel-major: plain reshape to NCHW, no transpose.
    return out_2d.reshape(1, cout, h, w)


def reference(x_se, x_feat, w1, b1, w2):
    n, cmid, h, w = x_feat.shape
    cin = x_se.shape[1]
    cout = w2.shape[0]
    s = x_se.reshape(1, cin) @ w1.reshape(cmid, cin).T + b1[None, :]
    gate = jax.nn.sigmoid(s).reshape(1, cmid, 1, 1)
    gated = gate * x_feat
    out = w2.reshape(cout, cmid) @ gated.reshape(cmid, h * w)
    return out.reshape(1, cout, h, w)


if __name__ == "__main__":
    CIN, CMID, COUT, H, W = 96, 2304, 384, 7, 7

    key = jax.random.PRNGKey(0)
    k1, k2, k3, k4, k5 = jax.random.split(key, 5)

    # inputs (deterministic), matching the module's shapes
    x769 = jax.random.normal(k1, (1, CMID, H, W), dtype=jnp.float32)   # feature map
    x772 = jax.random.normal(k2, (1, CIN, 1, 1), dtype=jnp.float32)    # squeezed SE input

    # parameters (deterministic, PyTorch Conv2d shapes)
    w1 = 0.05 * jax.random.normal(k3, (CMID, CIN, 1, 1), dtype=jnp.float32)
    b1 = 0.05 * jax.random.normal(k4, (CMID,), dtype=jnp.float32)
    w2 = 0.05 * jax.random.normal(k5, (COUT, CMID, 1, 1), dtype=jnp.float32)

    # one-time parameter prep (outside the jitted per-call path)
    w1_2d, b1_col, w2_blk = prepare_params(w1, b1, w2, n_k_blocks=2)

    out = se_block(x772, x769, w1_2d, b1_col, w2_blk)
    out = jax.block_until_ready(out)

    ref = reference(x772, x769, w1, b1, w2)
    assert out.shape == (1, COUT, H, W), out.shape
    # weights / gated activations are bf16-rounded (f32 accumulation), so the tolerance
    # is looser than a pure-f32 implementation.
    max_err = float(jnp.max(jnp.abs(out - ref)))
    assert jnp.allclose(out, ref, atol=1e-1, rtol=1e-2), max_err

    print("KERNEL_OK")
</pallas_src>

<mosaic_0001>
module attributes {stable_mosaic.version = 11 : i64} {
  func.func @se_gate_matmul_kernel(%arg0: i32, %arg1: memref<96x1xf32, #tpu.memory_space<vmem>>, %arg2: memref<1152x96xbf16, #tpu.memory_space<vmem>>, %arg3: memref<1152x1xf32, #tpu.memory_space<vmem>>, %arg4: memref<1152x49xf32, #tpu.memory_space<vmem>>, %arg5: memref<1x384x1152xbf16, #tpu.memory_space<vmem>>, %arg6: memref<384x49xf32, #tpu.memory_space<vmem>>) attributes {dimension_semantics = [#tpu.dimension_semantics<arbitrary>], iteration_bounds = array<i64: 2>, scalar_prefetch = 0 : i64, scratch_operands = 0 : i64, tpu.core_type = #tpu.core_type<tc>, window_params = [{pipeline_mode = #tpu.pipeline_mode<synchronous>, transform_indices = @transform_0, window_bounds = array<i64: 96, 1>}, {transform_indices = @transform_1, window_bounds = array<i64: 1152, 96>}, {transform_indices = @transform_2, window_bounds = array<i64: 1152, 1>}, {transform_indices = @transform_3, window_bounds = array<i64: 1152, 49>}, {transform_indices = @transform_4, window_bounds = array<i64: 1, 384, 1152>}, {pipeline_mode = #tpu.pipeline_mode<synchronous>, transform_indices = @transform_5, window_bounds = array<i64: 384, 49>}]} {
    %c0 = arith.constant 0 : index
    %c0_0 = arith.constant 0 : index
    %0 = vector.load %arg2[%c0, %c0_0] : memref<1152x96xbf16, #tpu.memory_space<vmem>>, vector<1152x96xbf16>
    %c0_1 = arith.constant 0 : index
    %c0_2 = arith.constant 0 : index
    %1 = vector.load %arg1[%c0_1, %c0_2] : memref<96x1xf32, #tpu.memory_space<vmem>>, vector<96x1xf32>
    %2 = arith.truncf %1 : vector<96x1xf32> to vector<96x1xbf16>
    %cst = arith.constant dense<0.000000e+00> : vector<1152x1xf32>
    %3 = tpu.matmul %0, %2, %cst {dimension_numbers = #tpu.dot_dimension_numbers<[1], [0], [0], [1], [0, 0, 1, 1], [], []>} : vector<1152x96xbf16>, vector<96x1xbf16>, vector<1152x1xf32> -> vector<1152x1xf32>
    %c0_3 = arith.constant 0 : index
    %c0_4 = arith.constant 0 : index
    %4 = vector.load %arg3[%c0_3, %c0_4] : memref<1152x1xf32, #tpu.memory_space<vmem>>, vector<1152x1xf32>
    %5 = arith.addf %3, %4 : vector<1152x1xf32>
    %6 = arith.negf %5 : vector<1152x1xf32>
    %7 = math.exp %6 : vector<1152x1xf32>
    %cst_5 = arith.constant 1.000000e+00 : f32
    %8 = vector.broadcast %cst_5 : f32 to vector<1152x1xf32>
    %9 = arith.addf %8, %7 : vector<1152x1xf32>
    %10 = arith.divf %8, %9 : vector<1152x1xf32>
    %c0_6 = arith.constant 0 : index
    %c0_7 = arith.constant 0 : index
    %11 = vector.load %arg4[%c0_6, %c0_7] : memref<1152x49xf32, #tpu.memory_space<vmem>>, vector<1152x49xf32>
    %12 = vector.broadcast %10 : vector<1152x1xf32> to vector<1152x49xf32>
    %13 = arith.mulf %11, %12 : vector<1152x49xf32>
    %14 = arith.truncf %13 : vector<1152x49xf32> to vector<1152x49xbf16>
    %c0_8 = arith.constant 0 : index
    %c0_9 = arith.constant 0 : index
    %c0_10 = arith.constant 0 : index
    %15 = vector.load %arg5[%c0_8, %c0_9, %c0_10] : memref<1x384x1152xbf16, #tpu.memory_space<vmem>>, vector<1x384x1152xbf16>
    %16 = vector.shape_cast %15 : vector<1x384x1152xbf16> to vector<384x1152xbf16>
    %cst_11 = arith.constant dense<0.000000e+00> : vector<384x49xf32>
    %17 = tpu.matmul %16, %14, %cst_11 {dimension_numbers = #tpu.dot_dimension_numbers<[1], [0], [0], [1], [0, 0, 1, 1], [], []>} : vector<384x1152xbf16>, vector<1152x49xbf16>, vector<384x49xf32> -> vector<384x49xf32>
    %c0_i32 = arith.constant 0 : i32
    %18 = arith.cmpi eq, %arg0, %c0_i32 : i32
    %19 = arith.extui %18 : i1 to i32
    %c0_i32_12 = arith.constant 0 : i32
    %20 = arith.cmpi ne, %19, %c0_i32_12 : i32
    scf.if %20 {
      %cst_17 = arith.constant 0.000000e+00 : f32
      %24 = vector.broadcast %cst_17 : f32 to vector<384x49xf32>
      %c0_18 = arith.constant 0 : index
      %c0_19 = arith.constant 0 : index
      %25 = vector.load %arg6[%c0_18, %c0_19] : memref<384x49xf32, #tpu.memory_space<vmem>>, vector<384x49xf32>
      tpu.vector_store %arg6[%c0_18, %c0_19], %24 {strides = array<i32>} : memref<384x49xf32, #tpu.memory_space<vmem>>, vector<384x49xf32>,
    } else {
    }
    %c0_13 = arith.constant 0 : index
    %c0_14 = arith.constant 0 : index
    %21 = vector.load %arg6[%c0_13, %c0_14] : memref<384x49xf32, #tpu.memory_space<vmem>>, vector<384x49xf32>
    %22 = arith.addf %21, %17 : vector<384x49xf32>
    %c0_15 = arith.constant 0 : index
    %c0_16 = arith.constant 0 : index
    %23 = vector.load %arg6[%c0_15, %c0_16] : memref<384x49xf32, #tpu.memory_space<vmem>>, vector<384x49xf32>
    tpu.vector_store %arg6[%c0_15, %c0_16], %22 {strides = array<i32>} : memref<384x49xf32, #tpu.memory_space<vmem>>, vector<384x49xf32>,
    return
  }
  func.func @transform_0(%arg0: i32) -> (i32, i32) {
    %c0_i32 = arith.constant 0 : i32
    %c0_i32_0 = arith.constant 0 : i32
    %c0_i32_1 = arith.constant 0 : i32
    return %c0_i32, %c0_i32_0 : i32, i32
  }
  func.func @transform_1(%arg0: i32) -> (i32, i32) {
    %c0_i32 = arith.constant 0 : i32
    %c0_i32_0 = arith.constant 0 : i32
    return %arg0, %c0_i32 : i32, i32
  }
  func.func @transform_2(%arg0: i32) -> (i32, i32) {
    %c0_i32 = arith.constant 0 : i32
    %c0_i32_0 = arith.constant 0 : i32
    return %arg0, %c0_i32 : i32, i32
  }
  func.func @transform_3(%arg0: i32) -> (i32, i32) {
    %c0_i32 = arith.constant 0 : i32
    %c0_i32_0 = arith.constant 0 : i32
    return %arg0, %c0_i32 : i32, i32
  }
  func.func @transform_4(%arg0: i32) -> (i32, i32, i32) {
    %c0_i32 = arith.constant 0 : i32
    %c0_i32_0 = arith.constant 0 : i32
    %c0_i32_1 = arith.constant 0 : i32
    return %arg0, %c0_i32, %c0_i32_0 : i32, i32, i32
  }
  func.func @transform_5(%arg0: i32) -> (i32, i32) {
    %c0_i32 = arith.constant 0 : i32
    %c0_i32_0 = arith.constant 0 : i32
    %c0_i32_1 = arith.constant 0 : i32
    return %c0_i32, %c0_i32_0 : i32, i32
  }
}

</mosaic_0001>

<llo_original>
// kernel: se_block.1
$region0: #{se_block.1}
  #allocation0 [shape = 'u32[]', space=smem, size = 0x4, offset = 0x4, fixed_abs, tag = 'smem constant byte address 0x4 - core index']
  #allocation1 [shape = 'u32[144,128]{1,0:T(1,128)}', space=vmem, size = 0x12000, scoped, tag = 'internal scratch']
  %s0 = inlined_call_operand.vmem [shape: f32[96,1], index: 0, kind: input, shape index: {}]
  %s1 = inlined_call_operand.vmem [shape: bf16[2304,96], index: 1, kind: input, shape index: {}]
  %s2 = inlined_call_operand.vmem [shape: f32[2304,1], index: 2, kind: input, shape index: {}]
  %s3 = inlined_call_operand.vmem [shape: f32[2304,49], index: 3, kind: input, shape index: {}]
  %s4 = inlined_call_operand.vmem [shape: bf16[2,384,1152], index: 4, kind: input, shape index: {}]
  %s5 = inlined_call_operand.vmem [shape: f32[384,49], index: 5, kind: output, shape index: {}]
  %s6 = sld [smem:[#allocation0]]
  $region57: #{se_block.1} parent=0
    _
  %s8 = ssub.s32 1, %s6
  %s9 = scalar_select 0, %s8, %s6
  loop: start=0, step=1, limit=4
  $region2: #{se_block.1} parent=0 // loop_pre_header
    _
  $region3: #{se_block.1} parent=0 // loop_header
    %s11 = sphi 0, %s15
    %p12 = scmp.ge.s32.totalorder %s11, 4
    %s19 = sphi 0, %s19
    %s21 = sphi 0, %s19
    %s22 = sphi 0, %s21
    %s36 = sphi 0, %s22
    %s42 = sphi 0, %s44
    %s45 = sphi 0, %s42
    %s46 = sphi 0, %s45
    %s62 = sphi 0, %s46
    %s68 = sphi 0, %s70
    %s71 = sphi 0, %s68
    %s72 = sphi 0, %s71
    %s88 = sphi 0, %s72
    %s94 = sphi 0, %s96
    %s97 = sphi 0, %s94
    %s98 = sphi 0, %s97
    %s114 = sphi 0, %s98
    %s120 = sphi 0, %s122
    %s123 = sphi 0, %s120
    %s124 = sphi 0, %s123
    %s140 = sphi 0, %s124
    %s144 = sphi 0, %s144
    %s146 = sphi 0, %s144
    %s147 = sphi 0, %s146
    %s161 = sphi 0, %s147
  $region4: #{se_block.1} parent=0 // loop_header_branch
    %14 = sbr.rel (%p12) target = $region8
  $region5: #{se_block.1} parent=0 // loop_body
    %s16 = ssub.s32 %s11, 1
    %s17 = ssub.s32 %s11, 2
    %s18 = sadd.s32 %s11, 1
    %s20 = sadd.s32 %s19, 1
    %p23 = scmp.eq.s32.totalorder %s11, 1
    %p24 = scmp.ne.s32.totalorder %s19, %s21
    %p25 = scmp.eq.s32.totalorder %s11, 0
    %p26 = por %p24, %p25
    %p27 = scmp.ne.s32.totalorder %s19, %s21
    %p28 = scmp.eq.s32.totalorder %s16, 1
    %p29 = por %p27, %p28
    %p30 = scmp.ne.s32.totalorder %s21, %s22
    %p31 = scmp.eq.s32.totalorder %s16, 0
    %p32 = por %p30, %p31
    %p33 = scmp.ne.s32.totalorder %s21, %s22
    %p34 = scmp.eq.s32.totalorder %s17, 1
    %p35 = por %p33, %p34
    %p37 = scmp.ne.s32.totalorder %s22, %s36
    %p38 = scmp.eq.s32.totalorder %s17, 0
    %p39 = por %p37, %p38
    %s40 = ssub.s32 %s11, %s18
    %p41 = scmp.eq.s32.totalorder %s40, 0
    %s43 = sadd.s32 %s42, 1
    %s44 = scalar_select %p41, %s42, %s43
    %p47 = pneg %p41
    %p48 = scmp.eq.s32.totalorder %s11, 1
    %p49 = por %p47, %p48
    %p50 = scmp.ne.s32.totalorder %s42, %s45
    %p51 = scmp.eq.s32.totalorder %s11, 0
    %p52 = por %p50, %p51
    %p53 = scmp.ne.s32.totalorder %s42, %s45
    %p54 = scmp.eq.s32.totalorder %s16, 1
    %p55 = por %p53, %p54
    %p56 = scmp.ne.s32.totalorder %s45, %s46
    %p57 = scmp.eq.s32.totalorder %s16, 0
    %p58 = por %p56, %p57
    %p59 = scmp.ne.s32.totalorder %s45, %s46
    %p60 = scmp.eq.s32.totalorder %s17, 1
    %p61 = por %p59, %p60
    %p63 = scmp.ne.s32.totalorder %s46, %s62
    %p64 = scmp.eq.s32.totalorder %s17, 0
    %p65 = por %p63, %p64
    %s66 = ssub.s32 %s11, %s18
    %p67 = scmp.eq.s32.totalorder %s66, 0
    %s69 = sadd.s32 %s68, 1
    %s70 = scalar_select %p67, %s68, %s69
    %p73 = pneg %p67
    %p74 = scmp.eq.s32.totalorder %s11, 1
    %p75 = por %p73, %p74
    %p76 = scmp.ne.s32.totalorder %s68, %s71
    %p77 = scmp.eq.s32.totalorder %s11, 0
    %p78 = por %p76, %p77
    %p79 = scmp.ne.s32.totalorder %s68, %s71
    %p80 = scmp.eq.s32.totalorder %s16, 1
    %p81 = por %p79, %p80
    %p82 = scmp.ne.s32.totalorder %s71, %s72
    %p83 = scmp.eq.s32.totalorder %s16, 0
    %p84 = por %p82, %p83
    %p85 = scmp.ne.s32.totalorder %s71, %s72
    %p86 = scmp.eq.s32.totalorder %s17, 1
    %p87 = por %p85, %p86
    %p89 = scmp.ne.s32.totalorder %s72, %s88
    %p90 = scmp.eq.s32.totalorder %s17, 0
    %p91 = por %p89, %p90
    %s92 = ssub.s32 %s11, %s18
    %p93 = scmp.eq.s32.totalorder %s92, 0
    %s95 = sadd.s32 %s94, 1
    %s96 = scalar_select %p93, %s94, %s95
    %p99 = pneg %p93
    %p100 = scmp.eq.s32.totalorder %s11, 1
    %p101 = por %p99, %p100
    %p102 = scmp.ne.s32.totalorder %s94, %s97
    %p103 = scmp.eq.s32.totalorder %s11, 0
    %p104 = por %p102, %p103
    %p105 = scmp.ne.s32.totalorder %s94, %s97
    %p106 = scmp.eq.s32.totalorder %s16, 1
    %p107 = por %p105, %p106
    %p108 = scmp.ne.s32.totalorder %s97, %s98
    %p109 = scmp.eq.s32.totalorder %s16, 0
    %p110 = por %p108, %p109
    %p111 = scmp.ne.s32.totalorder %s97, %s98
    %p112 = scmp.eq.s32.totalorder %s17, 1
    %p113 = por %p111, %p112
    %p115 = scmp.ne.s32.totalorder %s98, %s114
    %p116 = scmp.eq.s32.totalorder %s17, 0
    %p117 = por %p115, %p116
    %s118 = ssub.s32 %s11, %s18
    %p119 = scmp.eq.s32.totalorder %s118, 0
    %s121 = sadd.s32 %s120, 1
    %s122 = scalar_select %p119, %s120, %s121
    %p125 = pneg %p119
    %p126 = scmp.eq.s32.totalorder %s11, 1
    %p127 = por %p125, %p126
    %p128 = scmp.ne.s32.totalorder %s120, %s123
    %p129 = scmp.eq.s32.totalorder %s11, 0
    %p130 = por %p128, %p129
    %p131 = scmp.ne.s32.totalorder %s120, %s123
    %p132 = scmp.eq.s32.totalorder %s16, 1
    %p133 = por %p131, %p132
    %p134 = scmp.ne.s32.totalorder %s123, %s124
    %p135 = scmp.eq.s32.totalorder %s16, 0
    %p136 = por %p134, %p135
    %p137 = scmp.ne.s32.totalorder %s123, %s124
    %p138 = scmp.eq.s32.totalorder %s17, 1
    %p139 = por %p137, %p138
    %p141 = scmp.ne.s32.totalorder %s124, %s140
    %p142 = scmp.eq.s32.totalorder %s17, 0
    %p143 = por %p141, %p142
    %s145 = sadd.s32 %s144, 1
    %p148 = scmp.eq.s32.totalorder %s11, 1
    %p149 = scmp.ne.s32.totalorder %s144, %s146
    %p150 = scmp.eq.s32.totalorder %s11, 0
    %p151 = por %p149, %p150
    %p152 = scmp.ne.s32.totalorder %s144, %s146
    %p153 = scmp.eq.s32.totalorder %s16, 1
    %p154 = por %p152, %p153
    %p155 = scmp.ne.s32.totalorder %s146, %s147
    %p156 = scmp.eq.s32.totalorder %s16, 0
    %p157 = por %p155, %p156
    %p158 = scmp.ne.s32.totalorder %s146, %s147
    %p159 = scmp.eq.s32.totalorder %s17, 1
    %p160 = por %p158, %p159
    %p162 = scmp.ne.s32.totalorder %s147, %s161
    %p163 = scmp.eq.s32.totalorder %s17, 0
    %p164 = por %p162, %p163
    %p165 = scmp.le.s32.totalorder 1, %s11
    %p166 = scmp.lt.s32.totalorder %s11, 3
    %p167 = pnand %p165, %p166
    %p168 = pneg %p167
    // Predicated region
    $region9: #{se_block.1} parent=5 // pred_check
      _
    $region10: #{se_block.1} parent=5 // pred_check_branch
      %170 = sbr.rel (%p167) target = $region12
    $region11: #{se_block.1} parent=5 // pred_region
      %s171 = ssub.s32 %s11, 1
      // Predicated region
      $region13: #{se_block.1} parent=11 // pred_check
        %p172 = pneg %p32
      $region14: #{se_block.1} parent=11 // pred_check_branch
        %174 = sbr.rel (%p172) target = $region16
      $region15: #{se_block.1} parent=11 // pred_region
        _
      $region16: #{se_block.1} parent=11 // pred_fallthru
        _
    $region12: #{se_block.1} parent=5 // pred_fallthru
      _
    %p175 = scmp.lt.s32.totalorder %s11, 2
    // Predicated region
    $region17: #{se_block.1} parent=5 // pred_check
      %p176 = pneg %p175
    $region18: #{se_block.1} parent=5 // pred_check_branch
      %178 = sbr.rel (%p176) target = $region20
    $region19: #{se_block.1} parent=5 // pred_region
      // Predicated region
      $region21: #{se_block.1} parent=19 // pred_check
        %p179 = pneg %p52
      $region22: #{se_block.1} parent=19 // pred_check_branch
        %181 = sbr.rel (%p179) target = $region24
      $region23: #{se_block.1} parent=19 // pred_region
        %s182 = smul.u32 144, %s11
        %p183 = scmp.lt.s32.totalorder %s182, 287
        %s184 = scalar_select %p183, %s182, 287
        %s185 = smul.addr %s184, 4
        %s186 = scalar_lea.vmem %s1, %s185
        %s187 = smul.u32 144, %s11
      $region24: #{se_block.1} parent=19 // pred_fallthru
        _
      // Predicated region
      $region25: #{se_block.1} parent=19 // pred_check
        %p188 = pneg %p78
      $region26: #{se_block.1} parent=19 // pred_check_branch
        %190 = sbr.rel (%p188) target = $region28
      $region27: #{se_block.1} parent=19 // pred_region
        %s191 = smul.u32 144, %s11
        %p192 = scmp.lt.s32.totalorder %s191, 287
        %s193 = scalar_select %p192, %s191, 287
        %s194 = smul.addr %s193, 8
        %s195 = scalar_lea.vmem %s2, %s194
        %s196 = smul.u32 144, %s11
      $region28: #{se_block.1} parent=19 // pred_fallthru
        _
      // Predicated region
      $region29: #{se_block.1} parent=19 // pred_check
        %p197 = pneg %p104
      $region30: #{se_block.1} parent=19 // pred_check_branch
        %199 = sbr.rel (%p197) target = $region32
      $region31: #{se_block.1} parent=19 // pred_region
        %s200 = smul.u32 144, %s11
        %p201 = scmp.lt.s32.totalorder %s200, 287
        %s202 = scalar_select %p201, %s200, 287
        %s203 = smul.addr %s202, 8
        %s204 = scalar_lea.vmem %s3, %s203
        %s205 = smul.u32 144, %s11
      $region32: #{se_block.1} parent=19 // pred_fallthru
        _
      // Predicated region
      $region33: #{se_block.1} parent=19 // pred_check
        %p206 = pneg %p130
      $region34: #{se_block.1} parent=19 // pred_check_branch
        %208 = sbr.rel (%p206) target = $region36
      $region35: #{se_block.1} parent=19 // pred_region
        %p209 = scmp.lt.s32.totalorder %s11, 1
        %s210 = scalar_select %p209, %s11, 1
        %s211 = smul.addr %s210, 432
        %s212 = smul.addr %s211, 4
        %s213 = scalar_lea.vmem %s4, %s212
      $region36: #{se_block.1} parent=19 // pred_fallthru
        _
    $region20: #{se_block.1} parent=5 // pred_fallthru
      _
    %p214 = scmp.le.s32.totalorder 1, %s11
    %p215 = scmp.lt.s32.totalorder %s11, 3
    %p216 = pnand %p214, %p215
    %p217 = pneg %p216
    // Predicated region
    $region37: #{se_block.1} parent=5 // pred_check
      _
    $region38: #{se_block.1} parent=5 // pred_check_branch
      %219 = sbr.rel (%p216) target = $region40
    $region39: #{se_block.1} parent=5 // pred_region
      %s220 = ssub.s32 %s11, 1
      %p221 = pneg %p32
      %p222 = pneg %p29
      %s223 = smul.u32 144, %s16
      %p224 = scmp.lt.s32.totalorder %s223, 287
      %s225 = scalar_select %p224, %s223, 287
      %s226 = smul.addr %s225, 4
      %s227 = scalar_lea.vmem %s1, %s226
      %p228 = pneg %p58
      %p229 = pneg %p55
      %s230 = smul.u32 144, %s16
      %p231 = scmp.lt.s32.totalorder %s230, 287
      %s232 = scalar_select %p231, %s230, 287
      %s233 = smul.addr %s232, 8
      %s234 = scalar_lea.vmem %s2, %s233
      %p235 = pneg %p84
      %p236 = pneg %p81
      %s237 = smul.u32 144, %s16
      %p238 = scmp.lt.s32.totalorder %s237, 287
      %s239 = scalar_select %p238, %s237, 287
      %s240 = smul.addr %s239, 8
      %s241 = scalar_lea.vmem %s3, %s240
      %p242 = pneg %p110
      %p243 = pneg %p107
      %p244 = scmp.lt.s32.totalorder %s16, 1
      %s245 = scalar_select %p244, %s16, 1
      %s246 = smul.addr %s245, 432
      %s247 = smul.addr %s246, 4
      %s248 = scalar_lea.vmem %s4, %s247
      %p249 = pneg %p136
      %p250 = pneg %p133
      %p251 = pneg %p157
      %p252 = pneg %p154
      %s253 = smul.u32 144, %s16
      %p254 = scmp.lt.s32.totalorder %s253, 287
      %s255 = scalar_select %p254, %s253, 287
      %s256 = smul.addr %s255, 4
      %s257 = scalar_lea.vmem %s1, %s256
      %s258 = smul.u32 144, %s16
      %s259 = smul.u32 144, %s16
      %p260 = scmp.lt.s32.totalorder %s259, 287
      %s261 = scalar_select %p260, %s259, 287
      %s262 = smul.addr %s261, 8
      %s263 = scalar_lea.vmem %s2, %s262
      %s264 = smul.u32 144, %s16
      %s265 = smul.u32 144, %s16
      %p266 = scmp.lt.s32.totalorder %s265, 287
      %s267 = scalar_select %p266, %s265, 287
      %s268 = smul.addr %s267, 8
      %s269 = scalar_lea.vmem %s3, %s268
      %s270 = smul.u32 144, %s16
      %p271 = scmp.lt.s32.totalorder %s16, 1
      %s272 = scalar_select %p271, %s16, 1
      %s273 = smul.addr %s272, 432
      %s274 = smul.addr %s273, 4
      %s275 = scalar_lea.vmem %s4, %s274
      %v277 = vld [vmem:[%s257] sm:$0xf]
      %v278 = vld [vmem:[%s257 + $0x4] sm:$0xf]
      %v279 = vld [vmem:[%s257 + $0x8] sm:$0xf]
      %v280 = vld [vmem:[%s257 + $0xc] sm:$0xf]
      %v281 = vld [vmem:[%s257 + $0x10] sm:$0xf]
      %v282 = vld [vmem:[%s257 + $0x14] sm:$0xf]
      %v283 = vld [vmem:[%s257 + $0x18] sm:$0xf]
      %v284 = vld [vmem:[%s257 + $0x1c] sm:$0xf]
      %v285 = vld [vmem:[%s257 + $0x20] sm:$0xf]
      %v286 = vld [vmem:[%s257 + $0x24] sm:$0xf]
      %v287 = vld [vmem:[%s257 + $0x28] sm:$0xf]
      %v288 = vld [vmem:[%s257 + $0x2c] sm:$0xf]
      %v289 = vld [vmem:[%s257 + $0x30] sm:$0xf]
      %v290 = vld [vmem:[%s257 + $0x34] sm:$0xf]
      %v291 = vld [vmem:[%s257 + $0x38] sm:$0xf]
      %v292 = vld [vmem:[%s257 + $0x3c] sm:$0xf]
      %v293 = vld [vmem:[%s257 + $0x40] sm:$0xf]
      %v294 = vld [vmem:[%s257 + $0x44] sm:$0xf]
      %v295 = vld [vmem:[%s257 + $0x48] sm:$0xf]
      %v296 = vld [vmem:[%s257 + $0x4c] sm:$0xf]
      %v297 = vld [vmem:[%s257 + $0x50] sm:$0xf]
      %v298 = vld [vmem:[%s257 + $0x54] sm:$0xf]
      %v299 = vld [vmem:[%s257 + $0x58] sm:$0xf]
      %v300 = vld [vmem:[%s257 + $0x5c] sm:$0xf]
      %v301 = vld [vmem:[%s257 + $0x60] sm:$0xf]
      %v302 = vld [vmem:[%s257 + $0x64] sm:$0xf]
      %v303 = vld [vmem:[%s257 + $0x68] sm:$0xf]
      %v304 = vld [vmem:[%s257 + $0x6c] sm:$0xf]
      %v305 = vld [vmem:[%s257 + $0x70] sm:$0xf]
      %v306 = vld [vmem:[%s257 + $0x74] sm:$0xf]
      %v307 = vld [vmem:[%s257 + $0x78] sm:$0xf]
      %v308 = vld [vmem:[%s257 + $0x7c] sm:$0xf]
      %v309 = vld [vmem:[%s257 + $0x80] sm:$0xf]
      %v310 = vld [vmem:[%s257 + $0x84] sm:$0xf]
      %v311 = vld [vmem:[%s257 + $0x88] sm:$0xf]
      %v312 = vld [vmem:[%s257 + $0x8c] sm:$0xf]
      %v313 = vld [vmem:[%s257 + $0x90] sm:$0xf]
      %v314 = vld [vmem:[%s257 + $0x94] sm:$0xf]
      %v315 = vld [vmem:[%s257 + $0x98] sm:$0xf]
      %v316 = vld [vmem:[%s257 + $0x9c] sm:$0xf]
      %v317 = vld [vmem:[%s257 + $0xa0] sm:$0xf]
      %v318 = vld [vmem:[%s257 + $0xa4] sm:$0xf]
      %v319 = vld [vmem:[%s257 + $0xa8] sm:$0xf]
      %v320 = vld [vmem:[%s257 + $0xac] sm:$0xf]
      %v321 = vld [vmem:[%s257 + $0xb0] sm:$0xf]
      %v322 = vld [vmem:[%s257 + $0xb4] sm:$0xf]
      %v323 = vld [vmem:[%s257 + $0xb8] sm:$0xf]
      %v324 = vld [vmem:[%s257 + $0xbc] sm:$0xf]
      %v325 = vld [vmem:[%s257 + $0xc0] sm:$0xf]
      %v326 = vld [vmem:[%s257 + $0xc4] sm:$0xf]
      %v327 = vld [vmem:[%s257 + $0xc8] sm:$0xf]
      %v328 = vld [vmem:[%s257 + $0xcc] sm:$0xf]
      %v329 = vld [vmem:[%s257 + $0xd0] sm:$0xf]
      %v330 = vld [vmem:[%s257 + $0xd4] sm:$0xf]
      %v331 = vld [vmem:[%s257 + $0xd8] sm:$0xf]
      %v332 = vld [vmem:[%s257 + $0xdc] sm:$0xf]
      %v333 = vld [vmem:[%s257 + $0xe0] sm:$0xf]
      %v334 = vld [vmem:[%s257 + $0xe4] sm:$0xf]
      %v335 = vld [vmem:[%s257 + $0xe8] sm:$0xf]
      %v336 = vld [vmem:[%s257 + $0xec] sm:$0xf]
      %v337 = vld [vmem:[%s257 + $0xf0] sm:$0xf]
      %v338 = vld [vmem:[%s257 + $0xf4] sm:$0xf]
      %v339 = vld [vmem:[%s257 + $0xf8] sm:$0xf]
      %v340 = vld [vmem:[%s257 + $0xfc] sm:$0xf]
      %v341 = vld [vmem:[%s257 + $0x100] sm:$0xf]
      %v342 = vld [vmem:[%s257 + $0x104] sm:$0xf]
      %v343 = vld [vmem:[%s257 + $0x108] sm:$0xf]
      %v344 = vld [vmem:[%s257 + $0x10c] sm:$0xf]
      %v345 = vld [vmem:[%s257 + $0x110] sm:$0xf]
      %v346 = vld [vmem:[%s257 + $0x114] sm:$0xf]
      %v347 = vld [vmem:[%s257 + $0x118] sm:$0xf]
      %v348 = vld [vmem:[%s257 + $0x11c] sm:$0xf]
      %v349 = vld [vmem:[%s257 + $0x120] sm:$0xf]
      %v350 = vld [vmem:[%s257 + $0x124] sm:$0xf]
      %v351 = vld [vmem:[%s257 + $0x128] sm:$0xf]
      %v352 = vld [vmem:[%s257 + $0x12c] sm:$0xf]
      %v353 = vld [vmem:[%s257 + $0x130] sm:$0xf]
      %v354 = vld [vmem:[%s257 + $0x134] sm:$0xf]
      %v355 = vld [vmem:[%s257 + $0x138] sm:$0xf]
      %v356 = vld [vmem:[%s257 + $0x13c] sm:$0xf]
      %v357 = vld [vmem:[%s257 + $0x140] sm:$0xf]
      %v358 = vld [vmem:[%s257 + $0x144] sm:$0xf]
      %v359 = vld [vmem:[%s257 + $0x148] sm:$0xf]
      %v360 = vld [vmem:[%s257 + $0x14c] sm:$0xf]
      %v361 = vld [vmem:[%s257 + $0x150] sm:$0xf]
      %v362 = vld [vmem:[%s257 + $0x154] sm:$0xf]
      %v363 = vld [vmem:[%s257 + $0x158] sm:$0xf]
      %v364 = vld [vmem:[%s257 + $0x15c] sm:$0xf]
      %v365 = vld [vmem:[%s257 + $0x160] sm:$0xf]
      %v366 = vld [vmem:[%s257 + $0x164] sm:$0xf]
      %v367 = vld [vmem:[%s257 + $0x168] sm:$0xf]
      %v368 = vld [vmem:[%s257 + $0x16c] sm:$0xf]
      %v369 = vld [vmem:[%s257 + $0x170] sm:$0xf]
      %v370 = vld [vmem:[%s257 + $0x174] sm:$0xf]
      %v371 = vld [vmem:[%s257 + $0x178] sm:$0xf]
      %v372 = vld [vmem:[%s257 + $0x17c] sm:$0xf]
      %v373 = vld [vmem:[%s257 + $0x180] sm:$0xf]
      %v374 = vld [vmem:[%s257 + $0x184] sm:$0xf]
      %v375 = vld [vmem:[%s257 + $0x188] sm:$0xf]
      %v376 = vld [vmem:[%s257 + $0x18c] sm:$0xf]
      %v377 = vld [vmem:[%s257 + $0x190] sm:$0xf]
      %v378 = vld [vmem:[%s257 + $0x194] sm:$0xf]
      %v379 = vld [vmem:[%s257 + $0x198] sm:$0xf]
      %v380 = vld [vmem:[%s257 + $0x19c] sm:$0xf]
      %v381 = vld [vmem:[%s257 + $0x1a0] sm:$0xf]
      %v382 = vld [vmem:[%s257 + $0x1a4] sm:$0xf]
      %v383 = vld [vmem:[%s257 + $0x1a8] sm:$0xf]
      %v384 = vld [vmem:[%s257 + $0x1ac] sm:$0xf]
      %v385 = vld [vmem:[%s257 + $0x1b0] sm:$0xf]
      %v386 = vld [vmem:[%s257 + $0x1b4] sm:$0xf]
      %v387 = vld [vmem:[%s257 + $0x1b8] sm:$0xf]
      %v388 = vld [vmem:[%s257 + $0x1bc] sm:$0xf]
      %v389 = vld [vmem:[%s257 + $0x1c0] sm:$0xf]
      %v390 = vld [vmem:[%s257 + $0x1c4] sm:$0xf]
      %v391 = vld [vmem:[%s257 + $0x1c8] sm:$0xf]
      %v392 = vld [vmem:[%s257 + $0x1cc] sm:$0xf]
      %v393 = vld [vmem:[%s257 + $0x1d0] sm:$0xf]
      %v394 = vld [vmem:[%s257 + $0x1d4] sm:$0xf]
      %v395 = vld [vmem:[%s257 + $0x1d8] sm:$0xf]
      %v396 = vld [vmem:[%s257 + $0x1dc] sm:$0xf]
      %v397 = vld [vmem:[%s257 + $0x1e0] sm:$0xf]
      %v398 = vld [vmem:[%s257 + $0x1e4] sm:$0xf]
      %v399 = vld [vmem:[%s257 + $0x1e8] sm:$0xf]
      %v400 = vld [vmem:[%s257 + $0x1ec] sm:$0xf]
      %v401 = vld [vmem:[%s257 + $0x1f0] sm:$0xf]
      %v402 = vld [vmem:[%s257 + $0x1f4] sm:$0xf]
      %v403 = vld [vmem:[%s257 + $0x1f8] sm:$0xf]
      %v404 = vld [vmem:[%s257 + $0x1fc] sm:$0xf]
      %v405 = vld [vmem:[%s257 + $0x200] sm:$0xf]
      %v406 = vld [vmem:[%s257 + $0x204] sm:$0xf]
      %v407 = vld [vmem:[%s257 + $0x208] sm:$0xf]
      %v408 = vld [vmem:[%s257 + $0x20c] sm:$0xf]
      %v409 = vld [vmem:[%s257 + $0x210] sm:$0xf]
      %v410 = vld [vmem:[%s257 + $0x214] sm:$0xf]
      %v411 = vld [vmem:[%s257 + $0x218] sm:$0xf]
      %v412 = vld [vmem:[%s257 + $0x21c] sm:$0xf]
      %v413 = vld [vmem:[%s257 + $0x220] sm:$0xf]
      %v414 = vld [vmem:[%s257 + $0x224] sm:$0xf]
      %v415 = vld [vmem:[%s257 + $0x228] sm:$0xf]
      %v416 = vld [vmem:[%s257 + $0x22c] sm:$0xf]
      %v417 = vld [vmem:[%s257 + $0x230] sm:$0xf]
      %v418 = vld [vmem:[%s257 + $0x234] sm:$0xf]
      %v419 = vld [vmem:[%s257 + $0x238] sm:$0xf]
      %v420 = vld [vmem:[%s257 + $0x23c] sm:$0xf]
      %v421 = vld [vmem:[%s0] sm:$0xff]
      %v422 = vld [vmem:[%s0 + $0x8] sm:$0xff]
      %v423 = vld [vmem:[%s0 + $0x10] sm:$0xff]
      %v424 = vld [vmem:[%s0 + $0x18] sm:$0xff]
      %v425 = vld [vmem:[%s0 + $0x20] sm:$0xff]
      %v426 = vld [vmem:[%s0 + $0x28] sm:$0xff]
      %v427 = vld [vmem:[%s0 + $0x30] sm:$0xff]
      %v428 = vld [vmem:[%s0 + $0x38] sm:$0xff]
      %v429 = vld [vmem:[%s0 + $0x40] sm:$0xff]
      %v430 = vld [vmem:[%s0 + $0x48] sm:$0xff]
      %v431 = vld [vmem:[%s0 + $0x50] sm:$0xff]
      %v432 = vld [vmem:[%s0 + $0x58] sm:$0xff]
      %v433 = vpack.c.bf16 %v422, %v421
      %v434 = vpack.c.bf16 %v424, %v423
      %v435 = vpack.c.bf16 %v426, %v425
      %v436 = vpack.c.bf16 %v428, %v427
      %v437 = vpack.c.bf16 %v430, %v429
      %v438 = vpack.c.bf16 %v432, %v431
      %v439 = vld [vmem:[%s263] sm:$0xff]
      %v440 = vld [vmem:[%s263 + $0x8] sm:$0xff]
      %v441 = vld [vmem:[%s263 + $0x10] sm:$0xff]
      %v442 = vld [vmem:[%s263 + $0x18] sm:$0xff]
      %v443 = vld [vmem:[%s263 + $0x20] sm:$0xff]
      %v444 = vld [vmem:[%s263 + $0x28] sm:$0xff]
      %v445 = vld [vmem:[%s263 + $0x30] sm:$0xff]
      %v446 = vld [vmem:[%s263 + $0x38] sm:$0xff]
      %v447 = vld [vmem:[%s263 + $0x40] sm:$0xff]
      %v448 = vld [vmem:[%s263 + $0x48] sm:$0xff]
      %v449 = vld [vmem:[%s263 + $0x50] sm:$0xff]
      %v450 = vld [vmem:[%s263 + $0x58] sm:$0xff]
      %v451 = vld [vmem:[%s263 + $0x60] sm:$0xff]
      %v452 = vld [vmem:[%s263 + $0x68] sm:$0xff]
      %v453 = vld [vmem:[%s263 + $0x70] sm:$0xff]
      %v454 = vld [vmem:[%s263 + $0x78] sm:$0xff]
      %v455 = vld [vmem:[%s263 + $0x80] sm:$0xff]
      %v456 = vld [vmem:[%s263 + $0x88] sm:$0xff]
      %v457 = vld [vmem:[%s263 + $0x90] sm:$0xff]
      %v458 = vld [vmem:[%s263 + $0x98] sm:$0xff]
      %v459 = vld [vmem:[%s263 + $0xa0] sm:$0xff]
      %v460 = vld [vmem:[%s263 + $0xa8] sm:$0xff]
      %v461 = vld [vmem:[%s263 + $0xb0] sm:$0xff]
      %v462 = vld [vmem:[%s263 + $0xb8] sm:$0xff]
      %v463 = vld [vmem:[%s263 + $0xc0] sm:$0xff]
      %v464 = vld [vmem:[%s263 + $0xc8] sm:$0xff]
      %v465 = vld [vmem:[%s263 + $0xd0] sm:$0xff]
      %v466 = vld [vmem:[%s263 + $0xd8] sm:$0xff]
      %v467 = vld [vmem:[%s263 + $0xe0] sm:$0xff]
      %v468 = vld [vmem:[%s263 + $0xe8] sm:$0xff]
      %v469 = vld [vmem:[%s263 + $0xf0] sm:$0xff]
      %v470 = vld [vmem:[%s263 + $0xf8] sm:$0xff]
      %v471 = vld [vmem:[%s263 + $0x100] sm:$0xff]
      %v472 = vld [vmem:[%s263 + $0x108] sm:$0xff]
      %v473 = vld [vmem:[%s263 + $0x110] sm:$0xff]
      %v474 = vld [vmem:[%s263 + $0x118] sm:$0xff]
      %v475 = vld [vmem:[%s263 + $0x120] sm:$0xff]
      %v476 = vld [vmem:[%s263 + $0x128] sm:$0xff]
      %v477 = vld [vmem:[%s263 + $0x130] sm:$0xff]
      %v478 = vld [vmem:[%s263 + $0x138] sm:$0xff]
      %v479 = vld [vmem:[%s263 + $0x140] sm:$0xff]
      %v480 = vld [vmem:[%s263 + $0x148] sm:$0xff]
      %v481 = vld [vmem:[%s263 + $0x150] sm:$0xff]
      %v482 = vld [vmem:[%s263 + $0x158] sm:$0xff]
      %v483 = vld [vmem:[%s263 + $0x160] sm:$0xff]
      %v484 = vld [vmem:[%s263 + $0x168] sm:$0xff]
      %v485 = vld [vmem:[%s263 + $0x170] sm:$0xff]
      %v486 = vld [vmem:[%s263 + $0x178] sm:$0xff]
      %v487 = vld [vmem:[%s263 + $0x180] sm:$0xff]
      %v488 = vld [vmem:[%s263 + $0x188] sm:$0xff]
      %v489 = vld [vmem:[%s263 + $0x190] sm:$0xff]
      %v490 = vld [vmem:[%s263 + $0x198] sm:$0xff]
      %v491 = vld [vmem:[%s263 + $0x1a0] sm:$0xff]
      %v492 = vld [vmem:[%s263 + $0x1a8] sm:$0xff]
      %v493 = vld [vmem:[%s263 + $0x1b0] sm:$0xff]
      %v494 = vld [vmem:[%s263 + $0x1b8] sm:$0xff]
      %v495 = vld [vmem:[%s263 + $0x1c0] sm:$0xff]
      %v496 = vld [vmem:[%s263 + $0x1c8] sm:$0xff]
      %v497 = vld [vmem:[%s263 + $0x1d0] sm:$0xff]
      %v498 = vld [vmem:[%s263 + $0x1d8] sm:$0xff]
      %v499 = vld [vmem:[%s263 + $0x1e0] sm:$0xff]
      %v500 = vld [vmem:[%s263 + $0x1e8] sm:$0xff]
      %v501 = vld [vmem:[%s263 + $0x1f0] sm:$0xff]
      %v502 = vld [vmem:[%s263 + $0x1f8] sm:$0xff]
      %v503 = vld [vmem:[%s263 + $0x200] sm:$0xff]
      %v504 = vld [vmem:[%s263 + $0x208] sm:$0xff]
      %v505 = vld [vmem:[%s263 + $0x210] sm:$0xff]
      %v506 = vld [vmem:[%s263 + $0x218] sm:$0xff]
      %v507 = vld [vmem:[%s263 + $0x220] sm:$0xff]
      %v508 = vld [vmem:[%s263 + $0x228] sm:$0xff]
      %v509 = vld [vmem:[%s263 + $0x230] sm:$0xff]
      %v510 = vld [vmem:[%s263 + $0x238] sm:$0xff]
      %v511 = vld [vmem:[%s263 + $0x240] sm:$0xff]
      %v512 = vld [vmem:[%s263 + $0x248] sm:$0xff]
      %v513 = vld [vmem:[%s263 + $0x250] sm:$0xff]
      %v514 = vld [vmem:[%s263 + $0x258] sm:$0xff]
      %v515 = vld [vmem:[%s263 + $0x260] sm:$0xff]
      %v516 = vld [vmem:[%s263 + $0x268] sm:$0xff]
      %v517 = vld [vmem:[%s263 + $0x270] sm:$0xff]
      %v518 = vld [vmem:[%s263 + $0x278] sm:$0xff]
      %v519 = vld [vmem:[%s263 + $0x280] sm:$0xff]
      %v520 = vld [vmem:[%s263 + $0x288] sm:$0xff]
      %v521 = vld [vmem:[%s263 + $0x290] sm:$0xff]
      %v522 = vld [vmem:[%s263 + $0x298] sm:$0xff]
      %v523 = vld [vmem:[%s263 + $0x2a0] sm:$0xff]
      %v524 = vld [vmem:[%s263 + $0x2a8] sm:$0xff]
      %v525 = vld [vmem:[%s263 + $0x2b0] sm:$0xff]
      %v526 = vld [vmem:[%s263 + $0x2b8] sm:$0xff]
      %v527 = vld [vmem:[%s263 + $0x2c0] sm:$0xff]
      %v528 = vld [vmem:[%s263 + $0x2c8] sm:$0xff]
      %v529 = vld [vmem:[%s263 + $0x2d0] sm:$0xff]
      %v530 = vld [vmem:[%s263 + $0x2d8] sm:$0xff]
      %v531 = vld [vmem:[%s263 + $0x2e0] sm:$0xff]
      %v532 = vld [vmem:[%s263 + $0x2e8] sm:$0xff]
      %v533 = vld [vmem:[%s263 + $0x2f0] sm:$0xff]
      %v534 = vld [vmem:[%s263 + $0x2f8] sm:$0xff]
      %v535 = vld [vmem:[%s263 + $0x300] sm:$0xff]
      %v536 = vld [vmem:[%s263 + $0x308] sm:$0xff]
      %v537 = vld [vmem:[%s263 + $0x310] sm:$0xff]
      %v538 = vld [vmem:[%s263 + $0x318] sm:$0xff]
      %v539 = vld [vmem:[%s263 + $0x320] sm:$0xff]
      %v540 = vld [vmem:[%s263 + $0x328] sm:$0xff]
      %v541 = vld [vmem:[%s263 + $0x330] sm:$0xff]
      %v542 = vld [vmem:[%s263 + $0x338] sm:$0xff]
      %v543 = vld [vmem:[%s263 + $0x340] sm:$0xff]
      %v544 = vld [vmem:[%s263 + $0x348] sm:$0xff]
      %v545 = vld [vmem:[%s263 + $0x350] sm:$0xff]
      %v546 = vld [vmem:[%s263 + $0x358] sm:$0xff]
      %v547 = vld [vmem:[%s263 + $0x360] sm:$0xff]
      %v548 = vld [vmem:[%s263 + $0x368] sm:$0xff]
      %v549 = vld [vmem:[%s263 + $0x370] sm:$0xff]
      %v550 = vld [vmem:[%s263 + $0x378] sm:$0xff]
      %v551 = vld [vmem:[%s263 + $0x380] sm:$0xff]
      %v552 = vld [vmem:[%s263 + $0x388] sm:$0xff]
      %v553 = vld [vmem:[%s263 + $0x390] sm:$0xff]
      %v554 = vld [vmem:[%s263 + $0x398] sm:$0xff]
      %v555 = vld [vmem:[%s263 + $0x3a0] sm:$0xff]
      %v556 = vld [vmem:[%s263 + $0x3a8] sm:$0xff]
      %v557 = vld [vmem:[%s263 + $0x3b0] sm:$0xff]
      %v558 = vld [vmem:[%s263 + $0x3b8] sm:$0xff]
      %v559 = vld [vmem:[%s263 + $0x3c0] sm:$0xff]
      %v560 = vld [vmem:[%s263 + $0x3c8] sm:$0xff]
      %v561 = vld [vmem:[%s263 + $0x3d0] sm:$0xff]
      %v562 = vld [vmem:[%s263 + $0x3d8] sm:$0xff]
      %v563 = vld [vmem:[%s263 + $0x3e0] sm:$0xff]
      %v564 = vld [vmem:[%s263 + $0x3e8] sm:$0xff]
      %v565 = vld [vmem:[%s263 + $0x3f0] sm:$0xff]
      %v566 = vld [vmem:[%s263 + $0x3f8] sm:$0xff]
      %v567 = vld [vmem:[%s263 + $0x400] sm:$0xff]
      %v568 = vld [vmem:[%s263 + $0x408] sm:$0xff]
      %v569 = vld [vmem:[%s263 + $0x410] sm:$0xff]
      %v570 = vld [vmem:[%s263 + $0x418] sm:$0xff]
      %v571 = vld [vmem:[%s263 + $0x420] sm:$0xff]
      %v572 = vld [vmem:[%s263 + $0x428] sm:$0xff]
      %v573 = vld [vmem:[%s263 + $0x430] sm:$0xff]
      %v574 = vld [vmem:[%s263 + $0x438] sm:$0xff]
      %v575 = vld [vmem:[%s263 + $0x440] sm:$0xff]
      %v576 = vld [vmem:[%s263 + $0x448] sm:$0xff]
      %v577 = vld [vmem:[%s263 + $0x450] sm:$0xff]
      %v578 = vld [vmem:[%s263 + $0x458] sm:$0xff]
      %v579 = vld [vmem:[%s263 + $0x460] sm:$0xff]
      %v580 = vld [vmem:[%s263 + $0x468] sm:$0xff]
      %v581 = vld [vmem:[%s263 + $0x470] sm:$0xff]
      %v582 = vld [vmem:[%s263 + $0x478] sm:$0xff]
      %v727 = vunpack.c.l.b16 %v277
      %v728 = vunpack.c.l.b16 %v278
      %v729 = vunpack.c.l.b16 %v279
      %v730 = vunpack.c.l.b16 %v280
      %v731 = vunpack.c.l.b16 %v281
      %v732 = vunpack.c.l.b16 %v282
      %v733 = vunpack.c.l.b16 %v283
      %v734 = vunpack.c.l.b16 %v284
      %v735 = vunpack.c.l.b16 %v285
      %v736 = vunpack.c.l.b16 %v286
      %v737 = vunpack.c.l.b16 %v287
      %v738 = vunpack.c.l.b16 %v288
      %v739 = vunpack.c.l.b16 %v289
      %v740 = vunpack.c.l.b16 %v290
      %v741 = vunpack.c.l.b16 %v291
      %v742 = vunpack.c.l.b16 %v292
      %v743 = vunpack.c.l.b16 %v293
      %v744 = vunpack.c.l.b16 %v294
      %v745 = vunpack.c.l.b16 %v295
      %v746 = vunpack.c.l.b16 %v296
      %v747 = vunpack.c.l.b16 %v297
      %v748 = vunpack.c.l.b16 %v298
      %v749 = vunpack.c.l.b16 %v299
      %v750 = vunpack.c.l.b16 %v300
      %v751 = vunpack.c.l.b16 %v301
      %v752 = vunpack.c.l.b16 %v302
      %v753 = vunpack.c.l.b16 %v303
      %v754 = vunpack.c.l.b16 %v304
      %v755 = vunpack.c.l.b16 %v305
      %v756 = vunpack.c.l.b16 %v306
      %v757 = vunpack.c.l.b16 %v307
      %v758 = vunpack.c.l.b16 %v308
      %v759 = vunpack.c.l.b16 %v309
      %v760 = vunpack.c.l.b16 %v310
      %v761 = vunpack.c.l.b16 %v311
      %v762 = vunpack.c.l.b16 %v312
      %v763 = vunpack.c.l.b16 %v313
      %v764 = vunpack.c.l.b16 %v314
      %v765 = vunpack.c.l.b16 %v315
      %v766 = vunpack.c.l.b16 %v316
      %v767 = vunpack.c.l.b16 %v317
      %v768 = vunpack.c.l.b16 %v318
      %v769 = vunpack.c.l.b16 %v319
      %v770 = vunpack.c.l.b16 %v320
      %v771 = vunpack.c.l.b16 %v321
      %v772 = vunpack.c.l.b16 %v322
      %v773 = vunpack.c.l.b16 %v323
      %v774 = vunpack.c.l.b16 %v324
      %v775 = vunpack.c.l.b16 %v325
      %v776 = vunpack.c.l.b16 %v326
      %v777 = vunpack.c.l.b16 %v327
      %v778 = vunpack.c.l.b16 %v328
      %v779 = vunpack.c.l.b16 %v329
      %v780 = vunpack.c.l.b16 %v330
      %v781 = vunpack.c.l.b16 %v331
      %v782 = vunpack.c.l.b16 %v332
      %v783 = vunpack.c.l.b16 %v333
      %v784 = vunpack.c.l.b16 %v334
      %v785 = vunpack.c.l.b16 %v335
      %v786 = vunpack.c.l.b16 %v336
      %v787 = vunpack.c.l.b16 %v337
      %v788 = vunpack.c.l.b16 %v338
      %v789 = vunpack.c.l.b16 %v339
      %v790 = vunpack.c.l.b16 %v340
      %v791 = vunpack.c.l.b16 %v341
      %v792 = vunpack.c.l.b16 %v342
      %v793 = vunpack.c.l.b16 %v343
      %v794 = vunpack.c.l.b16 %v344
      %v795 = vunpack.c.l.b16 %v345
      %v796 = vunpack.c.l.b16 %v346
      %v797 = vunpack.c.l.b16 %v347
      %v798 = vunpack.c.l.b16 %v348
      %v799 = vunpack.c.l.b16 %v349
      %v800 = vunpack.c.l.b16 %v350
      %v801 = vunpack.c.l.b16 %v351
      %v802 = vunpack.c.l.b16 %v352
      %v803 = vunpack.c.l.b16 %v353
      %v804 = vunpack.c.l.b16 %v354
      %v805 = vunpack.c.l.b16 %v355
      %v806 = vunpack.c.l.b16 %v356
      %v807 = vunpack.c.l.b16 %v357
      %v808 = vunpack.c.l.b16 %v358
      %v809 = vunpack.c.l.b16 %v359
      %v810 = vunpack.c.l.b16 %v360
      %v811 = vunpack.c.l.b16 %v361
      %v812 = vunpack.c.l.b16 %v362
      %v813 = vunpack.c.l.b16 %v363
      %v814 = vunpack.c.l.b16 %v364
      %v815 = vunpack.c.l.b16 %v365
      %v816 = vunpack.c.l.b16 %v366
      %v817 = vunpack.c.l.b16 %v367
      %v818 = vunpack.c.l.b16 %v368
      %v819 = vunpack.c.l.b16 %v369
      %v820 = vunpack.c.l.b16 %v370
      %v821 = vunpack.c.l.b16 %v371
      %v822 = vunpack.c.l.b16 %v372
      %v823 = vunpack.c.l.b16 %v373
      %v824 = vunpack.c.l.b16 %v374
      %v825 = vunpack.c.l.b16 %v375
      %v826 = vunpack.c.l.b16 %v376
      %v827 = vunpack.c.l.b16 %v377
      %v828 = vunpack.c.l.b16 %v378
      %v829 = vunpack.c.l.b16 %v379
      %v830 = vunpack.c.l.b16 %v380
      %v831 = vunpack.c.l.b16 %v381
      %v832 = vunpack.c.l.b16 %v382
      %v833 = vunpack.c.l.b16 %v383
      %v834 = vunpack.c.l.b16 %v384
      %v835 = vunpack.c.l.b16 %v385
      %v836 = vunpack.c.l.b16 %v386
      %v837 = vunpack.c.l.b16 %v387
      %v838 = vunpack.c.l.b16 %v388
      %v839 = vunpack.c.l.b16 %v389
      %v840 = vunpack.c.l.b16 %v390
      %v841 = vunpack.c.l.b16 %v391
      %v842 = vunpack.c.l.b16 %v392
      %v843 = vunpack.c.l.b16 %v393
      %v844 = vunpack.c.l.b16 %v394
      %v845 = vunpack.c.l.b16 %v395
      %v846 = vunpack.c.l.b16 %v396
      %v847 = vunpack.c.l.b16 %v397
      %v848 = vunpack.c.l.b16 %v398
      %v849 = vunpack.c.l.b16 %v399
      %v850 = vunpack.c.l.b16 %v400
      %v851 = vunpack.c.l.b16 %v401
      %v852 = vunpack.c.l.b16 %v402
      %v853 = vunpack.c.l.b16 %v403
      %v854 = vunpack.c.l.b16 %v404
      %v855 = vunpack.c.l.b16 %v405
      %v856 = vunpack.c.l.b16 %v406
      %v857 = vunpack.c.l.b16 %v407
      %v858 = vunpack.c.l.b16 %v408
      %v859 = vunpack.c.l.b16 %v409
      %v860 = vunpack.c.l.b16 %v410
      %v861 = vunpack.c.l.b16 %v411
      %v862 = vunpack.c.l.b16 %v412
      %v863 = vunpack.c.l.b16 %v413
      %v864 = vunpack.c.l.b16 %v414
      %v865 = vunpack.c.l.b16 %v415
      %v866 = vunpack.c.l.b16 %v416
      %v867 = vunpack.c.l.b16 %v417
      %v868 = vunpack.c.l.b16 %v418
      %v869 = vunpack.c.l.b16 %v419
      %v870 = vunpack.c.l.b16 %v420
      %v871 = vpack.c.b16 %v728, %v727
      %v872 = vpack.c.b16 %v730, %v729
      %v873 = vpack.c.b16 %v732, %v731
      %v874 = vpack.c.b16 %v734, %v733
      %v875 = vpack.c.b16 %v736, %v735
      %v876 = vpack.c.b16 %v738, %v737
      %v877 = vpack.c.b16 %v740, %v739
      %v878 = vpack.c.b16 %v742, %v741
      %v879 = vpack.c.b16 %v744, %v743
      %v880 = vpack.c.b16 %v746, %v745
      %v881 = vpack.c.b16 %v748, %v747
      %v882 = vpack.c.b16 %v750, %v749
      %v883 = vpack.c.b16 %v752, %v751
      %v884 = vpack.c.b16 %v754, %v753
      %v885 = vpack.c.b16 %v756, %v755
      %v886 = vpack.c.b16 %v758, %v757
      %v887 = vpack.c.b16 %v760, %v759
      %v888 = vpack.c.b16 %v762, %v761
      %v889 = vpack.c.b16 %v764, %v763
      %v890 = vpack.c.b16 %v766, %v765
      %v891 = vpack.c.b16 %v768, %v767
      %v892 = vpack.c.b16 %v770, %v769
      %v893 = vpack.c.b16 %v772, %v771
      %v894 = vpack.c.b16 %v774, %v773
      %v895 = vpack.c.b16 %v776, %v775
      %v896 = vpack.c.b16 %v778, %v777
      %v897 = vpack.c.b16 %v780, %v779
      %v898 = vpack.c.b16 %v782, %v781
      %v899 = vpack.c.b16 %v784, %v783
      %v900 = vpack.c.b16 %v786, %v785
      %v901 = vpack.c.b16 %v788, %v787
      %v902 = vpack.c.b16 %v790, %v789
      %v903 = vpack.c.b16 %v792, %v791
      %v904 = vpack.c.b16 %v794, %v793
      %v905 = vpack.c.b16 %v796, %v795
      %v906 = vpack.c.b16 %v798, %v797
      %v907 = vpack.c.b16 %v800, %v799
      %v908 = vpack.c.b16 %v802, %v801
      %v909 = vpack.c.b16 %v804, %v803
      %v910 = vpack.c.b16 %v806, %v805
      %v911 = vpack.c.b16 %v808, %v807
      %v912 = vpack.c.b16 %v810, %v809
      %v913 = vpack.c.b16 %v812, %v811
      %v914 = vpack.c.b16 %v814, %v813
      %v915 = vpack.c.b16 %v816, %v815
      %v916 = vpack.c.b16 %v818, %v817
      %v917 = vpack.c.b16 %v820, %v819
      %v918 = vpack.c.b16 %v822, %v821
      %v919 = vpack.c.b16 %v824, %v823
      %v920 = vpack.c.b16 %v826, %v825
      %v921 = vpack.c.b16 %v828, %v827
      %v922 = vpack.c.b16 %v830, %v829
      %v923 = vpack.c.b16 %v832, %v831
      %v924 = vpack.c.b16 %v834, %v833
      %v925 = vpack.c.b16 %v836, %v835
      %v926 = vpack.c.b16 %v838, %v837
      %v927 = vpack.c.b16 %v840, %v839
      %v928 = vpack.c.b16 %v842, %v841
      %v929 = vpack.c.b16 %v844, %v843
      %v930 = vpack.c.b16 %v846, %v845
      %v931 = vpack.c.b16 %v848, %v847
      %v932 = vpack.c.b16 %v850, %v849
      %v933 = vpack.c.b16 %v852, %v851
      %v934 = vpack.c.b16 %v854, %v853
      %v935 = vpack.c.b16 %v856, %v855
      %v936 = vpack.c.b16 %v858, %v857
      %v937 = vpack.c.b16 %v860, %v859
      %v938 = vpack.c.b16 %v862, %v861
      %v939 = vpack.c.b16 %v864, %v863
      %v940 = vpack.c.b16 %v866, %v865
      %v941 = vpack.c.b16 %v868, %v867
      %v942 = vpack.c.b16 %v870, %v869
      %vm943 = vcmask 785408
      %v945 = vsel %vm943, %v871, 0
      %v948 = vsel %vm943, %v872, 0
      %v951 = vsel %vm943, %v873, 0
      %v954 = vsel %vm943, %v874, 0
      %v957 = vsel %vm943, %v875, 0
      %v960 = vsel %vm943, %v876, 0
      %v963 = vsel %vm943, %v877, 0
      %v966 = vsel %vm943, %v878, 0
      %v969 = vsel %vm943, %v879, 0
      %v972 = vsel %vm943, %v880, 0
      %v975 = vsel %vm943, %v881, 0
      %v978 = vsel %vm943, %v882, 0
      %v981 = vsel %vm943, %v883, 0
      %v984 = vsel %vm943, %v884, 0
      %v987 = vsel %vm943, %v885, 0
      %v990 = vsel %vm943, %v886, 0
      %v993 = vsel %vm943, %v887, 0
      %v996 = vsel %vm943, %v888, 0
      %v999 = vsel %vm943, %v889, 0
      %v1002 = vsel %vm943, %v890, 0
      %v1005 = vsel %vm943, %v891, 0
      %v1008 = vsel %vm943, %v892, 0
      %v1011 = vsel %vm943, %v893, 0
      %v1014 = vsel %vm943, %v894, 0
      %v1017 = vsel %vm943, %v895, 0
      %v1020 = vsel %vm943, %v896, 0
      %v1023 = vsel %vm943, %v897, 0
      %v1026 = vsel %vm943, %v898, 0
      %v1029 = vsel %vm943, %v899, 0
      %v1032 = vsel %vm943, %v900, 0
      %v1035 = vsel %vm943, %v901, 0
      %v1038 = vsel %vm943, %v902, 0
      %v1041 = vsel %vm943, %v903, 0
      %v1044 = vsel %vm943, %v904, 0
      %v1047 = vsel %vm943, %v905, 0
      %v1050 = vsel %vm943, %v906, 0
      %v1053 = vsel %vm943, %v907, 0
      %v1056 = vsel %vm943, %v908, 0
      %v1059 = vsel %vm943, %v909, 0
      %v1062 = vsel %vm943, %v910, 0
      %v1065 = vsel %vm943, %v911, 0
      %v1068 = vsel %vm943, %v912, 0
      %v1071 = vsel %vm943, %v913, 0
      %v1074 = vsel %vm943, %v914, 0
      %v1077 = vsel %vm943, %v915, 0
      %v1080 = vsel %vm943, %v916, 0
      %v1083 = vsel %vm943, %v917, 0
      %v1086 = vsel %vm943, %v918, 0
      %v1089 = vsel %vm943, %v919, 0
      %v1092 = vsel %vm943, %v920, 0
      %v1095 = vsel %vm943, %v921, 0
      %v1098 = vsel %vm943, %v922, 0
      %v1101 = vsel %vm943, %v923, 0
      %v1104 = vsel %vm943, %v924, 0
      %v1107 = vsel %vm943, %v925, 0
      %v1110 = vsel %vm943, %v926, 0
      %v1113 = vsel %vm943, %v927, 0
      %v1116 = vsel %vm943, %v928, 0
      %v1119 = vsel %vm943, %v929, 0
      %v1122 = vsel %vm943, %v930, 0
      %v1125 = vsel %vm943, %v931, 0
      %v1128 = vsel %vm943, %v932, 0
      %v1131 = vsel %vm943, %v933, 0
      %v1134 = vsel %vm943, %v934, 0
      %v1137 = vsel %vm943, %v935, 0
      %v1140 = vsel %vm943, %v936, 0
      %v1143 = vsel %vm943, %v937, 0
      %v1146 = vsel %vm943, %v938, 0
      %v1149 = vsel %vm943, %v939, 0
      %v1152 = vsel %vm943, %v940, 0
      %v1155 = vsel %vm943, %v941, 0
      %v1158 = vsel %vm943, %v942, 0
      %1160 = vmatprep.subr.bf16.mxu0 0
      %1161 = vmatpush1.bf16.msra.mxu0 %v433
      %1162 = vmatprep.subr.bf16.mxu0 0
      %1163 = vmatpush1.bf16.msra.mxu0 %v434
      %1164 = vmatprep.subr.bf16.mxu0 0
      %1165 = vmatpush1.bf16.msra.mxu0 %v435
      %1166 = vmatprep.subr.bf16.mxu0 0
      %1167 = vmatpush1.bf16.msra.mxu0 %v436
      %1168 = vmatprep.subr.bf16.mxu0 0
      %1169 = vmatpush1.bf16.msra.mxu0 %v437
      %1170 = vmatprep.subr.bf16.mxu0 0
      %1171 = vmatpush1.bf16.msra.mxu0 %v438
      %1172 = vmatprep.subr.bf16.mxu0 0
      %1173 = vmatpush1.bf16.msra.mxu0 0
      %1174 = vmatprep.subr.bf16.mxu0 0
      %1175 = vmatpush1.bf16.msra.mxu0 0
      %1176 = vmatprep.subr.bf16.mxu0 0
      %1177 = vmatpush1.bf16.msra.mxu0 0
      %1178 = vmatprep.subr.bf16.mxu0 0
      %1179 = vmatpush1.bf16.msra.mxu0 0
      %1180 = vmatprep.subr.bf16.mxu0 0
      %1181 = vmatpush1.bf16.msra.mxu0 0
      %1182 = vmatprep.subr.bf16.mxu0 0
      %1183 = vmatpush1.bf16.msra.mxu0 0
      %1184 = vmatprep.subr.bf16.mxu0 0
      %1185 = vmatpush1.bf16.msra.mxu0 0
      %1186 = vmatprep.subr.bf16.mxu0 0
      %1187 = vmatpush1.bf16.msra.mxu0 0
      %1188 = vmatprep.subr.bf16.mxu0 0
      %1189 = vmatpush1.bf16.msra.mxu0 0
      %1190 = vmatprep.subr.bf16.mxu0 0
      %1191 = vmatpush1.bf16.msra.mxu0 0
      %1192 = vmatprep.mubr.bf16.mxu0 0
      %1193 = vmatmul.mubr.bf16.gmra.mrb[0].mxu0 %v945
      %v1194 = vpop.f32.mrb[0].mxu0
      %v1195 = vadd.f32 %v439, %v1194
      %v1196 = vpop.f32.mrb[0].mxu0
      %v1197 = vpop.f32.mrb[0].mxu0
      %v1198 = vadd.f32 %v440, %v1197
      %v1199 = vpop.f32.mrb[0].mxu0
      %1200 = vmatprep.mubr.bf16.mxu0 0
      %1201 = vmatmul.mubr.bf16.gmra.mrb[0].mxu0 %v948
      %v1202 = vpop.f32.mrb[0].mxu0
      %v1203 = vadd.f32 %v441, %v1202
      %v1204 = vpop.f32.mrb[0].mxu0
      %v1205 = vpop.f32.mrb[0].mxu0
      %v1206 = vadd.f32 %v442, %v1205
      %v1207 = vpop.f32.mrb[0].mxu0
      %1208 = vmatprep.mubr.bf16.mxu0 0
      %1209 = vmatmul.mubr.bf16.gmra.mrb[0].mxu0 %v951
      %v1210 = vpop.f32.mrb[0].mxu0
      %v1211 = vadd.f32 %v443, %v1210
      %v1212 = vpop.f32.mrb[0].mxu0
      %v1213 = vpop.f32.mrb[0].mxu0
      %v1214 = vadd.f32 %v444, %v1213
      %v1215 = vpop.f32.mrb[0].mxu0
      %1216 = vmatprep.mubr.bf16.mxu0 0
      %1217 = vmatmul.mubr.bf16.gmra.mrb[0].mxu0 %v954
      %v1218 = vpop.f32.mrb[0].mxu0
      %v1219 = vadd.f32 %v445, %v1218
      %v1220 = vpop.f32.mrb[0].mxu0
      %v1221 = vpop.f32.mrb[0].mxu0
      %v1222 = vadd.f32 %v446, %v1221
      %v1223 = vpop.f32.mrb[0].mxu0
      %1224 = vmatprep.mubr.bf16.mxu0 0
      %1225 = vmatmul.mubr.bf16.gmra.mrb[0].mxu0 %v957
      %v1226 = vpop.f32.mrb[0].mxu0
      %v1227 = vadd.f32 %v447, %v1226
      %v1228 = vpop.f32.mrb[0].mxu0
      %v1229 = vpop.f32.mrb[0].mxu0
      %v1230 = vadd.f32 %v448, %v1229
      %v1231 = vpop.f32.mrb[0].mxu0
      %1232 = vmatprep.mubr.bf16.mxu0 0
      %1233 = vmatmul.mubr.bf16.gmra.mrb[0].mxu0 %v960
      %v1234 = vpop.f32.mrb[0].mxu0
      %v1235 = vadd.f32 %v449, %v1234
      %v1236 = vpop.f32.mrb[0].mxu0
      %v1237 = vpop.f32.mrb[0].mxu0
      %v1238 = vadd.f32 %v450, %v1237
      %v1239 = vpop.f32.mrb[0].mxu0
      %1240 = vmatprep.mubr.bf16.mxu0 0
      %1241 = vmatmul.mubr.bf16.gmra.mrb[0].mxu0 %v963
      %v1242 = vpop.f32.mrb[0].mxu0
      %v1243 = vadd.f32 %v451, %v1242
      %v1244 = vpop.f32.mrb[0].mxu0
      %v1245 = vpop.f32.mrb[0].mxu0
      %v1246 = vadd.f32 %v452, %v1245
      %v1247 = vpop.f32.mrb[0].mxu0
      %1248 = vmatprep.mubr.bf16.mxu0 0
      %1249 = vmatmul.mubr.bf16.gmra.mrb[0].mxu0 %v966
      %v1250 = vpop.f32.mrb[0].mxu0
      %v1251 = vadd.f32 %v453, %v1250
      %v1252 = vpop.f32.mrb[0].mxu0
      %v1253 = vpop.f32.mrb[0].mxu0
      %v1254 = vadd.f32 %v454, %v1253
      %v1255 = vpop.f32.mrb[0].mxu0
      %1256 = vmatprep.mubr.bf16.mxu0 0
      %1257 = vmatmul.mubr.bf16.gmra.mrb[0].mxu0 %v969
      %v1258 = vpop.f32.mrb[0].mxu0
      %v1259 = vadd.f32 %v455, %v1258
      %v1260 = vpop.f32.mrb[0].mxu0
      %v1261 = vpop.f32.mrb[0].mxu0
      %v1262 = vadd.f32 %v456, %v1261
      %v1263 = vpop.f32.mrb[0].mxu0
      %1264 = vmatprep.mubr.bf16.mxu0 0
      %1265 = vmatmul.mubr.bf16.gmra.mrb[0].mxu0 %v972
      %v1266 = vpop.f32.mrb[0].mxu0
      %v1267 = vadd.f32 %v457, %v1266
      %v1268 = vpop.f32.mrb[0].mxu0
      %v1269 = vpop.f32.mrb[0].mxu0
      %v1270 = vadd.f32 %v458, %v1269
      %v1271 = vpop.f32.mrb[0].mxu0
      %1272 = vmatprep.mubr.bf16.mxu0 0
      %1273 = vmatmul.mubr.bf16.gmra.mrb[0].mxu0 %v975
      %v1274 = vpop.f32.mrb[0].mxu0
      %v1275 = vadd.f32 %v459, %v1274
      %v1276 = vpop.f32.mrb[0].mxu0
      %v1277 = vpop.f32.mrb[0].mxu0
      %v1278 = vadd.f32 %v460, %v1277
      %v1279 = vpop.f32.mrb[0].mxu0
      %1280 = vmatprep.mubr.bf16.mxu0 0
      %1281 = vmatmul.mubr.bf16.gmra.mrb[0].mxu0 %v978
      %v1282 = vpop.f32.mrb[0].mxu0
      %v1283 = vadd.f32 %v461, %v1282
      %v1284 = vpop.f32.mrb[0].mxu0
      %v1285 = vpop.f32.mrb[0].mxu0
      %v1286 = vadd.f32 %v462, %v1285
      %v1287 = vpop.f32.mrb[0].mxu0
      %1288 = vmatprep.mubr.bf16.mxu0 0
      %1289 = vmatmul.mubr.bf16.gmra.mrb[0].mxu0 %v981
      %v1290 = vpop.f32.mrb[0].mxu0
      %v1291 = vadd.f32 %v463, %v1290
      %v1292 = vpop.f32.mrb[0].mxu0
      %v1293 = vpop.f32.mrb[0].mxu0
      %v1294 = vadd.f32 %v464, %v1293
      %v1295 = vpop.f32.mrb[0].mxu0
      %1296 = vmatprep.mubr.bf16.mxu0 0
      %1297 = vmatmul.mubr.bf16.gmra.mrb[0].mxu0 %v984
      %v1298 = vpop.f32.mrb[0].mxu0
      %v1299 = vadd.f32 %v465, %v1298
      %v1300 = vpop.f32.mrb[0].mxu0
      %v1301 = vpop.f32.mrb[0].mxu0
      %v1302 = vadd.f32 %v466, %v1301
      %v1303 = vpop.f32.mrb[0].mxu0
      %1304 = vmatprep.mubr.bf16.mxu0 0
      %1305 = vmatmul.mubr.bf16.gmra.mrb[0].mxu0 %v987
      %v1306 = vpop.f32.mrb[0].mxu0
      %v1307 = vadd.f32 %v467, %v1306
      %v1308 = vpop.f32.mrb[0].mxu0
      %v1309 = vpop.f32.mrb[0].mxu0
      %v1310 = vadd.f32 %v468, %v1309
      %v1311 = vpop.f32.mrb[0].mxu0
      %1312 = vmatprep.mubr.bf16.mxu0 0
      %1313 = vmatmul.mubr.bf16.gmra.mrb[0].mxu0 %v990
      %v1314 = vpop.f32.mrb[0].mxu0
      %v1315 = vadd.f32 %v469, %v1314
      %v1316 = vpop.f32.mrb[0].mxu0
      %v1317 = vpop.f32.mrb[0].mxu0
      %v1318 = vadd.f32 %v470, %v1317
      %v1319 = vpop.f32.mrb[0].mxu0
      %1320 = vmatprep.mubr.bf16.mxu0 0
      %1321 = vmatmul.mubr.bf16.gmra.mrb[0].mxu0 %v993
      %v1322 = vpop.f32.mrb[0].mxu0
      %v1323 = vadd.f32 %v471, %v1322
      %v1324 = vpop.f32.mrb[0].mxu0
      %v1325 = vpop.f32.mrb[0].mxu0
      %v1326 = vadd.f32 %v472, %v1325
      %v1327 = vpop.f32.mrb[0].mxu0
      %1328 = vmatprep.mubr.bf16.mxu0 0
      %1329 = vmatmul.mubr.bf16.gmra.mrb[0].mxu0 %v996
      %v1330 = vpop.f32.mrb[0].mxu0
      %v1331 = vadd.f32 %v473, %v1330
      %v1332 = vpop.f32.mrb[0].mxu0
      %v1333 = vpop.f32.mrb[0].mxu0
      %v1334 = vadd.f32 %v474, %v1333
      %v1335 = vpop.f32.mrb[0].mxu0
      %1336 = vmatprep.mubr.bf16.mxu0 0
      %1337 = vmatmul.mubr.bf16.gmra.mrb[0].mxu0 %v999
      %v1338 = vpop.f32.mrb[0].mxu0
      %v1339 = vadd.f32 %v475, %v1338
      %v1340 = vpop.f32.mrb[0].mxu0
      %v1341 = vpop.f32.mrb[0].mxu0
      %v1342 = vadd.f32 %v476, %v1341
      %v1343 = vpop.f32.mrb[0].mxu0
      %1344 = vmatprep.mubr.bf16.mxu0 0
      %1345 = vmatmul.mubr.bf16.gmra.mrb[0].mxu0 %v1002
      %v1346 = vpop.f32.mrb[0].mxu0
      %v1347 = vadd.f32 %v477, %v1346
      %v1348 = vpop.f32.mrb[0].mxu0
      %v1349 = vpop.f32.mrb[0].mxu0
      %v1350 = vadd.f32 %v478, %v1349
      %v1351 = vpop.f32.mrb[0].mxu0
      %1352 = vmatprep.mubr.bf16.mxu0 0
      %1353 = vmatmul.mubr.bf16.gmra.mrb[0].mxu0 %v1005
      %v1354 = vpop.f32.mrb[0].mxu0
      %v1355 = vadd.f32 %v479, %v1354
      %v1356 = vpop.f32.mrb[0].mxu0
      %v1357 = vpop.f32.mrb[0].mxu0
      %v1358 = vadd.f32 %v480, %v1357
      %v1359 = vpop.f32.mrb[0].mxu0
      %1360 = vmatprep.mubr.bf16.mxu0 0
      %1361 = vmatmul.mubr.bf16.gmra.mrb[0].mxu0 %v1008
      %v1362 = vpop.f32.mrb[0].mxu0
      %v1363 = vadd.f32 %v481, %v1362
      %v1364 = vpop.f32.mrb[0].mxu0
      %v1365 = vpop.f32.mrb[0].mxu0
      %v1366 = vadd.f32 %v482, %v1365
      %v1367 = vpop.f32.mrb[0].mxu0
      %1368 = vmatprep.mubr.bf16.mxu0 0
      %1369 = vmatmul.mubr.bf16.gmra.mrb[0].mxu0 %v1011
      %v1370 = vpop.f32.mrb[0].mxu0
      %v1371 = vadd.f32 %v483, %v1370
      %v1372 = vpop.f32.mrb[0].mxu0
      %v1373 = vpop.f32.mrb[0].mxu0
      %v1374 = vadd.f32 %v484, %v1373
      %v1375 = vpop.f32.mrb[0].mxu0
      %1376 = vmatprep.mubr.bf16.mxu0 0
      %1377 = vmatmul.mubr.bf16.gmra.mrb[0].mxu0 %v1014
      %v1378 = vpop.f32.mrb[0].mxu0
      %v1379 = vadd.f32 %v485, %v1378
      %v1380 = vpop.f32.mrb[0].mxu0
      %v1381 = vpop.f32.mrb[0].mxu0
      %v1382 = vadd.f32 %v486, %v1381
      %v1383 = vpop.f32.mrb[0].mxu0
      %1384 = vmatprep.mubr.bf16.mxu0 0
      %1385 = vmatmul.mubr.bf16.gmra.mrb[0].mxu0 %v1017
      %v1386 = vpop.f32.mrb[0].mxu0
      %v1387 = vadd.f32 %v487, %v1386
      %v1388 = vpop.f32.mrb[0].mxu0
      %v1389 = vpop.f32.mrb[0].mxu0
      %v1390 = vadd.f32 %v488, %v1389
      %v1391 = vpop.f32.mrb[0].mxu0
      %1392 = vmatprep.mubr.bf16.mxu0 0
      %1393 = vmatmul.mubr.bf16.gmra.mrb[0].mxu0 %v1020
      %v1394 = vpop.f32.mrb[0].mxu0
      %v1395 = vadd.f32 %v489, %v1394
      %v1396 = vpop.f32.mrb[0].mxu0
      %v1397 = vpop.f32.mrb[0].mxu0
      %v1398 = vadd.f32 %v490, %v1397
      %v1399 = vpop.f32.mrb[0].mxu0
      %1400 = vmatprep.mubr.bf16.mxu0 0
      %1401 = vmatmul.mubr.bf16.gmra.mrb[0].mxu0 %v1023
      %v1402 = vpop.f32.mrb[0].mxu0
      %v1403 = vadd.f32 %v491, %v1402
      %v1404 = vpop.f32.mrb[0].mxu0
      %v1405 = vpop.f32.mrb[0].mxu0
      %v1406 = vadd.f32 %v492, %v1405
      %v1407 = vpop.f32.mrb[0].mxu0
      %1408 = vmatprep.mubr.bf16.mxu0 0
      %1409 = vmatmul.mubr.bf16.gmra.mrb[0].mxu0 %v1026
      %v1410 = vpop.f32.mrb[0].mxu0
      %v1411 = vadd.f32 %v493, %v1410
      %v1412 = vpop.f32.mrb[0].mxu0
      %v1413 = vpop.f32.mrb[0].mxu0
      %v1414 = vadd.f32 %v494, %v1413
      %v1415 = vpop.f32.mrb[0].mxu0
      %1416 = vmatprep.mubr.bf16.mxu0 0
      %1417 = vmatmul.mubr.bf16.gmra.mrb[0].mxu0 %v1029
      %v1418 = vpop.f32.mrb[0].mxu0
      %v1419 = vadd.f32 %v495, %v1418
      %v1420 = vpop.f32.mrb[0].mxu0
      %v1421 = vpop.f32.mrb[0].mxu0
      %v1422 = vadd.f32 %v496, %v1421
      %v1423 = vpop.f32.mrb[0].mxu0
      %1424 = vmatprep.mubr.bf16.mxu0 0
      %1425 = vmatmul.mubr.bf16.gmra.mrb[0].mxu0 %v1032
      %v1426 = vpop.f32.mrb[0].mxu0
      %v1427 = vadd.f32 %v497, %v1426
      %v1428 = vpop.f32.mrb[0].mxu0
      %v1429 = vpop.f32.mrb[0].mxu0
      %v1430 = vadd.f32 %v498, %v1429
      %v1431 = vpop.f32.mrb[0].mxu0
      %1432 = vmatprep.mubr.bf16.mxu0 0
      %1433 = vmatmul.mubr.bf16.gmra.mrb[0].mxu0 %v1035
      %v1434 = vpop.f32.mrb[0].mxu0
      %v1435 = vadd.f32 %v499, %v1434
      %v1436 = vpop.f32.mrb[0].mxu0
      %v1437 = vpop.f32.mrb[0].mxu0
      %v1438 = vadd.f32 %v500, %v1437
      %v1439 = vpop.f32.mrb[0].mxu0
      %1440 = vmatprep.mubr.bf16.mxu0 0
      %1441 = vmatmul.mubr.bf16.gmra.mrb[0].mxu0 %v1038
      %v1442 = vpop.f32.mrb[0].mxu0
      %v1443 = vadd.f32 %v501, %v1442
      %v1444 = vpop.f32.mrb[0].mxu0
      %v1445 = vpop.f32.mrb[0].mxu0
      %v1446 = vadd.f32 %v502, %v1445
      %v1447 = vpop.f32.mrb[0].mxu0
      %1448 = vmatprep.mubr.bf16.mxu0 0
      %1449 = vmatmul.mubr.bf16.gmra.mrb[0].mxu0 %v1041
      %v1450 = vpop.f32.mrb[0].mxu0
      %v1451 = vadd.f32 %v503, %v1450
      %v1452 = vpop.f32.mrb[0].mxu0
      %v1453 = vpop.f32.mrb[0].mxu0
      %v1454 = vadd.f32 %v504, %v1453
      %v1455 = vpop.f32.mrb[0].mxu0
      %1456 = vmatprep.mubr.bf16.mxu0 0
      %1457 = vmatmul.mubr.bf16.gmra.mrb[0].mxu0 %v1044
      %v1458 = vpop.f32.mrb[0].mxu0
      %v1459 = vadd.f32 %v505, %v1458
      %v1460 = vpop.f32.mrb[0].mxu0
      %v1461 = vpop.f32.mrb[0].mxu0
      %v1462 = vadd.f32 %v506, %v1461
      %v1463 = vpop.f32.mrb[0].mxu0
      %1464 = vmatprep.mubr.bf16.mxu0 0
      %1465 = vmatmul.mubr.bf16.gmra.mrb[0].mxu0 %v1047
      %v1466 = vpop.f32.mrb[0].mxu0
      %v1467 = vadd.f32 %v507, %v1466
      %v1468 = vpop.f32.mrb[0].mxu0
      %v1469 = vpop.f32.mrb[0].mxu0
      %v1470 = vadd.f32 %v508, %v1469
      %v1471 = vpop.f32.mrb[0].mxu0
      %1472 = vmatprep.mubr.bf16.mxu0 0
      %1473 = vmatmul.mubr.bf16.gmra.mrb[0].mxu0 %v1050
      %v1474 = vpop.f32.mrb[0].mxu0
      %v1475 = vadd.f32 %v509, %v1474
      %v1476 = vpop.f32.mrb[0].mxu0
      %v1477 = vpop.f32.mrb[0].mxu0
      %v1478 = vadd.f32 %v510, %v1477
      %v1479 = vpop.f32.mrb[0].mxu0
      %1480 = vmatprep.mubr.bf16.mxu0 0
      %1481 = vmatmul.mubr.bf16.gmra.mrb[0].mxu0 %v1053
      %v1482 = vpop.f32.mrb[0].mxu0
      %v1483 = vadd.f32 %v511, %v1482
      %v1484 = vpop.f32.mrb[0].mxu0
      %v1485 = vpop.f32.mrb[0].mxu0
      %v1486 = vadd.f32 %v512, %v1485
      %v1487 = vpop.f32.mrb[0].mxu0
      %1488 = vmatprep.mubr.bf16.mxu0 0
      %1489 = vmatmul.mubr.bf16.gmra.mrb[0].mxu0 %v1056
      %v1490 = vpop.f32.mrb[0].mxu0
      %v1491 = vadd.f32 %v513, %v1490
      %v1492 = vpop.f32.mrb[0].mxu0
      %v1493 = vpop.f32.mrb[0].mxu0
      %v1494 = vadd.f32 %v514, %v1493
      %v1495 = vpop.f32.mrb[0].mxu0
      %1496 = vmatprep.mubr.bf16.mxu0 0
      %1497 = vmatmul.mubr.bf16.gmra.mrb[0].mxu0 %v1059
      %v1498 = vpop.f32.mrb[0].mxu0
      %v1499 = vadd.f32 %v515, %v1498
      %v1500 = vpop.f32.mrb[0].mxu0
      %v1501 = vpop.f32.mrb[0].mxu0
      %v1502 = vadd.f32 %v516, %v1501
      %v1503 = vpop.f32.mrb[0].mxu0
      %1504 = vmatprep.mubr.bf16.mxu0 0
      %1505 = vmatmul.mubr.bf16.gmra.mrb[0].mxu0 %v1062
      %v1506 = vpop.f32.mrb[0].mxu0
      %v1507 = vadd.f32 %v517, %v1506
      %v1508 = vpop.f32.mrb[0].mxu0
      %v1509 = vpop.f32.mrb[0].mxu0
      %v1510 = vadd.f32 %v518, %v1509
      %v1511 = vpop.f32.mrb[0].mxu0
      %1512 = vmatprep.mubr.bf16.mxu0 0
      %1513 = vmatmul.mubr.bf16.gmra.mrb[0].mxu0 %v1065
      %v1514 = vpop.f32.mrb[0].mxu0
      %v1515 = vadd.f32 %v519, %v1514
      %v1516 = vpop.f32.mrb[0].mxu0
      %v1517 = vpop.f32.mrb[0].mxu0
      %v1518 = vadd.f32 %v520, %v1517
      %v1519 = vpop.f32.mrb[0].mxu0
      %1520 = vmatprep.mubr.bf16.mxu0 0
      %1521 = vmatmul.mubr.bf16.gmra.mrb[0].mxu0 %v1068
      %v1522 = vpop.f32.mrb[0].mxu0
      %v1523 = vadd.f32 %v521, %v1522
      %v1524 = vpop.f32.mrb[0].mxu0
      %v1525 = vpop.f32.mrb[0].mxu0
      %v1526 = vadd.f32 %v522, %v1525
      %v1527 = vpop.f32.mrb[0].mxu0
      %1528 = vmatprep.mubr.bf16.mxu0 0
      %1529 = vmatmul.mubr.bf16.gmra.mrb[0].mxu0 %v1071
      %v1530 = vpop.f32.mrb[0].mxu0
      %v1531 = vadd.f32 %v523, %v1530
      %v1532 = vpop.f32.mrb[0].mxu0
      %v1533 = vpop.f32.mrb[0].mxu0
      %v1534 = vadd.f32 %v524, %v1533
      %v1535 = vpop.f32.mrb[0].mxu0
      %1536 = vmatprep.mubr.bf16.mxu0 0
      %1537 = vmatmul.mubr.bf16.gmra.mrb[0].mxu0 %v1074
      %v1538 = vpop.f32.mrb[0].mxu0
      %v1539 = vadd.f32 %v525, %v1538
      %v1540 = vpop.f32.mrb[0].mxu0
      %v1541 = vpop.f32.mrb[0].mxu0
      %v1542 = vadd.f32 %v526, %v1541
      %v1543 = vpop.f32.mrb[0].mxu0
      %1544 = vmatprep.mubr.bf16.mxu0 0
      %1545 = vmatmul.mubr.bf16.gmra.mrb[0].mxu0 %v1077
      %v1546 = vpop.f32.mrb[0].mxu0
      %v1547 = vadd.f32 %v527, %v1546
      %v1548 = vpop.f32.mrb[0].mxu0
      %v1549 = vpop.f32.mrb[0].mxu0
      %v1550 = vadd.f32 %v528, %v1549
      %v1551 = vpop.f32.mrb[0].mxu0
      %1552 = vmatprep.mubr.bf16.mxu0 0
      %1553 = vmatmul.mubr.bf16.gmra.mrb[0].mxu0 %v1080
      %v1554 = vpop.f32.mrb[0].mxu0
      %v1555 = vadd.f32 %v529, %v1554
      %v1556 = vpop.f32.mrb[0].mxu0
      %v1557 = vpop.f32.mrb[0].mxu0
      %v1558 = vadd.f32 %v530, %v1557
      %v1559 = vpop.f32.mrb[0].mxu0
      %1560 = vmatprep.mubr.bf16.mxu0 0
      %1561 = vmatmul.mubr.bf16.gmra.mrb[0].mxu0 %v1083
      %v1562 = vpop.f32.mrb[0].mxu0
      %v1563 = vadd.f32 %v531, %v1562
      %v1564 = vpop.f32.mrb[0].mxu0
      %v1565 = vpop.f32.mrb[0].mxu0
      %v1566 = vadd.f32 %v532, %v1565
      %v1567 = vpop.f32.mrb[0].mxu0
      %1568 = vmatprep.mubr.bf16.mxu0 0
      %1569 = vmatmul.mubr.bf16.gmra.mrb[0].mxu0 %v1086
      %v1570 = vpop.f32.mrb[0].mxu0
      %v1571 = vadd.f32 %v533, %v1570
      %v1572 = vpop.f32.mrb[0].mxu0
      %v1573 = vpop.f32.mrb[0].mxu0
      %v1574 = vadd.f32 %v534, %v1573
      %v1575 = vpop.f32.mrb[0].mxu0
      %1576 = vmatprep.mubr.bf16.mxu0 0
      %1577 = vmatmul.mubr.bf16.gmra.mrb[0].mxu0 %v1089
      %v1578 = vpop.f32.mrb[0].mxu0
      %v1579 = vadd.f32 %v535, %v1578
      %v1580 = vpop.f32.mrb[0].mxu0
      %v1581 = vpop.f32.mrb[0].mxu0
      %v1582 = vadd.f32 %v536, %v1581
      %v1583 = vpop.f32.mrb[0].mxu0
      %1584 = vmatprep.mubr.bf16.mxu0 0
      %1585 = vmatmul.mubr.bf16.gmra.mrb[0].mxu0 %v1092
      %v1586 = vpop.f32.mrb[0].mxu0
      %v1587 = vadd.f32 %v537, %v1586
      %v1588 = vpop.f32.mrb[0].mxu0
      %v1589 = vpop.f32.mrb[0].mxu0
      %v1590 = vadd.f32 %v538, %v1589
      %v1591 = vpop.f32.mrb[0].mxu0
      %1592 = vmatprep.mubr.bf16.mxu0 0
      %1593 = vmatmul.mubr.bf16.gmra.mrb[0].mxu0 %v1095
      %v1594 = vpop.f32.mrb[0].mxu0
      %v1595 = vadd.f32 %v539, %v1594
      %v1596 = vpop.f32.mrb[0].mxu0
      %v1597 = vpop.f32.mrb[0].mxu0
      %v1598 = vadd.f32 %v540, %v1597
      %v1599 = vpop.f32.mrb[0].mxu0
      %1600 = vmatprep.mubr.bf16.mxu0 0
      %1601 = vmatmul.mubr.bf16.gmra.mrb[0].mxu0 %v1098
      %v1602 = vpop.f32.mrb[0].mxu0
      %v1603 = vadd.f32 %v541, %v1602
      %v1604 = vpop.f32.mrb[0].mxu0
      %v1605 = vpop.f32.mrb[0].mxu0
      %v1606 = vadd.f32 %v542, %v1605
      %v1607 = vpop.f32.mrb[0].mxu0
      %1608 = vmatprep.mubr.bf16.mxu0 0
      %1609 = vmatmul.mubr.bf16.gmra.mrb[0].mxu0 %v1101
      %v1610 = vpop.f32.mrb[0].mxu0
      %v1611 = vadd.f32 %v543, %v1610
      %v1612 = vpop.f32.mrb[0].mxu0
      %v1613 = vpop.f32.mrb[0].mxu0
      %v1614 = vadd.f32 %v544, %v1613
      %v1615 = vpop.f32.mrb[0].mxu0
      %1616 = vmatprep.mubr.bf16.mxu0 0
      %1617 = vmatmul.mubr.bf16.gmra.mrb[0].mxu0 %v1104
      %v1618 = vpop.f32.mrb[0].mxu0
      %v1619 = vadd.f32 %v545, %v1618
      %v1620 = vpop.f32.mrb[0].mxu0
      %v1621 = vpop.f32.mrb[0].mxu0
      %v1622 = vadd.f32 %v546, %v1621
      %v1623 = vpop.f32.mrb[0].mxu0
      %1624 = vmatprep.mubr.bf16.mxu0 0
      %1625 = vmatmul.mubr.bf16.gmra.mrb[0].mxu0 %v1107
      %v1626 = vpop.f32.mrb[0].mxu0
      %v1627 = vadd.f32 %v547, %v1626
      %v1628 = vpop.f32.mrb[0].mxu0
      %v1629 = vpop.f32.mrb[0].mxu0
      %v1630 = vadd.f32 %v548, %v1629
      %v1631 = vpop.f32.mrb[0].mxu0
      %1632 = vmatprep.mubr.bf16.mxu0 0
      %1633 = vmatmul.mubr.bf16.gmra.mrb[0].mxu0 %v1110
      %v1634 = vpop.f32.mrb[0].mxu0
      %v1635 = vadd.f32 %v549, %v1634
      %v1636 = vpop.f32.mrb[0].mxu0
      %v1637 = vpop.f32.mrb[0].mxu0
      %v1638 = vadd.f32 %v550, %v1637
      %v1639 = vpop.f32.mrb[0].mxu0
      %1640 = vmatprep.mubr.bf16.mxu0 0
      %1641 = vmatmul.mubr.bf16.gmra.mrb[0].mxu0 %v1113
      %v1642 = vpop.f32.mrb[0].mxu0
      %v1643 = vadd.f32 %v551, %v1642
      %v1644 = vpop.f32.mrb[0].mxu0
      %v1645 = vpop.f32.mrb[0].mxu0
      %v1646 = vadd.f32 %v552, %v1645
      %v1647 = vpop.f32.mrb[0].mxu0
      %1648 = vmatprep.mubr.bf16.mxu0 0
      %1649 = vmatmul.mubr.bf16.gmra.mrb[0].mxu0 %v1116
      %v1650 = vpop.f32.mrb[0].mxu0
      %v1651 = vadd.f32 %v553, %v1650
      %v1652 = vpop.f32.mrb[0].mxu0
      %v1653 = vpop.f32.mrb[0].mxu0
      %v1654 = vadd.f32 %v554, %v1653
      %v1655 = vpop.f32.mrb[0].mxu0
      %1656 = vmatprep.mubr.bf16.mxu0 0
      %1657 = vmatmul.mubr.bf16.gmra.mrb[0].mxu0 %v1119
      %v1658 = vpop.f32.mrb[0].mxu0
      %v1659 = vadd.f32 %v555, %v1658
      %v1660 = vpop.f32.mrb[0].mxu0
      %v1661 = vpop.f32.mrb[0].mxu0
      %v1662 = vadd.f32 %v556, %v1661
      %v1663 = vpop.f32.mrb[0].mxu0
      %1664 = vmatprep.mubr.bf16.mxu0 0
      %1665 = vmatmul.mubr.bf16.gmra.mrb[0].mxu0 %v1122
      %v1666 = vpop.f32.mrb[0].mxu0
      %v1667 = vadd.f32 %v557, %v1666
      %v1668 = vpop.f32.mrb[0].mxu0
      %v1669 = vpop.f32.mrb[0].mxu0
      %v1670 = vadd.f32 %v558, %v1669
      %v1671 = vpop.f32.mrb[0].mxu0
      %1672 = vmatprep.mubr.bf16.mxu0 0
      %1673 = vmatmul.mubr.bf16.gmra.mrb[0].mxu0 %v1125
      %v1674 = vpop.f32.mrb[0].mxu0
      %v1675 = vadd.f32 %v559, %v1674
      %v1676 = vpop.f32.mrb[0].mxu0
      %v1677 = vpop.f32.mrb[0].mxu0
      %v1678 = vadd.f32 %v560, %v1677
      %v1679 = vpop.f32.mrb[0].mxu0
      %1680 = vmatprep.mubr.bf16.mxu0 0
      %1681 = vmatmul.mubr.bf16.gmra.mrb[0].mxu0 %v1128
      %v1682 = vpop.f32.mrb[0].mxu0
      %v1683 = vadd.f32 %v561, %v1682
      %v1684 = vpop.f32.mrb[0].mxu0
      %v1685 = vpop.f32.mrb[0].mxu0
      %v1686 = vadd.f32 %v562, %v1685
      %v1687 = vpop.f32.mrb[0].mxu0
      %1688 = vmatprep.mubr.bf16.mxu0 0
      %1689 = vmatmul.mubr.bf16.gmra.mrb[0].mxu0 %v1131
      %v1690 = vpop.f32.mrb[0].mxu0
      %v1691 = vadd.f32 %v563, %v1690
      %v1692 = vpop.f32.mrb[0].mxu0
      %v1693 = vpop.f32.mrb[0].mxu0
      %v1694 = vadd.f32 %v564, %v1693
      %v1695 = vpop.f32.mrb[0].mxu0
      %1696 = vmatprep.mubr.bf16.mxu0 0
      %1697 = vmatmul.mubr.bf16.gmra.mrb[0].mxu0 %v1134
      %v1698 = vpop.f32.mrb[0].mxu0
      %v1699 = vadd.f32 %v565, %v1698
      %v1700 = vpop.f32.mrb[0].mxu0
      %v1701 = vpop.f32.mrb[0].mxu0
      %v1702 = vadd.f32 %v566, %v1701
      %v1703 = vpop.f32.mrb[0].mxu0
      %1704 = vmatprep.mubr.bf16.mxu0 0
      %1705 = vmatmul.mubr.bf16.gmra.mrb[0].mxu0 %v1137
      %v1706 = vpop.f32.mrb[0].mxu0
      %v1707 = vadd.f32 %v567, %v1706
      %v1708 = vpop.f32.mrb[0].mxu0
      %v1709 = vpop.f32.mrb[0].mxu0
      %v1710 = vadd.f32 %v568, %v1709
      %v1711 = vpop.f32.mrb[0].mxu0
      %1712 = vmatprep.mubr.bf16.mxu0 0
      %1713 = vmatmul.mubr.bf16.gmra.mrb[0].mxu0 %v1140
      %v1714 = vpop.f32.mrb[0].mxu0
      %v1715 = vadd.f32 %v569, %v1714
      %v1716 = vpop.f32.mrb[0].mxu0
      %v1717 = vpop.f32.mrb[0].mxu0
      %v1718 = vadd.f32 %v570, %v1717
      %v1719 = vpop.f32.mrb[0].mxu0
      %1720 = vmatprep.mubr.bf16.mxu0 0
      %1721 = vmatmul.mubr.bf16.gmra.mrb[0].mxu0 %v1143
      %v1722 = vpop.f32.mrb[0].mxu0
      %v1723 = vadd.f32 %v571, %v1722
      %v1724 = vpop.f32.mrb[0].mxu0
      %v1725 = vpop.f32.mrb[0].mxu0
      %v1726 = vadd.f32 %v572, %v1725
      %v1727 = vpop.f32.mrb[0].mxu0
      %1728 = vmatprep.mubr.bf16.mxu0 0
      %1729 = vmatmul.mubr.bf16.gmra.mrb[0].mxu0 %v1146
      %v1730 = vpop.f32.mrb[0].mxu0
      %v1731 = vadd.f32 %v573, %v1730
      %v1732 = vpop.f32.mrb[0].mxu0
      %v1733 = vpop.f32.mrb[0].mxu0
      %v1734 = vadd.f32 %v574, %v1733
      %v1735 = vpop.f32.mrb[0].mxu0
      %1736 = vmatprep.mubr.bf16.mxu0 0
      %1737 = vmatmul.mubr.bf16.gmra.mrb[0].mxu0 %v1149
      %v1738 = vpop.f32.mrb[0].mxu0
      %v1739 = vadd.f32 %v575, %v1738
      %v1740 = vpop.f32.mrb[0].mxu0
      %v1741 = vpop.f32.mrb[0].mxu0
      %v1742 = vadd.f32 %v576, %v1741
      %v1743 = vpop.f32.mrb[0].mxu0
      %1744 = vmatprep.mubr.bf16.mxu0 0
      %1745 = vmatmul.mubr.bf16.gmra.mrb[0].mxu0 %v1152
      %v1746 = vpop.f32.mrb[0].mxu0
      %v1747 = vadd.f32 %v577, %v1746
      %v1748 = vpop.f32.mrb[0].mxu0
      %v1749 = vpop.f32.mrb[0].mxu0
      %v1750 = vadd.f32 %v578, %v1749
      %v1751 = vpop.f32.mrb[0].mxu0
      %1752 = vmatprep.mubr.bf16.mxu0 0
      %1753 = vmatmul.mubr.bf16.gmra.mrb[0].mxu0 %v1155
      %v1754 = vpop.f32.mrb[0].mxu0
      %v1755 = vadd.f32 %v579, %v1754
      %v1756 = vpop.f32.mrb[0].mxu0
      %v1757 = vpop.f32.mrb[0].mxu0
      %v1758 = vadd.f32 %v580, %v1757
      %v1759 = vpop.f32.mrb[0].mxu0
      %1760 = vmatprep.mubr.bf16.mxu0 0
      %1761 = vmatmul.mubr.bf16.gmra.mrb[0].mxu0 %v1158
      %v1762 = vpop.f32.mrb[0].mxu0
      %v1763 = vadd.f32 %v581, %v1762
      %v1764 = vpop.f32.mrb[0].mxu0
      %v1765 = vpop.f32.mrb[0].mxu0
      %v1766 = vadd.f32 %v582, %v1765
      %v1767 = vpop.f32.mrb[0].mxu0
      %1768 = vdwg.mxu0
      %v1769 = vxor.u32 %v1195, 2147483648
      %v1770 = vxor.u32 %v1198, 2147483648
      %v1771 = vxor.u32 %v1203, 2147483648
      %v1772 = vxor.u32 %v1206, 2147483648
      %v1773 = vxor.u32 %v1211, 2147483648
      %v1774 = vxor.u32 %v1214, 2147483648
      %v1775 = vxor.u32 %v1219, 2147483648
      %v1776 = vxor.u32 %v1222, 2147483648
      %v1777 = vxor.u32 %v1227, 2147483648
      %v1778 = vxor.u32 %v1230, 2147483648
      %v1779 = vxor.u32 %v1235, 2147483648
      %v1780 = vxor.u32 %v1238, 2147483648
      %v1781 = vxor.u32 %v1243, 2147483648
      %v1782 = vxor.u32 %v1246, 2147483648
      %v1783 = vxor.u32 %v1251, 2147483648
      %v1784 = vxor.u32 %v1254, 2147483648
      %v1785 = vxor.u32 %v1259, 2147483648
      %v1786 = vxor.u32 %v1262, 2147483648
      %v1787 = vxor.u32 %v1267, 2147483648
      %v1788 = vxor.u32 %v1270, 2147483648
      %v1789 = vxor.u32 %v1275, 2147483648
      %v1790 = vxor.u32 %v1278, 2147483648
      %v1791 = vxor.u32 %v1283, 2147483648
      %v1792 = vxor.u32 %v1286, 2147483648
      %v1793 = vxor.u32 %v1291, 2147483648
      %v1794 = vxor.u32 %v1294, 2147483648
      %v1795 = vxor.u32 %v1299, 2147483648
      %v1796 = vxor.u32 %v1302, 2147483648
      %v1797 = vxor.u32 %v1307, 2147483648
      %v1798 = vxor.u32 %v1310, 2147483648
      %v1799 = vxor.u32 %v1315, 2147483648
      %v1800 = vxor.u32 %v1318, 2147483648
      %v1801 = vxor.u32 %v1323, 2147483648
      %v1802 = vxor.u32 %v1326, 2147483648
      %v1803 = vxor.u32 %v1331, 2147483648
      %v1804 = vxor.u32 %v1334, 2147483648
      %v1805 = vxor.u32 %v1339, 2147483648
      %v1806 = vxor.u32 %v1342, 2147483648
      %v1807 = vxor.u32 %v1347, 2147483648
      %v1808 = vxor.u32 %v1350, 2147483648
      %v1809 = vxor.u32 %v1355, 2147483648
      %v1810 = vxor.u32 %v1358, 2147483648
      %v1811 = vxor.u32 %v1363, 2147483648
      %v1812 = vxor.u32 %v1366, 2147483648
      %v1813 = vxor.u32 %v1371, 2147483648
      %v1814 = vxor.u32 %v1374, 2147483648
      %v1815 = vxor.u32 %v1379, 2147483648
      %v1816 = vxor.u32 %v1382, 2147483648
      %v1817 = vxor.u32 %v1387, 2147483648
      %v1818 = vxor.u32 %v1390, 2147483648
      %v1819 = vxor.u32 %v1395, 2147483648
      %v1820 = vxor.u32 %v1398, 2147483648
      %v1821 = vxor.u32 %v1403, 2147483648
      %v1822 = vxor.u32 %v1406, 2147483648
      %v1823 = vxor.u32 %v1411, 2147483648
      %v1824 = vxor.u32 %v1414, 2147483648
      %v1825 = vxor.u32 %v1419, 2147483648
      %v1826 = vxor.u32 %v1422, 2147483648
      %v1827 = vxor.u32 %v1427, 2147483648
      %v1828 = vxor.u32 %v1430, 2147483648
      %v1829 = vxor.u32 %v1435, 2147483648
      %v1830 = vxor.u32 %v1438, 2147483648
      %v1831 = vxor.u32 %v1443, 2147483648
      %v1832 = vxor.u32 %v1446, 2147483648
      %v1833 = vxor.u32 %v1451, 2147483648
      %v1834 = vxor.u32 %v1454, 2147483648
      %v1835 = vxor.u32 %v1459, 2147483648
      %v1836 = vxor.u32 %v1462, 2147483648
      %v1837 = vxor.u32 %v1467, 2147483648
      %v1838 = vxor.u32 %v1470, 2147483648
      %v1839 = vxor.u32 %v1475, 2147483648
      %v1840 = vxor.u32 %v1478, 2147483648
      %v1841 = vxor.u32 %v1483, 2147483648
      %v1842 = vxor.u32 %v1486, 2147483648
      %v1843 = vxor.u32 %v1491, 2147483648
      %v1844 = vxor.u32 %v1494, 2147483648
      %v1845 = vxor.u32 %v1499, 2147483648
      %v1846 = vxor.u32 %v1502, 2147483648
      %v1847 = vxor.u32 %v1507, 2147483648
      %v1848 = vxor.u32 %v1510, 2147483648
      %v1849 = vxor.u32 %v1515, 2147483648
      %v1850 = vxor.u32 %v1518, 2147483648
      %v1851 = vxor.u32 %v1523, 2147483648
      %v1852 = vxor.u32 %v1526, 2147483648
      %v1853 = vxor.u32 %v1531, 2147483648
      %v1854 = vxor.u32 %v1534, 2147483648
      %v1855 = vxor.u32 %v1539, 2147483648
      %v1856 = vxor.u32 %v1542, 2147483648
      %v1857 = vxor.u32 %v1547, 2147483648
      %v1858 = vxor.u32 %v1550, 2147483648
      %v1859 = vxor.u32 %v1555, 2147483648
      %v1860 = vxor.u32 %v1558, 2147483648
      %v1861 = vxor.u32 %v1563, 2147483648
      %v1862 = vxor.u32 %v1566, 2147483648
      %v1863 = vxor.u32 %v1571, 2147483648
      %v1864 = vxor.u32 %v1574, 2147483648
      %v1865 = vxor.u32 %v1579, 2147483648
      %v1866 = vxor.u32 %v1582, 2147483648
      %v1867 = vxor.u32 %v1587, 2147483648
      %v1868 = vxor.u32 %v1590, 2147483648
      %v1869 = vxor.u32 %v1595, 2147483648
      %v1870 = vxor.u32 %v1598, 2147483648
      %v1871 = vxor.u32 %v1603, 2147483648
      %v1872 = vxor.u32 %v1606, 2147483648
      %v1873 = vxor.u32 %v1611, 2147483648
      %v1874 = vxor.u32 %v1614, 2147483648
      %v1875 = vxor.u32 %v1619, 2147483648
      %v1876 = vxor.u32 %v1622, 2147483648
      %v1877 = vxor.u32 %v1627, 2147483648
      %v1878 = vxor.u32 %v1630, 2147483648
      %v1879 = vxor.u32 %v1635, 2147483648
      %v1880 = vxor.u32 %v1638, 2147483648
      %v1881 = vxor.u32 %v1643, 2147483648
      %v1882 = vxor.u32 %v1646, 2147483648
      %v1883 = vxor.u32 %v1651, 2147483648
      %v1884 = vxor.u32 %v1654, 2147483648
      %v1885 = vxor.u32 %v1659, 2147483648
      %v1886 = vxor.u32 %v1662, 2147483648
      %v1887 = vxor.u32 %v1667, 2147483648
      %v1888 = vxor.u32 %v1670, 2147483648
      %v1889 = vxor.u32 %v1675, 2147483648
      %v1890 = vxor.u32 %v1678, 2147483648
      %v1891 = vxor.u32 %v1683, 2147483648
      %v1892 = vxor.u32 %v1686, 2147483648
      %v1893 = vxor.u32 %v1691, 2147483648
      %v1894 = vxor.u32 %v1694, 2147483648
      %v1895 = vxor.u32 %v1699, 2147483648
      %v1896 = vxor.u32 %v1702, 2147483648
      %v1897 = vxor.u32 %v1707, 2147483648
      %v1898 = vxor.u32 %v1710, 2147483648
      %v1899 = vxor.u32 %v1715, 2147483648
      %v1900 = vxor.u32 %v1718, 2147483648
      %v1901 = vxor.u32 %v1723, 2147483648
      %v1902 = vxor.u32 %v1726, 2147483648
      %v1903 = vxor.u32 %v1731, 2147483648
      %v1904 = vxor.u32 %v1734, 2147483648
      %v1905 = vxor.u32 %v1739, 2147483648
      %v1906 = vxor.u32 %v1742, 2147483648
      %v1907 = vxor.u32 %v1747, 2147483648
      %v1908 = vxor.u32 %v1750, 2147483648
      %v1909 = vxor.u32 %v1755, 2147483648
      %v1910 = vxor.u32 %v1758, 2147483648
      %v1911 = vxor.u32 %v1763, 2147483648
      %v1912 = vxor.u32 %v1766, 2147483648
      %v1913 = vmul.f32 %v1769, 1.442695
      %v1914 = vpow.pop %v1913
      %v1915 = vmul.f32 %v1770, 1.442695
      %v1916 = vpow.pop %v1915
      %v1917 = vmul.f32 %v1771, 1.442695
      %v1918 = vpow.pop %v1917
      %v1919 = vmul.f32 %v1772, 1.442695
      %v1920 = vpow.pop %v1919
      %v1921 = vmul.f32 %v1773, 1.442695
      %v1922 = vpow.pop %v1921
      %v1923 = vmul.f32 %v1774, 1.442695
      %v1924 = vpow.pop %v1923
      %v1925 = vmul.f32 %v1775, 1.442695
      %v1926 = vpow.pop %v1925
      %v1927 = vmul.f32 %v1776, 1.442695
      %v1928 = vpow.pop %v1927
      %v1929 = vmul.f32 %v1777, 1.442695
      %v1930 = vpow.pop %v1929
      %v1931 = vmul.f32 %v1778, 1.442695
      %v1932 = vpow.pop %v1931
      %v1933 = vmul.f32 %v1779, 1.442695
      %v1934 = vpow.pop %v1933
      %v1935 = vmul.f32 %v1780, 1.442695
      %v1936 = vpow.pop %v1935
      %v1937 = vmul.f32 %v1781, 1.442695
      %v1938 = vpow.pop %v1937
      %v1939 = vmul.f32 %v1782, 1.442695
      %v1940 = vpow.pop %v1939
      %v1941 = vmul.f32 %v1783, 1.442695
      %v1942 = vpow.pop %v1941
      %v1943 = vmul.f32 %v1784, 1.442695
      %v1944 = vpow.pop %v1943
      %v1945 = vmul.f32 %v1785, 1.442695
      %v1946 = vpow.pop %v1945
      %v1947 = vmul.f32 %v1786, 1.442695
      %v1948 = vpow.pop %v1947
      %v1949 = vmul.f32 %v1787, 1.442695
      %v1950 = vpow.pop %v1949
      %v1951 = vmul.f32 %v1788, 1.442695
      %v1952 = vpow.pop %v1951
      %v1953 = vmul.f32 %v1789, 1.442695
      %v1954 = vpow.pop %v1953
      %v1955 = vmul.f32 %v1790, 1.442695
      %v1956 = vpow.pop %v1955
      %v1957 = vmul.f32 %v1791, 1.442695
      %v1958 = vpow.pop %v1957
      %v1959 = vmul.f32 %v1792, 1.442695
      %v1960 = vpow.pop %v1959
      %v1961 = vmul.f32 %v1793, 1.442695
      %v1962 = vpow.pop %v1961
      %v1963 = vmul.f32 %v1794, 1.442695
      %v1964 = vpow.pop %v1963
      %v1965 = vmul.f32 %v1795, 1.442695
      %v1966 = vpow.pop %v1965
      %v1967 = vmul.f32 %v1796, 1.442695
      %v1968 = vpow.pop %v1967
      %v1969 = vmul.f32 %v1797, 1.442695
      %v1970 = vpow.pop %v1969
      %v1971 = vmul.f32 %v1798, 1.442695
      %v1972 = vpow.pop %v1971
      %v1973 = vmul.f32 %v1799, 1.442695
      %v1974 = vpow.pop %v1973
      %v1975 = vmul.f32 %v1800, 1.442695
      %v1976 = vpow.pop %v1975
      %v1977 = vmul.f32 %v1801, 1.442695
      %v1978 = vpow.pop %v1977
      %v1979 = vmul.f32 %v1802, 1.442695
      %v1980 = vpow.pop %v1979
      %v1981 = vmul.f32 %v1803, 1.442695
      %v1982 = vpow.pop %v1981
      %v1983 = vmul.f32 %v1804, 1.442695
      %v1984 = vpow.pop %v1983
      %v1985 = vmul.f32 %v1805, 1.442695
      %v1986 = vpow.pop %v1985
      %v1987 = vmul.f32 %v1806, 1.442695
      %v1988 = vpow.pop %v1987
      %v1989 = vmul.f32 %v1807, 1.442695
      %v1990 = vpow.pop %v1989
      %v1991 = vmul.f32 %v1808, 1.442695
      %v1992 = vpow.pop %v1991
      %v1993 = vmul.f32 %v1809, 1.442695
      %v1994 = vpow.pop %v1993
      %v1995 = vmul.f32 %v1810, 1.442695
      %v1996 = vpow.pop %v1995
      %v1997 = vmul.f32 %v1811, 1.442695
      %v1998 = vpow.pop %v1997
      %v1999 = vmul.f32 %v1812, 1.442695
      %v2000 = vpow.pop %v1999
      %v2001 = vmul.f32 %v1813, 1.442695
      %v2002 = vpow.pop %v2001
      %v2003 = vmul.f32 %v1814, 1.442695
      %v2004 = vpow.pop %v2003
      %v2005 = vmul.f32 %v1815, 1.442695
      %v2006 = vpow.pop %v2005
      %v2007 = vmul.f32 %v1816, 1.442695
      %v2008 = vpow.pop %v2007
      %v2009 = vmul.f32 %v1817, 1.442695
      %v2010 = vpow.pop %v2009
      %v2011 = vmul.f32 %v1818, 1.442695
      %v2012 = vpow.pop %v2011
      %v2013 = vmul.f32 %v1819, 1.442695
      %v2014 = vpow.pop %v2013
      %v2015 = vmul.f32 %v1820, 1.442695
      %v2016 = vpow.pop %v2015
      %v2017 = vmul.f32 %v1821, 1.442695
      %v2018 = vpow.pop %v2017
      %v2019 = vmul.f32 %v1822, 1.442695
      %v2020 = vpow.pop %v2019
      %v2021 = vmul.f32 %v1823, 1.442695
      %v2022 = vpow.pop %v2021
      %v2023 = vmul.f32 %v1824, 1.442695
      %v2024 = vpow.pop %v2023
      %v2025 = vmul.f32 %v1825, 1.442695
      %v2026 = vpow.pop %v2025
      %v2027 = vmul.f32 %v1826, 1.442695
      %v2028 = vpow.pop %v2027
      %v2029 = vmul.f32 %v1827, 1.442695
      %v2030 = vpow.pop %v2029
      %v2031 = vmul.f32 %v1828, 1.442695
      %v2032 = vpow.pop %v2031
      %v2033 = vmul.f32 %v1829, 1.442695
      %v2034 = vpow.pop %v2033
      %v2035 = vmul.f32 %v1830, 1.442695
      %v2036 = vpow.pop %v2035
      %v2037 = vmul.f32 %v1831, 1.442695
      %v2038 = vpow.pop %v2037
      %v2039 = vmul.f32 %v1832, 1.442695
      %v2040 = vpow.pop %v2039
      %v2041 = vmul.f32 %v1833, 1.442695
      %v2042 = vpow.pop %v2041
      %v2043 = vmul.f32 %v1834, 1.442695
      %v2044 = vpow.pop %v2043
      %v2045 = vmul.f32 %v1835, 1.442695
      %v2046 = vpow.pop %v2045
      %v2047 = vmul.f32 %v1836, 1.442695
      %v2048 = vpow.pop %v2047
      %v2049 = vmul.f32 %v1837, 1.442695
      %v2050 = vpow.pop %v2049
      %v2051 = vmul.f32 %v1838, 1.442695
      %v2052 = vpow.pop %v2051
      %v2053 = vmul.f32 %v1839, 1.442695
      %v2054 = vpow.pop %v2053
      %v2055 = vmul.f32 %v1840, 1.442695
      %v2056 = vpow.pop %v2055
      %v2057 = vmul.f32 %v1841, 1.442695
      %v2058 = vpow.pop %v2057
      %v2059 = vmul.f32 %v1842, 1.442695
      %v2060 = vpow.pop %v2059
      %v2061 = vmul.f32 %v1843, 1.442695
      %v2062 = vpow.pop %v2061
      %v2063 = vmul.f32 %v1844, 1.442695
      %v2064 = vpow.pop %v2063
      %v2065 = vmul.f32 %v1845, 1.442695
      %v2066 = vpow.pop %v2065
      %v2067 = vmul.f32 %v1846, 1.442695
      %v2068 = vpow.pop %v2067
      %v2069 = vmul.f32 %v1847, 1.442695
      %v2070 = vpow.pop %v2069
      %v2071 = vmul.f32 %v1848, 1.442695
      %v2072 = vpow.pop %v2071
      %v2073 = vmul.f32 %v1849, 1.442695
      %v2074 = vpow.pop %v2073
      %v2075 = vmul.f32 %v1850, 1.442695
      %v2076 = vpow.pop %v2075
      %v2077 = vmul.f32 %v1851, 1.442695
      %v2078 = vpow.pop %v2077
      %v2079 = vmul.f32 %v1852, 1.442695
      %v2080 = vpow.pop %v2079
      %v2081 = vmul.f32 %v1853, 1.442695
      %v2082 = vpow.pop %v2081
      %v2083 = vmul.f32 %v1854, 1.442695
      %v2084 = vpow.pop %v2083
      %v2085 = vmul.f32 %v1855, 1.442695
      %v2086 = vpow.pop %v2085
      %v2087 = vmul.f32 %v1856, 1.442695
      %v2088 = vpow.pop %v2087
      %v2089 = vmul.f32 %v1857, 1.442695
      %v2090 = vpow.pop %v2089
      %v2091 = vmul.f32 %v1858, 1.442695
      %v2092 = vpow.pop %v2091
      %v2093 = vmul.f32 %v1859, 1.442695
      %v2094 = vpow.pop %v2093
      %v2095 = vmul.f32 %v1860, 1.442695
      %v2096 = vpow.pop %v2095
      %v2097 = vmul.f32 %v1861, 1.442695
      %v2098 = vpow.pop %v2097
      %v2099 = vmul.f32 %v1862, 1.442695
      %v2100 = vpow.pop %v2099
      %v2101 = vmul.f32 %v1863, 1.442695
      %v2102 = vpow.pop %v2101
      %v2103 = vmul.f32 %v1864, 1.442695
      %v2104 = vpow.pop %v2103
      %v2105 = vmul.f32 %v1865, 1.442695
      %v2106 = vpow.pop %v2105
      %v2107 = vmul.f32 %v1866, 1.442695
      %v2108 = vpow.pop %v2107
      %v2109 = vmul.f32 %v1867, 1.442695
      %v2110 = vpow.pop %v2109
      %v2111 = vmul.f32 %v1868, 1.442695
      %v2112 = vpow.pop %v2111
      %v2113 = vmul.f32 %v1869, 1.442695
      %v2114 = vpow.pop %v2113
      %v2115 = vmul.f32 %v1870, 1.442695
      %v2116 = vpow.pop %v2115
      %v2117 = vmul.f32 %v1871, 1.442695
      %v2118 = vpow.pop %v2117
      %v2119 = vmul.f32 %v1872, 1.442695
      %v2120 = vpow.pop %v2119
      %v2121 = vmul.f32 %v1873, 1.442695
      %v2122 = vpow.pop %v2121
      %v2123 = vmul.f32 %v1874, 1.442695
      %v2124 = vpow.pop %v2123
      %v2125 = vmul.f32 %v1875, 1.442695
      %v2126 = vpow.pop %v2125
      %v2127 = vmul.f32 %v1876, 1.442695
      %v2128 = vpow.pop %v2127
      %v2129 = vmul.f32 %v1877, 1.442695
      %v2130 = vpow.pop %v2129
      %v2131 = vmul.f32 %v1878, 1.442695
      %v2132 = vpow.pop %v2131
      %v2133 = vmul.f32 %v1879, 1.442695
      %v2134 = vpow.pop %v2133
      %v2135 = vmul.f32 %v1880, 1.442695
      %v2136 = vpow.pop %v2135
      %v2137 = vmul.f32 %v1881, 1.442695
      %v2138 = vpow.pop %v2137
      %v2139 = vmul.f32 %v1882, 1.442695
      %v2140 = vpow.pop %v2139
      %v2141 = vmul.f32 %v1883, 1.442695
      %v2142 = vpow.pop %v2141
      %v2143 = vmul.f32 %v1884, 1.442695
      %v2144 = vpow.pop %v2143
      %v2145 = vmul.f32 %v1885, 1.442695
      %v2146 = vpow.pop %v2145
      %v2147 = vmul.f32 %v1886, 1.442695
      %v2148 = vpow.pop %v2147
      %v2149 = vmul.f32 %v1887, 1.442695
      %v2150 = vpow.pop %v2149
      %v2151 = vmul.f32 %v1888, 1.442695
      %v2152 = vpow.pop %v2151
      %v2153 = vmul.f32 %v1889, 1.442695
      %v2154 = vpow.pop %v2153
      %v2155 = vmul.f32 %v1890, 1.442695
      %v2156 = vpow.pop %v2155
      %v2157 = vmul.f32 %v1891, 1.442695
      %v2158 = vpow.pop %v2157
      %v2159 = vmul.f32 %v1892, 1.442695
      %v2160 = vpow.pop %v2159
      %v2161 = vmul.f32 %v1893, 1.442695
      %v2162 = vpow.pop %v2161
      %v2163 = vmul.f32 %v1894, 1.442695
      %v2164 = vpow.pop %v2163
      %v2165 = vmul.f32 %v1895, 1.442695
      %v2166 = vpow.pop %v2165
      %v2167 = vmul.f32 %v1896, 1.442695
      %v2168 = vpow.pop %v2167
      %v2169 = vmul.f32 %v1897, 1.442695
      %v2170 = vpow.pop %v2169
      %v2171 = vmul.f32 %v1898, 1.442695
      %v2172 = vpow.pop %v2171
      %v2173 = vmul.f32 %v1899, 1.442695
      %v2174 = vpow.pop %v2173
      %v2175 = vmul.f32 %v1900, 1.442695
      %v2176 = vpow.pop %v2175
      %v2177 = vmul.f32 %v1901, 1.442695
      %v2178 = vpow.pop %v2177
      %v2179 = vmul.f32 %v1902, 1.442695
      %v2180 = vpow.pop %v2179
      %v2181 = vmul.f32 %v1903, 1.442695
      %v2182 = vpow.pop %v2181
      %v2183 = vmul.f32 %v1904, 1.442695
      %v2184 = vpow.pop %v2183
      %v2185 = vmul.f32 %v1905, 1.442695
      %v2186 = vpow.pop %v2185
      %v2187 = vmul.f32 %v1906, 1.442695
      %v2188 = vpow.pop %v2187
      %v2189 = vmul.f32 %v1907, 1.442695
      %v2190 = vpow.pop %v2189
      %v2191 = vmul.f32 %v1908, 1.442695
      %v2192 = vpow.pop %v2191
      %v2193 = vmul.f32 %v1909, 1.442695
      %v2194 = vpow.pop %v2193
      %v2195 = vmul.f32 %v1910, 1.442695
      %v2196 = vpow.pop %v2195
      %v2197 = vmul.f32 %v1911, 1.442695
      %v2198 = vpow.pop %v2197
      %v2199 = vmul.f32 %v1912, 1.442695
      %v2200 = vpow.pop %v2199
      %v2201 = vadd.f32 %v1914, 1.0
      %v2202 = vadd.f32 %v1916, 1.0
      %v2203 = vadd.f32 %v1918, 1.0
      %v2204 = vadd.f32 %v1920, 1.0
      %v2205 = vadd.f32 %v1922, 1.0
      %v2206 = vadd.f32 %v1924, 1.0
      %v2207 = vadd.f32 %v1926, 1.0
      %v2208 = vadd.f32 %v1928, 1.0
      %v2209 = vadd.f32 %v1930, 1.0
      %v2210 = vadd.f32 %v1932, 1.0
      %v2211 = vadd.f32 %v1934, 1.0
      %v2212 = vadd.f32 %v1936, 1.0
      %v2213 = vadd.f32 %v1938, 1.0
      %v2214 = vadd.f32 %v1940, 1.0
      %v2215 = vadd.f32 %v1942, 1.0
      %v2216 = vadd.f32 %v1944, 1.0
      %v2217 = vadd.f32 %v1946, 1.0
      %v2218 = vadd.f32 %v1948, 1.0
      %v2219 = vadd.f32 %v1950, 1.0
      %v2220 = vadd.f32 %v1952, 1.0
      %v2221 = vadd.f32 %v1954, 1.0
      %v2222 = vadd.f32 %v1956, 1.0
      %v2223 = vadd.f32 %v1958, 1.0
      %v2224 = vadd.f32 %v1960, 1.0
      %v2225 = vadd.f32 %v1962, 1.0
      %v2226 = vadd.f32 %v1964, 1.0
      %v2227 = vadd.f32 %v1966, 1.0
      %v2228 = vadd.f32 %v1968, 1.0
      %v2229 = vadd.f32 %v1970, 1.0
      %v2230 = vadd.f32 %v1972, 1.0
      %v2231 = vadd.f32 %v1974, 1.0
      %v2232 = vadd.f32 %v1976, 1.0
      %v2233 = vadd.f32 %v1978, 1.0
      %v2234 = vadd.f32 %v1980, 1.0
      %v2235 = vadd.f32 %v1982, 1.0
      %v2236 = vadd.f32 %v1984, 1.0
      %v2237 = vadd.f32 %v1986, 1.0
      %v2238 = vadd.f32 %v1988, 1.0
      %v2239 = vadd.f32 %v1990, 1.0
      %v2240 = vadd.f32 %v1992, 1.0
      %v2241 = vadd.f32 %v1994, 1.0
      %v2242 = vadd.f32 %v1996, 1.0
      %v2243 = vadd.f32 %v1998, 1.0
      %v2244 = vadd.f32 %v2000, 1.0
      %v2245 = vadd.f32 %v2002, 1.0
      %v2246 = vadd.f32 %v2004, 1.0
      %v2247 = vadd.f32 %v2006, 1.0
      %v2248 = vadd.f32 %v2008, 1.0
      %v2249 = vadd.f32 %v2010, 1.0
      %v2250 = vadd.f32 %v2012, 1.0
      %v2251 = vadd.f32 %v2014, 1.0
      %v2252 = vadd.f32 %v2016, 1.0
      %v2253 = vadd.f32 %v2018, 1.0
      %v2254 = vadd.f32 %v2020, 1.0
      %v2255 = vadd.f32 %v2022, 1.0
      %v2256 = vadd.f32 %v2024, 1.0
      %v2257 = vadd.f32 %v2026, 1.0
      %v2258 = vadd.f32 %v2028, 1.0
      %v2259 = vadd.f32 %v2030, 1.0
      %v2260 = vadd.f32 %v2032, 1.0
      %v2261 = vadd.f32 %v2034, 1.0
      %v2262 = vadd.f32 %v2036, 1.0
      %v2263 = vadd.f32 %v2038, 1.0
      %v2264 = vadd.f32 %v2040, 1.0
      %v2265 = vadd.f32 %v2042, 1.0
      %v2266 = vadd.f32 %v2044, 1.0
      %v2267 = vadd.f32 %v2046, 1.0
      %v2268 = vadd.f32 %v2048, 1.0
      %v2269 = vadd.f32 %v2050, 1.0
      %v2270 = vadd.f32 %v2052, 1.0
      %v2271 = vadd.f32 %v2054, 1.0
      %v2272 = vadd.f32 %v2056, 1.0
      %v2273 = vadd.f32 %v2058, 1.0
      %v2274 = vadd.f32 %v2060, 1.0
      %v2275 = vadd.f32 %v2062, 1.0
      %v2276 = vadd.f32 %v2064, 1.0
      %v2277 = vadd.f32 %v2066, 1.0
      %v2278 = vadd.f32 %v2068, 1.0
      %v2279 = vadd.f32 %v2070, 1.0
      %v2280 = vadd.f32 %v2072, 1.0
      %v2281 = vadd.f32 %v2074, 1.0
      %v2282 = vadd.f32 %v2076, 1.0
      %v2283 = vadd.f32 %v2078, 1.0
      %v2284 = vadd.f32 %v2080, 1.0
      %v2285 = vadd.f32 %v2082, 1.0
      %v2286 = vadd.f32 %v2084, 1.0
      %v2287 = vadd.f32 %v2086, 1.0
      %v2288 = vadd.f32 %v2088, 1.0
      %v2289 = vadd.f32 %v2090, 1.0
      %v2290 = vadd.f32 %v2092, 1.0
      %v2291 = vadd.f32 %v2094, 1.0
      %v2292 = vadd.f32 %v2096, 1.0
      %v2293 = vadd.f32 %v2098, 1.0
      %v2294 = vadd.f32 %v2100, 1.0
      %v2295 = vadd.f32 %v2102, 1.0
      %v2296 = vadd.f32 %v2104, 1.0
      %v2297 = vadd.f32 %v2106, 1.0
      %v2298 = vadd.f32 %v2108, 1.0
      %v2299 = vadd.f32 %v2110, 1.0
      %v2300 = vadd.f32 %v2112, 1.0
      %v2301 = vadd.f32 %v2114, 1.0
      %v2302 = vadd.f32 %v2116, 1.0
      %v2303 = vadd.f32 %v2118, 1.0
      %v2304 = vadd.f32 %v2120, 1.0
      %v2305 = vadd.f32 %v2122, 1.0
      %v2306 = vadd.f32 %v2124, 1.0
      %v2307 = vadd.f32 %v2126, 1.0
      %v2308 = vadd.f32 %v2128, 1.0
      %v2309 = vadd.f32 %v2130, 1.0
      %v2310 = vadd.f32 %v2132, 1.0
      %v2311 = vadd.f32 %v2134, 1.0
      %v2312 = vadd.f32 %v2136, 1.0
      %v2313 = vadd.f32 %v2138, 1.0
      %v2314 = vadd.f32 %v2140, 1.0
      %v2315 = vadd.f32 %v2142, 1.0
      %v2316 = vadd.f32 %v2144, 1.0
      %v2317 = vadd.f32 %v2146, 1.0
      %v2318 = vadd.f32 %v2148, 1.0
      %v2319 = vadd.f32 %v2150, 1.0
      %v2320 = vadd.f32 %v2152, 1.0
      %v2321 = vadd.f32 %v2154, 1.0
      %v2322 = vadd.f32 %v2156, 1.0
      %v2323 = vadd.f32 %v2158, 1.0
      %v2324 = vadd.f32 %v2160, 1.0
      %v2325 = vadd.f32 %v2162, 1.0
      %v2326 = vadd.f32 %v2164, 1.0
      %v2327 = vadd.f32 %v2166, 1.0
      %v2328 = vadd.f32 %v2168, 1.0
      %v2329 = vadd.f32 %v2170, 1.0
      %v2330 = vadd.f32 %v2172, 1.0
      %v2331 = vadd.f32 %v2174, 1.0
      %v2332 = vadd.f32 %v2176, 1.0
      %v2333 = vadd.f32 %v2178, 1.0
      %v2334 = vadd.f32 %v2180, 1.0
      %v2335 = vadd.f32 %v2182, 1.0
      %v2336 = vadd.f32 %v2184, 1.0
      %v2337 = vadd.f32 %v2186, 1.0
      %v2338 = vadd.f32 %v2188, 1.0
      %v2339 = vadd.f32 %v2190, 1.0
      %v2340 = vadd.f32 %v2192, 1.0
      %v2341 = vadd.f32 %v2194, 1.0
      %v2342 = vadd.f32 %v2196, 1.0
      %v2343 = vadd.f32 %v2198, 1.0
      %v2344 = vadd.f32 %v2200, 1.0
      %v2345 = vrcp.pop %v2201
      %v2346 = vmul.f32 1.0, %v2345
      %v2347 = vrcp.pop %v2202
      %v2348 = vmul.f32 1.0, %v2347
      %v2349 = vrcp.pop %v2203
      %v2350 = vmul.f32 1.0, %v2349
      %v2351 = vrcp.pop %v2204
      %v2352 = vmul.f32 1.0, %v2351
      %v2353 = vrcp.pop %v2205
      %v2354 = vmul.f32 1.0, %v2353
      %v2355 = vrcp.pop %v2206
      %v2356 = vmul.f32 1.0, %v2355
      %v2357 = vrcp.pop %v2207
      %v2358 = vmul.f32 1.0, %v2357
      %v2359 = vrcp.pop %v2208
      %v2360 = vmul.f32 1.0, %v2359
      %v2361 = vrcp.pop %v2209
      %v2362 = vmul.f32 1.0, %v2361
      %v2363 = vrcp.pop %v2210
      %v2364 = vmul.f32 1.0, %v2363
      %v2365 = vrcp.pop %v2211
      %v2366 = vmul.f32 1.0, %v2365
      %v2367 = vrcp.pop %v2212
      %v2368 = vmul.f32 1.0, %v2367
      %v2369 = vrcp.pop %v2213
      %v2370 = vmul.f32 1.0, %v2369
      %v2371 = vrcp.pop %v2214
      %v2372 = vmul.f32 1.0, %v2371
      %v2373 = vrcp.pop %v2215
      %v2374 = vmul.f32 1.0, %v2373
      %v2375 = vrcp.pop %v2216
      %v2376 = vmul.f32 1.0, %v2375
      %v2377 = vrcp.pop %v2217
      %v2378 = vmul.f32 1.0, %v2377
      %v2379 = vrcp.pop %v2218
      %v2380 = vmul.f32 1.0, %v2379
      %v2381 = vrcp.pop %v2219
      %v2382 = vmul.f32 1.0, %v2381
      %v2383 = vrcp.pop %v2220
      %v2384 = vmul.f32 1.0, %v2383
      %v2385 = vrcp.pop %v2221
      %v2386 = vmul.f32 1.0, %v2385
      %v2387 = vrcp.pop %v2222
      %v2388 = vmul.f32 1.0, %v2387
      %v2389 = vrcp.pop %v2223
      %v2390 = vmul.f32 1.0, %v2389
      %v2391 = vrcp.pop %v2224
      %v2392 = vmul.f32 1.0, %v2391
      %v2393 = vrcp.pop %v2225
      %v2394 = vmul.f32 1.0, %v2393
      %v2395 = vrcp.pop %v2226
      %v2396 = vmul.f32 1.0, %v2395
      %v2397 = vrcp.pop %v2227
      %v2398 = vmul.f32 1.0, %v2397
      %v2399 = vrcp.pop %v2228
      %v2400 = vmul.f32 1.0, %v2399
      %v2401 = vrcp.pop %v2229
      %v2402 = vmul.f32 1.0, %v2401
      %v2403 = vrcp.pop %v2230
      %v2404 = vmul.f32 1.0, %v2403
      %v2405 = vrcp.pop %v2231
      %v2406 = vmul.f32 1.0, %v2405
      %v2407 = vrcp.pop %v2232
      %v2408 = vmul.f32 1.0, %v2407
      %v2409 = vrcp.pop %v2233
      %v2410 = vmul.f32 1.0, %v2409
      %v2411 = vrcp.pop %v2234
      %v2412 = vmul.f32 1.0, %v2411
      %v2413 = vrcp.pop %v2235
      %v2414 = vmul.f32 1.0, %v2413
      %v2415 = vrcp.pop %v2236
      %v2416 = vmul.f32 1.0, %v2415
      %v2417 = vrcp.pop %v2237
      %v2418 = vmul.f32 1.0, %v2417
      %v2419 = vrcp.pop %v2238
      %v2420 = vmul.f32 1.0, %v2419
      %v2421 = vrcp.pop %v2239
      %v2422 = vmul.f32 1.0, %v2421
      %v2423 = vrcp.pop %v2240
      %v2424 = vmul.f32 1.0, %v2423
      %v2425 = vrcp.pop %v2241
      %v2426 = vmul.f32 1.0, %v2425
      %v2427 = vrcp.pop %v2242
      %v2428 = vmul.f32 1.0, %v2427
      %v2429 = vrcp.pop %v2243
      %v2430 = vmul.f32 1.0, %v2429
      %v2431 = vrcp.pop %v2244
      %v2432 = vmul.f32 1.0, %v2431
      %v2433 = vrcp.pop %v2245
      %v2434 = vmul.f32 1.0, %v2433
      %v2435 = vrcp.pop %v2246
      %v2436 = vmul.f32 1.0, %v2435
      %v2437 = vrcp.pop %v2247
      %v2438 = vmul.f32 1.0, %v2437
      %v2439 = vrcp.pop %v2248
      %v2440 = vmul.f32 1.0, %v2439
      %v2441 = vrcp.pop %v2249
      %v2442 = vmul.f32 1.0, %v2441
      %v2443 = vrcp.pop %v2250
      %v2444 = vmul.f32 1.0, %v2443
      %v2445 = vrcp.pop %v2251
      %v2446 = vmul.f32 1.0, %v2445
      %v2447 = vrcp.pop %v2252
      %v2448 = vmul.f32 1.0, %v2447
      %v2449 = vrcp.pop %v2253
      %v2450 = vmul.f32 1.0, %v2449
      %v2451 = vrcp.pop %v2254
      %v2452 = vmul.f32 1.0, %v2451
      %v2453 = vrcp.pop %v2255
      %v2454 = vmul.f32 1.0, %v2453
      %v2455 = vrcp.pop %v2256
      %v2456 = vmul.f32 1.0, %v2455
      %v2457 = vrcp.pop %v2257
      %v2458 = vmul.f32 1.0, %v2457
      %v2459 = vrcp.pop %v2258
      %v2460 = vmul.f32 1.0, %v2459
      %v2461 = vrcp.pop %v2259
      %v2462 = vmul.f32 1.0, %v2461
      %v2463 = vrcp.pop %v2260
      %v2464 = vmul.f32 1.0, %v2463
      %v2465 = vrcp.pop %v2261
      %v2466 = vmul.f32 1.0, %v2465
      %v2467 = vrcp.pop %v2262
      %v2468 = vmul.f32 1.0, %v2467
      %v2469 = vrcp.pop %v2263
      %v2470 = vmul.f32 1.0, %v2469
      %v2471 = vrcp.pop %v2264
      %v2472 = vmul.f32 1.0, %v2471
      %v2473 = vrcp.pop %v2265
      %v2474 = vmul.f32 1.0, %v2473
      %v2475 = vrcp.pop %v2266
      %v2476 = vmul.f32 1.0, %v2475
      %v2477 = vrcp.pop %v2267
      %v2478 = vmul.f32 1.0, %v2477
      %v2479 = vrcp.pop %v2268
      %v2480 = vmul.f32 1.0, %v2479
      %v2481 = vrcp.pop %v2269
      %v2482 = vmul.f32 1.0, %v2481
      %v2483 = vrcp.pop %v2270
      %v2484 = vmul.f32 1.0, %v2483
      %v2485 = vrcp.pop %v2271
      %v2486 = vmul.f32 1.0, %v2485
      %v2487 = vrcp.pop %v2272
      %v2488 = vmul.f32 1.0, %v2487
      %v2489 = vrcp.pop %v2273
      %v2490 = vmul.f32 1.0, %v2489
      %v2491 = vrcp.pop %v2274
      %v2492 = vmul.f32 1.0, %v2491
      %v2493 = vrcp.pop %v2275
      %v2494 = vmul.f32 1.0, %v2493
      %v2495 = vrcp.pop %v2276
      %v2496 = vmul.f32 1.0, %v2495
      %v2497 = vrcp.pop %v2277
      %v2498 = vmul.f32 1.0, %v2497
      %v2499 = vrcp.pop %v2278
      %v2500 = vmul.f32 1.0, %v2499
      %v2501 = vrcp.pop %v2279
      %v2502 = vmul.f32 1.0, %v2501
      %v2503 = vrcp.pop %v2280
      %v2504 = vmul.f32 1.0, %v2503
      %v2505 = vrcp.pop %v2281
      %v2506 = vmul.f32 1.0, %v2505
      %v2507 = vrcp.pop %v2282
      %v2508 = vmul.f32 1.0, %v2507
      %v2509 = vrcp.pop %v2283
      %v2510 = vmul.f32 1.0, %v2509
      %v2511 = vrcp.pop %v2284
      %v2512 = vmul.f32 1.0, %v2511
      %v2513 = vrcp.pop %v2285
      %v2514 = vmul.f32 1.0, %v2513
      %v2515 = vrcp.pop %v2286
      %v2516 = vmul.f32 1.0, %v2515
      %v2517 = vrcp.pop %v2287
      %v2518 = vmul.f32 1.0, %v2517
      %v2519 = vrcp.pop %v2288
      %v2520 = vmul.f32 1.0, %v2519
      %v2521 = vrcp.pop %v2289
      %v2522 = vmul.f32 1.0, %v2521
      %v2523 = vrcp.pop %v2290
      %v2524 = vmul.f32 1.0, %v2523
      %v2525 = vrcp.pop %v2291
      %v2526 = vmul.f32 1.0, %v2525
      %v2527 = vrcp.pop %v2292
      %v2528 = vmul.f32 1.0, %v2527
      %v2529 = vrcp.pop %v2293
      %v2530 = vmul.f32 1.0, %v2529
      %v2531 = vrcp.pop %v2294
      %v2532 = vmul.f32 1.0, %v2531
      %v2533 = vrcp.pop %v2295
      %v2534 = vmul.f32 1.0, %v2533
      %v2535 = vrcp.pop %v2296
      %v2536 = vmul.f32 1.0, %v2535
      %v2537 = vrcp.pop %v2297
      %v2538 = vmul.f32 1.0, %v2537
      %v2539 = vrcp.pop %v2298
      %v2540 = vmul.f32 1.0, %v2539
      %v2541 = vrcp.pop %v2299
      %v2542 = vmul.f32 1.0, %v2541
      %v2543 = vrcp.pop %v2300
      %v2544 = vmul.f32 1.0, %v2543
      %v2545 = vrcp.pop %v2301
      %v2546 = vmul.f32 1.0, %v2545
      %v2547 = vrcp.pop %v2302
      %v2548 = vmul.f32 1.0, %v2547
      %v2549 = vrcp.pop %v2303
      %v2550 = vmul.f32 1.0, %v2549
      %v2551 = vrcp.pop %v2304
      %v2552 = vmul.f32 1.0, %v2551
      %v2553 = vrcp.pop %v2305
      %v2554 = vmul.f32 1.0, %v2553
      %v2555 = vrcp.pop %v2306
      %v2556 = vmul.f32 1.0, %v2555
      %v2557 = vrcp.pop %v2307
      %v2558 = vmul.f32 1.0, %v2557
      %v2559 = vrcp.pop %v2308
      %v2560 = vmul.f32 1.0, %v2559
      %v2561 = vrcp.pop %v2309
      %v2562 = vmul.f32 1.0, %v2561
      %v2563 = vrcp.pop %v2310
      %v2564 = vmul.f32 1.0, %v2563
      %v2565 = vrcp.pop %v2311
      %v2566 = vmul.f32 1.0, %v2565
      %v2567 = vrcp.pop %v2312
      %v2568 = vmul.f32 1.0, %v2567
      %v2569 = vrcp.pop %v2313
      %v2570 = vmul.f32 1.0, %v2569
      %v2571 = vrcp.pop %v2314
      %v2572 = vmul.f32 1.0, %v2571
      %v2573 = vrcp.pop %v2315
      %v2574 = vmul.f32 1.0, %v2573
      %v2575 = vrcp.pop %v2316
      %v2576 = vmul.f32 1.0, %v2575
      %v2577 = vrcp.pop %v2317
      %v2578 = vmul.f32 1.0, %v2577
      %v2579 = vrcp.pop %v2318
      %v2580 = vmul.f32 1.0, %v2579
      %v2581 = vrcp.pop %v2319
      %v2582 = vmul.f32 1.0, %v2581
      %v2583 = vrcp.pop %v2320
      %v2584 = vmul.f32 1.0, %v2583
      %v2585 = vrcp.pop %v2321
      %v2586 = vmul.f32 1.0, %v2585
      %v2587 = vrcp.pop %v2322
      %v2588 = vmul.f32 1.0, %v2587
      %v2589 = vrcp.pop %v2323
      %v2590 = vmul.f32 1.0, %v2589
      %v2591 = vrcp.pop %v2324
      %v2592 = vmul.f32 1.0, %v2591
      %v2593 = vrcp.pop %v2325
      %v2594 = vmul.f32 1.0, %v2593
      %v2595 = vrcp.pop %v2326
      %v2596 = vmul.f32 1.0, %v2595
      %v2597 = vrcp.pop %v2327
      %v2598 = vmul.f32 1.0, %v2597
      %v2599 = vrcp.pop %v2328
      %v2600 = vmul.f32 1.0, %v2599
      %v2601 = vrcp.pop %v2329
      %v2602 = vmul.f32 1.0, %v2601
      %v2603 = vrcp.pop %v2330
      %v2604 = vmul.f32 1.0, %v2603
      %v2605 = vrcp.pop %v2331
      %v2606 = vmul.f32 1.0, %v2605
      %v2607 = vrcp.pop %v2332
      %v2608 = vmul.f32 1.0, %v2607
      %v2609 = vrcp.pop %v2333
      %v2610 = vmul.f32 1.0, %v2609
      %v2611 = vrcp.pop %v2334
      %v2612 = vmul.f32 1.0, %v2611
      %v2613 = vrcp.pop %v2335
      %v2614 = vmul.f32 1.0, %v2613
      %v2615 = vrcp.pop %v2336
      %v2616 = vmul.f32 1.0, %v2615
      %v2617 = vrcp.pop %v2337
      %v2618 = vmul.f32 1.0, %v2617
      %v2619 = vrcp.pop %v2338
      %v2620 = vmul.f32 1.0, %v2619
      %v2621 = vrcp.pop %v2339
      %v2622 = vmul.f32 1.0, %v2621
      %v2623 = vrcp.pop %v2340
      %v2624 = vmul.f32 1.0, %v2623
      %v2625 = vrcp.pop %v2341
      %v2626 = vmul.f32 1.0, %v2625
      %v2627 = vrcp.pop %v2342
      %v2628 = vmul.f32 1.0, %v2627
      %v2629 = vrcp.pop %v2343
      %v2630 = vmul.f32 1.0, %v2629
      %v2631 = vrcp.pop %v2344
      %v2632 = vmul.f32 1.0, %v2631
      %v2633 = vld [vmem:[%s269] sm:$0xff]
      %v2634 = vld [vmem:[%s269 + $0x8] sm:$0xff]
      %v2635 = vld [vmem:[%s269 + $0x10] sm:$0xff]
      %v2636 = vld [vmem:[%s269 + $0x18] sm:$0xff]
      %v2637 = vld [vmem:[%s269 + $0x20] sm:$0xff]
      %v2638 = vld [vmem:[%s269 + $0x28] sm:$0xff]
      %v2639 = vld [vmem:[%s269 + $0x30] sm:$0xff]
      %v2640 = vld [vmem:[%s269 + $0x38] sm:$0xff]
      %v2641 = vld [vmem:[%s269 + $0x40] sm:$0xff]
      %v2642 = vld [vmem:[%s269 + $0x48] sm:$0xff]
      %v2643 = vld [vmem:[%s269 + $0x50] sm:$0xff]
      %v2644 = vld [vmem:[%s269 + $0x58] sm:$0xff]
      %v2645 = vld [vmem:[%s269 + $0x60] sm:$0xff]
      %v2646 = vld [vmem:[%s269 + $0x68] sm:$0xff]
      %v2647 = vld [vmem:[%s269 + $0x70] sm:$0xff]
      %v2648 = vld [vmem:[%s269 + $0x78] sm:$0xff]
      %v2649 = vld [vmem:[%s269 + $0x80] sm:$0xff]
      %v2650 = vld [vmem:[%s269 + $0x88] sm:$0xff]
      %v2651 = vld [vmem:[%s269 + $0x90] sm:$0xff]
      %v2652 = vld [vmem:[%s269 + $0x98] sm:$0xff]
      %v2653 = vld [vmem:[%s269 + $0xa0] sm:$0xff]
      %v2654 = vld [vmem:[%s269 + $0xa8] sm:$0xff]
      %v2655 = vld [vmem:[%s269 + $0xb0] sm:$0xff]
      %v2656 = vld [vmem:[%s269 + $0xb8] sm:$0xff]
      %v2657 = vld [vmem:[%s269 + $0xc0] sm:$0xff]
      %v2658 = vld [vmem:[%s269 + $0xc8] sm:$0xff]
      %v2659 = vld [vmem:[%s269 + $0xd0] sm:$0xff]
      %v2660 = vld [vmem:[%s269 + $0xd8] sm:$0xff]
      %v2661 = vld [vmem:[%s269 + $0xe0] sm:$0xff]
      %v2662 = vld [vmem:[%s269 + $0xe8] sm:$0xff]
      %v2663 = vld [vmem:[%s269 + $0xf0] sm:$0xff]
      %v2664 = vld [vmem:[%s269 + $0xf8] sm:$0xff]
      %v2665 = vld [vmem:[%s269 + $0x100] sm:$0xff]
      %v2666 = vld [vmem:[%s269 + $0x108] sm:$0xff]
      %v2667 = vld [vmem:[%s269 + $0x110] sm:$0xff]
      %v2668 = vld [vmem:[%s269 + $0x118] sm:$0xff]
      %v2669 = vld [vmem:[%s269 + $0x120] sm:$0xff]
      %v2670 = vld [vmem:[%s269 + $0x128] sm:$0xff]
      %v2671 = vld [vmem:[%s269 + $0x130] sm:$0xff]
      %v2672 = vld [vmem:[%s269 + $0x138] sm:$0xff]
      %v2673 = vld [vmem:[%s269 + $0x140] sm:$0xff]
      %v2674 = vld [vmem:[%s269 + $0x148] sm:$0xff]
      %v2675 = vld [vmem:[%s269 + $0x150] sm:$0xff]
      %v2676 = vld [vmem:[%s269 + $0x158] sm:$0xff]
      %v2677 = vld [vmem:[%s269 + $0x160] sm:$0xff]
      %v2678 = vld [vmem:[%s269 + $0x168] sm:$0xff]
      %v2679 = vld [vmem:[%s269 + $0x170] sm:$0xff]
      %v2680 = vld [vmem:[%s269 + $0x178] sm:$0xff]
      %v2681 = vld [vmem:[%s269 + $0x180] sm:$0xff]
      %v2682 = vld [vmem:[%s269 + $0x188] sm:$0xff]
      %v2683 = vld [vmem:[%s269 + $0x190] sm:$0xff]
      %v2684 = vld [vmem:[%s269 + $0x198] sm:$0xff]
      %v2685 = vld [vmem:[%s269 + $0x1a0] sm:$0xff]
      %v2686 = vld [vmem:[%s269 + $0x1a8] sm:$0xff]
      %v2687 = vld [vmem:[%s269 + $0x1b0] sm:$0xff]
      %v2688 = vld [vmem:[%s269 + $0x1b8] sm:$0xff]
      %v2689 = vld [vmem:[%s269 + $0x1c0] sm:$0xff]
      %v2690 = vld [vmem:[%s269 + $0x1c8] sm:$0xff]
      %v2691 = vld [vmem:[%s269 + $0x1d0] sm:$0xff]
      %v2692 = vld [vmem:[%s269 + $0x1d8] sm:$0xff]
      %v2693 = vld [vmem:[%s269 + $0x1e0] sm:$0xff]
      %v2694 = vld [vmem:[%s269 + $0x1e8] sm:$0xff]
      %v2695 = vld [vmem:[%s269 + $0x1f0] sm:$0xff]
      %v2696 = vld [vmem:[%s269 + $0x1f8] sm:$0xff]
      %v2697 = vld [vmem:[%s269 + $0x200] sm:$0xff]
      %v2698 = vld [vmem:[%s269 + $0x208] sm:$0xff]
      %v2699 = vld [vmem:[%s269 + $0x210] sm:$0xff]
      %v2700 = vld [vmem:[%s269 + $0x218] sm:$0xff]
      %v2701 = vld [vmem:[%s269 + $0x220] sm:$0xff]
      %v2702 = vld [vmem:[%s269 + $0x228] sm:$0xff]
      %v2703 = vld [vmem:[%s269 + $0x230] sm:$0xff]
      %v2704 = vld [vmem:[%s269 + $0x238] sm:$0xff]
      %v2705 = vld [vmem:[%s269 + $0x240] sm:$0xff]
      %v2706 = vld [vmem:[%s269 + $0x248] sm:$0xff]
      %v2707 = vld [vmem:[%s269 + $0x250] sm:$0xff]
      %v2708 = vld [vmem:[%s269 + $0x258] sm:$0xff]
      %v2709 = vld [vmem:[%s269 + $0x260] sm:$0xff]
      %v2710 = vld [vmem:[%s269 + $0x268] sm:$0xff]
      %v2711 = vld [vmem:[%s269 + $0x270] sm:$0xff]
      %v2712 = vld [vmem:[%s269 + $0x278] sm:$0xff]
      %v2713 = vld [vmem:[%s269 + $0x280] sm:$0xff]
      %v2714 = vld [vmem:[%s269 + $0x288] sm:$0xff]
      %v2715 = vld [vmem:[%s269 + $0x290] sm:$0xff]
      %v2716 = vld [vmem:[%s269 + $0x298] sm:$0xff]
      %v2717 = vld [vmem:[%s269 + $0x2a0] sm:$0xff]
      %v2718 = vld [vmem:[%s269 + $0x2a8] sm:$0xff]
      %v2719 = vld [vmem:[%s269 + $0x2b0] sm:$0xff]
      %v2720 = vld [vmem:[%s269 + $0x2b8] sm:$0xff]
      %v2721 = vld [vmem:[%s269 + $0x2c0] sm:$0xff]
      %v2722 = vld [vmem:[%s269 + $0x2c8] sm:$0xff]
      %v2723 = vld [vmem:[%s269 + $0x2d0] sm:$0xff]
      %v2724 = vld [vmem:[%s269 + $0x2d8] sm:$0xff]
      %v2725 = vld [vmem:[%s269 + $0x2e0] sm:$0xff]
      %v2726 = vld [vmem:[%s269 + $0x2e8] sm:$0xff]
      %v2727 = vld [vmem:[%s269 + $0x2f0] sm:$0xff]
      %v2728 = vld [vmem:[%s269 + $0x2f8] sm:$0xff]
      %v2729 = vld [vmem:[%s269 + $0x300] sm:$0xff]
      %v2730 = vld [vmem:[%s269 + $0x308] sm:$0xff]
      %v2731 = vld [vmem:[%s269 + $0x310] sm:$0xff]
      %v2732 = vld [vmem:[%s269 + $0x318] sm:$0xff]
      %v2733 = vld [vmem:[%s269 + $0x320] sm:$0xff]
      %v2734 = vld [vmem:[%s269 + $0x328] sm:$0xff]
      %v2735 = vld [vmem:[%s269 + $0x330] sm:$0xff]
      %v2736 = vld [vmem:[%s269 + $0x338] sm:$0xff]
      %v2737 = vld [vmem:[%s269 + $0x340] sm:$0xff]
      %v2738 = vld [vmem:[%s269 + $0x348] sm:$0xff]
      %v2739 = vld [vmem:[%s269 + $0x350] sm:$0xff]
      %v2740 = vld [vmem:[%s269 + $0x358] sm:$0xff]
      %v2741 = vld [vmem:[%s269 + $0x360] sm:$0xff]
      %v2742 = vld [vmem:[%s269 + $0x368] sm:$0xff]
      %v2743 = vld [vmem:[%s269 + $0x370] sm:$0xff]
      %v2744 = vld [vmem:[%s269 + $0x378] sm:$0xff]
      %v2745 = vld [vmem:[%s269 + $0x380] sm:$0xff]
      %v2746 = vld [vmem:[%s269 + $0x388] sm:$0xff]
      %v2747 = vld [vmem:[%s269 + $0x390] sm:$0xff]
      %v2748 = vld [vmem:[%s269 + $0x398] sm:$0xff]
      %v2749 = vld [vmem:[%s269 + $0x3a0] sm:$0xff]
      %v2750 = vld [vmem:[%s269 + $0x3a8] sm:$0xff]
      %v2751 = vld [vmem:[%s269 + $0x3b0] sm:$0xff]
      %v2752 = vld [vmem:[%s269 + $0x3b8] sm:$0xff]
      %v2753 = vld [vmem:[%s269 + $0x3c0] sm:$0xff]
      %v2754 = vld [vmem:[%s269 + $0x3c8] sm:$0xff]
      %v2755 = vld [vmem:[%s269 + $0x3d0] sm:$0xff]
      %v2756 = vld [vmem:[%s269 + $0x3d8] sm:$0xff]
      %v2757 = vld [vmem:[%s269 + $0x3e0] sm:$0xff]
      %v2758 = vld [vmem:[%s269 + $0x3e8] sm:$0xff]
      %v2759 = vld [vmem:[%s269 + $0x3f0] sm:$0xff]
      %v2760 = vld [vmem:[%s269 + $0x3f8] sm:$0xff]
      %v2761 = vld [vmem:[%s269 + $0x400] sm:$0xff]
      %v2762 = vld [vmem:[%s269 + $0x408] sm:$0xff]
      %v2763 = vld [vmem:[%s269 + $0x410] sm:$0xff]
      %v2764 = vld [vmem:[%s269 + $0x418] sm:$0xff]
      %v2765 = vld [vmem:[%s269 + $0x420] sm:$0xff]
      %v2766 = vld [vmem:[%s269 + $0x428] sm:$0xff]
      %v2767 = vld [vmem:[%s269 + $0x430] sm:$0xff]
      %v2768 = vld [vmem:[%s269 + $0x438] sm:$0xff]
      %v2769 = vld [vmem:[%s269 + $0x440] sm:$0xff]
      %v2770 = vld [vmem:[%s269 + $0x448] sm:$0xff]
      %v2771 = vld [vmem:[%s269 + $0x450] sm:$0xff]
      %v2772 = vld [vmem:[%s269 + $0x458] sm:$0xff]
      %v2773 = vld [vmem:[%s269 + $0x460] sm:$0xff]
      %v2774 = vld [vmem:[%s269 + $0x468] sm:$0xff]
      %v2775 = vld [vmem:[%s269 + $0x470] sm:$0xff]
      %v2776 = vld [vmem:[%s269 + $0x478] sm:$0xff]
      %2778 = vset.pattern.permute.xlu0 0
      %2779 = vperm.xlu0 %2778, %v2346
      %v2780 = vpop.permute.xlu0 %2779
      %2783 = vset.pattern.permute.xlu0 0
      %2784 = vperm.xlu0 %2783, %v2348
      %v2785 = vpop.permute.xlu0 %2784
      %2788 = vset.pattern.permute.xlu0 0
      %2789 = vperm.xlu0 %2788, %v2350
      %v2790 = vpop.permute.xlu0 %2789
      %2793 = vset.pattern.permute.xlu0 0
      %2794 = vperm.xlu0 %2793, %v2352
      %v2795 = vpop.permute.xlu0 %2794
      %2798 = vset.pattern.permute.xlu0 0
      %2799 = vperm.xlu0 %2798, %v2354
      %v2800 = vpop.permute.xlu0 %2799
      %2803 = vset.pattern.permute.xlu0 0
      %2804 = vperm.xlu0 %2803, %v2356
      %v2805 = vpop.permute.xlu0 %2804
      %2808 = vset.pattern.permute.xlu0 0
      %2809 = vperm.xlu0 %2808, %v2358
      %v2810 = vpop.permute.xlu0 %2809
      %2813 = vset.pattern.permute.xlu0 0
      %2814 = vperm.xlu0 %2813, %v2360
      %v2815 = vpop.permute.xlu0 %2814
      %2818 = vset.pattern.permute.xlu0 0
      %2819 = vperm.xlu0 %2818, %v2362
      %v2820 = vpop.permute.xlu0 %2819
      %2823 = vset.pattern.permute.xlu0 0
      %2824 = vperm.xlu0 %2823, %v2364
      %v2825 = vpop.permute.xlu0 %2824
      %2828 = vset.pattern.permute.xlu0 0
      %2829 = vperm.xlu0 %2828, %v2366
      %v2830 = vpop.permute.xlu0 %2829
      %2833 = vset.pattern.permute.xlu0 0
      %2834 = vperm.xlu0 %2833, %v2368
      %v2835 = vpop.permute.xlu0 %2834
      %2838 = vset.pattern.permute.xlu0 0
      %2839 = vperm.xlu0 %2838, %v2370
      %v2840 = vpop.permute.xlu0 %2839
      %2843 = vset.pattern.permute.xlu0 0
      %2844 = vperm.xlu0 %2843, %v2372
      %v2845 = vpop.permute.xlu0 %2844
      %2848 = vset.pattern.permute.xlu0 0
      %2849 = vperm.xlu0 %2848, %v2374
      %v2850 = vpop.permute.xlu0 %2849
      %2853 = vset.pattern.permute.xlu0 0
      %2854 = vperm.xlu0 %2853, %v2376
      %v2855 = vpop.permute.xlu0 %2854
      %2858 = vset.pattern.permute.xlu0 0
      %2859 = vperm.xlu0 %2858, %v2378
      %v2860 = vpop.permute.xlu0 %2859
      %2863 = vset.pattern.permute.xlu0 0
      %2864 = vperm.xlu0 %2863, %v2380
      %v2865 = vpop.permute.xlu0 %2864
      %2868 = vset.pattern.permute.xlu0 0
      %2869 = vperm.xlu0 %2868, %v2382
      %v2870 = vpop.permute.xlu0 %2869
      %2873 = vset.pattern.permute.xlu0 0
      %2874 = vperm.xlu0 %2873, %v2384
      %v2875 = vpop.permute.xlu0 %2874
      %2878 = vset.pattern.permute.xlu0 0
      %2879 = vperm.xlu0 %2878, %v2386
      %v2880 = vpop.permute.xlu0 %2879
      %2883 = vset.pattern.permute.xlu0 0
      %2884 = vperm.xlu0 %2883, %v2388
      %v2885 = vpop.permute.xlu0 %2884
      %2888 = vset.pattern.permute.xlu0 0
      %2889 = vperm.xlu0 %2888, %v2390
      %v2890 = vpop.permute.xlu0 %2889
      %2893 = vset.pattern.permute.xlu0 0
      %2894 = vperm.xlu0 %2893, %v2392
      %v2895 = vpop.permute.xlu0 %2894
      %2898 = vset.pattern.permute.xlu0 0
      %2899 = vperm.xlu0 %2898, %v2394
      %v2900 = vpop.permute.xlu0 %2899
      %2903 = vset.pattern.permute.xlu0 0
      %2904 = vperm.xlu0 %2903, %v2396
      %v2905 = vpop.permute.xlu0 %2904
      %2908 = vset.pattern.permute.xlu0 0
      %2909 = vperm.xlu0 %2908, %v2398
      %v2910 = vpop.permute.xlu0 %2909
      %2913 = vset.pattern.permute.xlu0 0
      %2914 = vperm.xlu0 %2913, %v2400
      %v2915 = vpop.permute.xlu0 %2914
      %2918 = vset.pattern.permute.xlu0 0
      %2919 = vperm.xlu0 %2918, %v2402
      %v2920 = vpop.permute.xlu0 %2919
      %2923 = vset.pattern.permute.xlu0 0
      %2924 = vperm.xlu0 %2923, %v2404
      %v2925 = vpop.permute.xlu0 %2924
      %2928 = vset.pattern.permute.xlu0 0
      %2929 = vperm.xlu0 %2928, %v2406
      %v2930 = vpop.permute.xlu0 %2929
      %2933 = vset.pattern.permute.xlu0 0
      %2934 = vperm.xlu0 %2933, %v2408
      %v2935 = vpop.permute.xlu0 %2934
      %2938 = vset.pattern.permute.xlu0 0
      %2939 = vperm.xlu0 %2938, %v2410
      %v2940 = vpop.permute.xlu0 %2939
      %2943 = vset.pattern.permute.xlu0 0
      %2944 = vperm.xlu0 %2943, %v2412
      %v2945 = vpop.permute.xlu0 %2944
      %2948 = vset.pattern.permute.xlu0 0
      %2949 = vperm.xlu0 %2948, %v2414
      %v2950 = vpop.permute.xlu0 %2949
      %2953 = vset.pattern.permute.xlu0 0
      %2954 = vperm.xlu0 %2953, %v2416
      %v2955 = vpop.permute.xlu0 %2954
      %2958 = vset.pattern.permute.xlu0 0
      %2959 = vperm.xlu0 %2958, %v2418
      %v2960 = vpop.permute.xlu0 %2959
      %2963 = vset.pattern.permute.xlu0 0
      %2964 = vperm.xlu0 %2963, %v2420
      %v2965 = vpop.permute.xlu0 %2964
      %2968 = vset.pattern.permute.xlu0 0
      %2969 = vperm.xlu0 %2968, %v2422
      %v2970 = vpop.permute.xlu0 %2969
      %2973 = vset.pattern.permute.xlu0 0
      %2974 = vperm.xlu0 %2973, %v2424
      %v2975 = vpop.permute.xlu0 %2974
      %2978 = vset.pattern.permute.xlu0 0
      %2979 = vperm.xlu0 %2978, %v2426
      %v2980 = vpop.permute.xlu0 %2979
      %2983 = vset.pattern.permute.xlu0 0
      %2984 = vperm.xlu0 %2983, %v2428
      %v2985 = vpop.permute.xlu0 %2984
      %2988 = vset.pattern.permute.xlu0 0
      %2989 = vperm.xlu0 %2988, %v2430
      %v2990 = vpop.permute.xlu0 %2989
      %2993 = vset.pattern.permute.xlu0 0
      %2994 = vperm.xlu0 %2993, %v2432
      %v2995 = vpop.permute.xlu0 %2994
      %2998 = vset.pattern.permute.xlu0 0
      %2999 = vperm.xlu0 %2998, %v2434
      %v3000 = vpop.permute.xlu0 %2999
      %3003 = vset.pattern.permute.xlu0 0
      %3004 = vperm.xlu0 %3003, %v2436
      %v3005 = vpop.permute.xlu0 %3004
      %3008 = vset.pattern.permute.xlu0 0
      %3009 = vperm.xlu0 %3008, %v2438
      %v3010 = vpop.permute.xlu0 %3009
      %3013 = vset.pattern.permute.xlu0 0
      %3014 = vperm.xlu0 %3013, %v2440
      %v3015 = vpop.permute.xlu0 %3014
      %3018 = vset.pattern.permute.xlu0 0
      %3019 = vperm.xlu0 %3018, %v2442
      %v3020 = vpop.permute.xlu0 %3019
      %3023 = vset.pattern.permute.xlu0 0
      %3024 = vperm.xlu0 %3023, %v2444
      %v3025 = vpop.permute.xlu0 %3024
      %3028 = vset.pattern.permute.xlu0 0
      %3029 = vperm.xlu0 %3028, %v2446
      %v3030 = vpop.permute.xlu0 %3029
      %3033 = vset.pattern.permute.xlu0 0
      %3034 = vperm.xlu0 %3033, %v2448
      %v3035 = vpop.permute.xlu0 %3034
      %3038 = vset.pattern.permute.xlu0 0
      %3039 = vperm.xlu0 %3038, %v2450
      %v3040 = vpop.permute.xlu0 %3039
      %3043 = vset.pattern.permute.xlu0 0
      %3044 = vperm.xlu0 %3043, %v2452
      %v3045 = vpop.permute.xlu0 %3044
      %3048 = vset.pattern.permute.xlu0 0
      %3049 = vperm.xlu0 %3048, %v2454
      %v3050 = vpop.permute.xlu0 %3049
      %3053 = vset.pattern.permute.xlu0 0
      %3054 = vperm.xlu0 %3053, %v2456
      %v3055 = vpop.permute.xlu0 %3054
      %3058 = vset.pattern.permute.xlu0 0
      %3059 = vperm.xlu0 %3058, %v2458
      %v3060 = vpop.permute.xlu0 %3059
      %3063 = vset.pattern.permute.xlu0 0
      %3064 = vperm.xlu0 %3063, %v2460
      %v3065 = vpop.permute.xlu0 %3064
      %3068 = vset.pattern.permute.xlu0 0
      %3069 = vperm.xlu0 %3068, %v2462
      %v3070 = vpop.permute.xlu0 %3069
      %3073 = vset.pattern.permute.xlu0 0
      %3074 = vperm.xlu0 %3073, %v2464
      %v3075 = vpop.permute.xlu0 %3074
      %3078 = vset.pattern.permute.xlu0 0
      %3079 = vperm.xlu0 %3078, %v2466
      %v3080 = vpop.permute.xlu0 %3079
      %3083 = vset.pattern.permute.xlu0 0
      %3084 = vperm.xlu0 %3083, %v2468
      %v3085 = vpop.permute.xlu0 %3084
      %3088 = vset.pattern.permute.xlu0 0
      %3089 = vperm.xlu0 %3088, %v2470
      %v3090 = vpop.permute.xlu0 %3089
      %3093 = vset.pattern.permute.xlu0 0
      %3094 = vperm.xlu0 %3093, %v2472
      %v3095 = vpop.permute.xlu0 %3094
      %3098 = vset.pattern.permute.xlu0 0
      %3099 = vperm.xlu0 %3098, %v2474
      %v3100 = vpop.permute.xlu0 %3099
      %3103 = vset.pattern.permute.xlu0 0
      %3104 = vperm.xlu0 %3103, %v2476
      %v3105 = vpop.permute.xlu0 %3104
      %3108 = vset.pattern.permute.xlu0 0
      %3109 = vperm.xlu0 %3108, %v2478
      %v3110 = vpop.permute.xlu0 %3109
      %3113 = vset.pattern.permute.xlu0 0
      %3114 = vperm.xlu0 %3113, %v2480
      %v3115 = vpop.permute.xlu0 %3114
      %3118 = vset.pattern.permute.xlu0 0
      %3119 = vperm.xlu0 %3118, %v2482
      %v3120 = vpop.permute.xlu0 %3119
      %3123 = vset.pattern.permute.xlu0 0
      %3124 = vperm.xlu0 %3123, %v2484
      %v3125 = vpop.permute.xlu0 %3124
      %3128 = vset.pattern.permute.xlu0 0
      %3129 = vperm.xlu0 %3128, %v2486
      %v3130 = vpop.permute.xlu0 %3129
      %3133 = vset.pattern.permute.xlu0 0
      %3134 = vperm.xlu0 %3133, %v2488
      %v3135 = vpop.permute.xlu0 %3134
      %3138 = vset.pattern.permute.xlu0 0
      %3139 = vperm.xlu0 %3138, %v2490
      %v3140 = vpop.permute.xlu0 %3139
      %3143 = vset.pattern.permute.xlu0 0
      %3144 = vperm.xlu0 %3143, %v2492
      %v3145 = vpop.permute.xlu0 %3144
      %3148 = vset.pattern.permute.xlu0 0
      %3149 = vperm.xlu0 %3148, %v2494
      %v3150 = vpop.permute.xlu0 %3149
      %3153 = vset.pattern.permute.xlu0 0
      %3154 = vperm.xlu0 %3153, %v2496
      %v3155 = vpop.permute.xlu0 %3154
      %3158 = vset.pattern.permute.xlu0 0
      %3159 = vperm.xlu0 %3158, %v2498
      %v3160 = vpop.permute.xlu0 %3159
      %3163 = vset.pattern.permute.xlu0 0
      %3164 = vperm.xlu0 %3163, %v2500
      %v3165 = vpop.permute.xlu0 %3164
      %3168 = vset.pattern.permute.xlu0 0
      %3169 = vperm.xlu0 %3168, %v2502
      %v3170 = vpop.permute.xlu0 %3169
      %3173 = vset.pattern.permute.xlu0 0
      %3174 = vperm.xlu0 %3173, %v2504
      %v3175 = vpop.permute.xlu0 %3174
      %3178 = vset.pattern.permute.xlu0 0
      %3179 = vperm.xlu0 %3178, %v2506
      %v3180 = vpop.permute.xlu0 %3179
      %3183 = vset.pattern.permute.xlu0 0
      %3184 = vperm.xlu0 %3183, %v2508
      %v3185 = vpop.permute.xlu0 %3184
      %3188 = vset.pattern.permute.xlu0 0
      %3189 = vperm.xlu0 %3188, %v2510
      %v3190 = vpop.permute.xlu0 %3189
      %3193 = vset.pattern.permute.xlu0 0
      %3194 = vperm.xlu0 %3193, %v2512
      %v3195 = vpop.permute.xlu0 %3194
      %3198 = vset.pattern.permute.xlu0 0
      %3199 = vperm.xlu0 %3198, %v2514
      %v3200 = vpop.permute.xlu0 %3199
      %3203 = vset.pattern.permute.xlu0 0
      %3204 = vperm.xlu0 %3203, %v2516
      %v3205 = vpop.permute.xlu0 %3204
      %3208 = vset.pattern.permute.xlu0 0
      %3209 = vperm.xlu0 %3208, %v2518
      %v3210 = vpop.permute.xlu0 %3209
      %3213 = vset.pattern.permute.xlu0 0
      %3214 = vperm.xlu0 %3213, %v2520
      %v3215 = vpop.permute.xlu0 %3214
      %3218 = vset.pattern.permute.xlu0 0
      %3219 = vperm.xlu0 %3218, %v2522
      %v3220 = vpop.permute.xlu0 %3219
      %3223 = vset.pattern.permute.xlu0 0
      %3224 = vperm.xlu0 %3223, %v2524
      %v3225 = vpop.permute.xlu0 %3224
      %3228 = vset.pattern.permute.xlu0 0
      %3229 = vperm.xlu0 %3228, %v2526
      %v3230 = vpop.permute.xlu0 %3229
      %3233 = vset.pattern.permute.xlu0 0
      %3234 = vperm.xlu0 %3233, %v2528
      %v3235 = vpop.permute.xlu0 %3234
      %3238 = vset.pattern.permute.xlu0 0
      %3239 = vperm.xlu0 %3238, %v2530
      %v3240 = vpop.permute.xlu0 %3239
      %3243 = vset.pattern.permute.xlu0 0
      %3244 = vperm.xlu0 %3243, %v2532
      %v3245 = vpop.permute.xlu0 %3244
      %3248 = vset.pattern.permute.xlu0 0
      %3249 = vperm.xlu0 %3248, %v2534
      %v3250 = vpop.permute.xlu0 %3249
      %3253 = vset.pattern.permute.xlu0 0
      %3254 = vperm.xlu0 %3253, %v2536
      %v3255 = vpop.permute.xlu0 %3254
      %3258 = vset.pattern.permute.xlu0 0
      %3259 = vperm.xlu0 %3258, %v2538
      %v3260 = vpop.permute.xlu0 %3259
      %3263 = vset.pattern.permute.xlu0 0
      %3264 = vperm.xlu0 %3263, %v2540
      %v3265 = vpop.permute.xlu0 %3264
      %3268 = vset.pattern.permute.xlu0 0
      %3269 = vperm.xlu0 %3268, %v2542
      %v3270 = vpop.permute.xlu0 %3269
      %3273 = vset.pattern.permute.xlu0 0
      %3274 = vperm.xlu0 %3273, %v2544
      %v3275 = vpop.permute.xlu0 %3274
      %3278 = vset.pattern.permute.xlu0 0
      %3279 = vperm.xlu0 %3278, %v2546
      %v3280 = vpop.permute.xlu0 %3279
      %3283 = vset.pattern.permute.xlu0 0
      %3284 = vperm.xlu0 %3283, %v2548
      %v3285 = vpop.permute.xlu0 %3284
      %3288 = vset.pattern.permute.xlu0 0
      %3289 = vperm.xlu0 %3288, %v2550
      %v3290 = vpop.permute.xlu0 %3289
      %3293 = vset.pattern.permute.xlu0 0
      %3294 = vperm.xlu0 %3293, %v2552
      %v3295 = vpop.permute.xlu0 %3294
      %3298 = vset.pattern.permute.xlu0 0
      %3299 = vperm.xlu0 %3298, %v2554
      %v3300 = vpop.permute.xlu0 %3299
      %3303 = vset.pattern.permute.xlu0 0
      %3304 = vperm.xlu0 %3303, %v2556
      %v3305 = vpop.permute.xlu0 %3304
      %3308 = vset.pattern.permute.xlu0 0
      %3309 = vperm.xlu0 %3308, %v2558
      %v3310 = vpop.permute.xlu0 %3309
      %3313 = vset.pattern.permute.xlu0 0
      %3314 = vperm.xlu0 %3313, %v2560
      %v3315 = vpop.permute.xlu0 %3314
      %3318 = vset.pattern.permute.xlu0 0
      %3319 = vperm.xlu0 %3318, %v2562
      %v3320 = vpop.permute.xlu0 %3319
      %3323 = vset.pattern.permute.xlu0 0
      %3324 = vperm.xlu0 %3323, %v2564
      %v3325 = vpop.permute.xlu0 %3324
      %3328 = vset.pattern.permute.xlu0 0
      %3329 = vperm.xlu0 %3328, %v2566
      %v3330 = vpop.permute.xlu0 %3329
      %3333 = vset.pattern.permute.xlu0 0
      %3334 = vperm.xlu0 %3333, %v2568
      %v3335 = vpop.permute.xlu0 %3334
      %3338 = vset.pattern.permute.xlu0 0
      %3339 = vperm.xlu0 %3338, %v2570
      %v3340 = vpop.permute.xlu0 %3339
      %3343 = vset.pattern.permute.xlu0 0
      %3344 = vperm.xlu0 %3343, %v2572
      %v3345 = vpop.permute.xlu0 %3344
      %3348 = vset.pattern.permute.xlu0 0
      %3349 = vperm.xlu0 %3348, %v2574
      %v3350 = vpop.permute.xlu0 %3349
      %3353 = vset.pattern.permute.xlu0 0
      %3354 = vperm.xlu0 %3353, %v2576
      %v3355 = vpop.permute.xlu0 %3354
      %3358 = vset.pattern.permute.xlu0 0
      %3359 = vperm.xlu0 %3358, %v2578
      %v3360 = vpop.permute.xlu0 %3359
      %3363 = vset.pattern.permute.xlu0 0
      %3364 = vperm.xlu0 %3363, %v2580
      %v3365 = vpop.permute.xlu0 %3364
      %3368 = vset.pattern.permute.xlu0 0
      %3369 = vperm.xlu0 %3368, %v2582
      %v3370 = vpop.permute.xlu0 %3369
      %3373 = vset.pattern.permute.xlu0 0
      %3374 = vperm.xlu0 %3373, %v2584
      %v3375 = vpop.permute.xlu0 %3374
      %3378 = vset.pattern.permute.xlu0 0
      %3379 = vperm.xlu0 %3378, %v2586
      %v3380 = vpop.permute.xlu0 %3379
      %3383 = vset.pattern.permute.xlu0 0
      %3384 = vperm.xlu0 %3383, %v2588
      %v3385 = vpop.permute.xlu0 %3384
      %3388 = vset.pattern.permute.xlu0 0
      %3389 = vperm.xlu0 %3388, %v2590
      %v3390 = vpop.permute.xlu0 %3389
      %3393 = vset.pattern.permute.xlu0 0
      %3394 = vperm.xlu0 %3393, %v2592
      %v3395 = vpop.permute.xlu0 %3394
      %3398 = vset.pattern.permute.xlu0 0
      %3399 = vperm.xlu0 %3398, %v2594
      %v3400 = vpop.permute.xlu0 %3399
      %3403 = vset.pattern.permute.xlu0 0
      %3404 = vperm.xlu0 %3403, %v2596
      %v3405 = vpop.permute.xlu0 %3404
      %3408 = vset.pattern.permute.xlu0 0
      %3409 = vperm.xlu0 %3408, %v2598
      %v3410 = vpop.permute.xlu0 %3409
      %3413 = vset.pattern.permute.xlu0 0
      %3414 = vperm.xlu0 %3413, %v2600
      %v3415 = vpop.permute.xlu0 %3414
      %3418 = vset.pattern.permute.xlu0 0
      %3419 = vperm.xlu0 %3418, %v2602
      %v3420 = vpop.permute.xlu0 %3419
      %3423 = vset.pattern.permute.xlu0 0
      %3424 = vperm.xlu0 %3423, %v2604
      %v3425 = vpop.permute.xlu0 %3424
      %3428 = vset.pattern.permute.xlu0 0
      %3429 = vperm.xlu0 %3428, %v2606
      %v3430 = vpop.permute.xlu0 %3429
      %3433 = vset.pattern.permute.xlu0 0
      %3434 = vperm.xlu0 %3433, %v2608
      %v3435 = vpop.permute.xlu0 %3434
      %3438 = vset.pattern.permute.xlu0 0
      %3439 = vperm.xlu0 %3438, %v2610
      %v3440 = vpop.permute.xlu0 %3439
      %3443 = vset.pattern.permute.xlu0 0
      %3444 = vperm.xlu0 %3443, %v2612
      %v3445 = vpop.permute.xlu0 %3444
      %3448 = vset.pattern.permute.xlu0 0
      %3449 = vperm.xlu0 %3448, %v2614
      %v3450 = vpop.permute.xlu0 %3449
      %3453 = vset.pattern.permute.xlu0 0
      %3454 = vperm.xlu0 %3453, %v2616
      %v3455 = vpop.permute.xlu0 %3454
      %3458 = vset.pattern.permute.xlu0 0
      %3459 = vperm.xlu0 %3458, %v2618
      %v3460 = vpop.permute.xlu0 %3459
      %3463 = vset.pattern.permute.xlu0 0
      %3464 = vperm.xlu0 %3463, %v2620
      %v3465 = vpop.permute.xlu0 %3464
      %3468 = vset.pattern.permute.xlu0 0
      %3469 = vperm.xlu0 %3468, %v2622
      %v3470 = vpop.permute.xlu0 %3469
      %3473 = vset.pattern.permute.xlu0 0
      %3474 = vperm.xlu0 %3473, %v2624
      %v3475 = vpop.permute.xlu0 %3474
      %3478 = vset.pattern.permute.xlu0 0
      %3479 = vperm.xlu0 %3478, %v2626
      %v3480 = vpop.permute.xlu0 %3479
      %3483 = vset.pattern.permute.xlu0 0
      %3484 = vperm.xlu0 %3483, %v2628
      %v3485 = vpop.permute.xlu0 %3484
      %3488 = vset.pattern.permute.xlu0 0
      %3489 = vperm.xlu0 %3488, %v2630
      %v3490 = vpop.permute.xlu0 %3489
      %3493 = vset.pattern.permute.xlu0 0
      %3494 = vperm.xlu0 %3493, %v2632
      %v3495 = vpop.permute.xlu0 %3494
      %v3497 = vmul.f32 %v2633, %v2780
      %v3498 = vmul.f32 %v2634, %v2785
      %v3499 = vmul.f32 %v2635, %v2790
      %v3500 = vmul.f32 %v2636, %v2795
      %v3501 = vmul.f32 %v2637, %v2800
      %v3502 = vmul.f32 %v2638, %v2805
      %v3503 = vmul.f32 %v2639, %v2810
      %v3504 = vmul.f32 %v2640, %v2815
      %v3505 = vmul.f32 %v2641, %v2820
      %v3506 = vmul.f32 %v2642, %v2825
      %v3507 = vmul.f32 %v2643, %v2830
      %v3508 = vmul.f32 %v2644, %v2835
      %v3509 = vmul.f32 %v2645, %v2840
      %v3510 = vmul.f32 %v2646, %v2845
      %v3511 = vmul.f32 %v2647, %v2850
      %v3512 = vmul.f32 %v2648, %v2855
      %v3513 = vmul.f32 %v2649, %v2860
      %v3514 = vmul.f32 %v2650, %v2865
      %v3515 = vmul.f32 %v2651, %v2870
      %v3516 = vmul.f32 %v2652, %v2875
      %v3517 = vmul.f32 %v2653, %v2880
      %v3518 = vmul.f32 %v2654, %v2885
      %v3519 = vmul.f32 %v2655, %v2890
      %v3520 = vmul.f32 %v2656, %v2895
      %v3521 = vmul.f32 %v2657, %v2900
      %v3522 = vmul.f32 %v2658, %v2905
      %v3523 = vmul.f32 %v2659, %v2910
      %v3524 = vmul.f32 %v2660, %v2915
      %v3525 = vmul.f32 %v2661, %v2920
      %v3526 = vmul.f32 %v2662, %v2925
      %v3527 = vmul.f32 %v2663, %v2930
      %v3528 = vmul.f32 %v2664, %v2935
      %v3529 = vmul.f32 %v2665, %v2940
      %v3530 = vmul.f32 %v2666, %v2945
      %v3531 = vmul.f32 %v2667, %v2950
      %v3532 = vmul.f32 %v2668, %v2955
      %v3533 = vmul.f32 %v2669, %v2960
      %v3534 = vmul.f32 %v2670, %v2965
      %v3535 = vmul.f32 %v2671, %v2970
      %v3536 = vmul.f32 %v2672, %v2975
      %v3537 = vmul.f32 %v2673, %v2980
      %v3538 = vmul.f32 %v2674, %v2985
      %v3539 = vmul.f32 %v2675, %v2990
      %v3540 = vmul.f32 %v2676, %v2995
      %v3541 = vmul.f32 %v2677, %v3000
      %v3542 = vmul.f32 %v2678, %v3005
      %v3543 = vmul.f32 %v2679, %v3010
      %v3544 = vmul.f32 %v2680, %v3015
      %v3545 = vmul.f32 %v2681, %v3020
      %v3546 = vmul.f32 %v2682, %v3025
      %v3547 = vmul.f32 %v2683, %v3030
      %v3548 = vmul.f32 %v2684, %v3035
      %v3549 = vmul.f32 %v2685, %v3040
      %v3550 = vmul.f32 %v2686, %v3045
      %v3551 = vmul.f32 %v2687, %v3050
      %v3552 = vmul.f32 %v2688, %v3055
      %v3553 = vmul.f32 %v2689, %v3060
      %v3554 = vmul.f32 %v2690, %v3065
      %v3555 = vmul.f32 %v2691, %v3070
      %v3556 = vmul.f32 %v2692, %v3075
      %v3557 = vmul.f32 %v2693, %v3080
      %v3558 = vmul.f32 %v2694, %v3085
      %v3559 = vmul.f32 %v2695, %v3090
      %v3560 = vmul.f32 %v2696, %v3095
      %v3561 = vmul.f32 %v2697, %v3100
      %v3562 = vmul.f32 %v2698, %v3105
      %v3563 = vmul.f32 %v2699, %v3110
      %v3564 = vmul.f32 %v2700, %v3115
      %v3565 = vmul.f32 %v2701, %v3120
      %v3566 = vmul.f32 %v2702, %v3125
      %v3567 = vmul.f32 %v2703, %v3130
      %v3568 = vmul.f32 %v2704, %v3135
      %v3569 = vmul.f32 %v2705, %v3140
      %v3570 = vmul.f32 %v2706, %v3145
      %v3571 = vmul.f32 %v2707, %v3150
      %v3572 = vmul.f32 %v2708, %v3155
      %v3573 = vmul.f32 %v2709, %v3160
      %v3574 = vmul.f32 %v2710, %v3165
      %v3575 = vmul.f32 %v2711, %v3170
      %v3576 = vmul.f32 %v2712, %v3175
      %v3577 = vmul.f32 %v2713, %v3180
      %v3578 = vmul.f32 %v2714, %v3185
      %v3579 = vmul.f32 %v2715, %v3190
      %v3580 = vmul.f32 %v2716, %v3195
      %v3581 = vmul.f32 %v2717, %v3200
      %v3582 = vmul.f32 %v2718, %v3205
      %v3583 = vmul.f32 %v2719, %v3210
      %v3584 = vmul.f32 %v2720, %v3215
      %v3585 = vmul.f32 %v2721, %v3220
      %v3586 = vmul.f32 %v2722, %v3225
      %v3587 = vmul.f32 %v2723, %v3230
      %v3588 = vmul.f32 %v2724, %v3235
      %v3589 = vmul.f32 %v2725, %v3240
      %v3590 = vmul.f32 %v2726, %v3245
      %v3591 = vmul.f32 %v2727, %v3250
      %v3592 = vmul.f32 %v2728, %v3255
      %v3593 = vmul.f32 %v2729, %v3260
      %v3594 = vmul.f32 %v2730, %v3265
      %v3595 = vmul.f32 %v2731, %v3270
      %v3596 = vmul.f32 %v2732, %v3275
      %v3597 = vmul.f32 %v2733, %v3280
      %v3598 = vmul.f32 %v2734, %v3285
      %v3599 = vmul.f32 %v2735, %v3290
      %v3600 = vmul.f32 %v2736, %v3295
      %v3601 = vmul.f32 %v2737, %v3300
      %v3602 = vmul.f32 %v2738, %v3305
      %v3603 = vmul.f32 %v2739, %v3310
      %v3604 = vmul.f32 %v2740, %v3315
      %v3605 = vmul.f32 %v2741, %v3320
      %v3606 = vmul.f32 %v2742, %v3325
      %v3607 = vmul.f32 %v2743, %v3330
      %v3608 = vmul.f32 %v2744, %v3335
      %v3609 = vmul.f32 %v2745, %v3340
      %v3610 = vmul.f32 %v2746, %v3345
      %v3611 = vmul.f32 %v2747, %v3350
      %v3612 = vmul.f32 %v2748, %v3355
      %v3613 = vmul.f32 %v2749, %v3360
      %v3614 = vmul.f32 %v2750, %v3365
      %v3615 = vmul.f32 %v2751, %v3370
      %v3616 = vmul.f32 %v2752, %v3375
      %v3617 = vmul.f32 %v2753, %v3380
      %v3618 = vmul.f32 %v2754, %v3385
      %v3619 = vmul.f32 %v2755, %v3390
      %v3620 = vmul.f32 %v2756, %v3395
      %v3621 = vmul.f32 %v2757, %v3400
      %v3622 = vmul.f32 %v2758, %v3405
      %v3623 = vmul.f32 %v2759, %v3410
      %v3624 = vmul.f32 %v2760, %v3415
      %v3625 = vmul.f32 %v2761, %v3420
      %v3626 = vmul.f32 %v2762, %v3425
      %v3627 = vmul.f32 %v2763, %v3430
      %v3628 = vmul.f32 %v2764, %v3435
      %v3629 = vmul.f32 %v2765, %v3440
      %v3630 = vmul.f32 %v2766, %v3445
      %v3631 = vmul.f32 %v2767, %v3450
      %v3632 = vmul.f32 %v2768, %v3455
      %v3633 = vmul.f32 %v2769, %v3460
      %v3634 = vmul.f32 %v2770, %v3465
      %v3635 = vmul.f32 %v2771, %v3470
      %v3636 = vmul.f32 %v2772, %v3475
      %v3637 = vmul.f32 %v2773, %v3480
      %v3638 = vmul.f32 %v2774, %v3485
      %v3639 = vmul.f32 %v2775, %v3490
      %v3640 = vmul.f32 %v2776, %v3495
      %v3641 = vpack.c.bf16 %v3498, %v3497
      %v3642 = vpack.c.bf16 %v3500, %v3499
      %v3643 = vpack.c.bf16 %v3502, %v3501
      %v3644 = vpack.c.bf16 %v3504, %v3503
      %v3645 = vpack.c.bf16 %v3506, %v3505
      %v3646 = vpack.c.bf16 %v3508, %v3507
      %v3647 = vpack.c.bf16 %v3510, %v3509
      %v3648 = vpack.c.bf16 %v3512, %v3511
      %v3649 = vpack.c.bf16 %v3514, %v3513
      %v3650 = vpack.c.bf16 %v3516, %v3515
      %v3651 = vpack.c.bf16 %v3518, %v3517
      %v3652 = vpack.c.bf16 %v3520, %v3519
      %v3653 = vpack.c.bf16 %v3522, %v3521
      %v3654 = vpack.c.bf16 %v3524, %v3523
      %v3655 = vpack.c.bf16 %v3526, %v3525
      %v3656 = vpack.c.bf16 %v3528, %v3527
      %v3657 = vpack.c.bf16 %v3530, %v3529
      %v3658 = vpack.c.bf16 %v3532, %v3531
      %v3659 = vpack.c.bf16 %v3534, %v3533
      %v3660 = vpack.c.bf16 %v3536, %v3535
      %v3661 = vpack.c.bf16 %v3538, %v3537
      %v3662 = vpack.c.bf16 %v3540, %v3539
      %v3663 = vpack.c.bf16 %v3542, %v3541
      %v3664 = vpack.c.bf16 %v3544, %v3543
      %v3665 = vpack.c.bf16 %v3546, %v3545
      %v3666 = vpack.c.bf16 %v3548, %v3547
      %v3667 = vpack.c.bf16 %v3550, %v3549
      %v3668 = vpack.c.bf16 %v3552, %v3551
      %v3669 = vpack.c.bf16 %v3554, %v3553
      %v3670 = vpack.c.bf16 %v3556, %v3555
      %v3671 = vpack.c.bf16 %v3558, %v3557
      %v3672 = vpack.c.bf16 %v3560, %v3559
      %v3673 = vpack.c.bf16 %v3562, %v3561
      %v3674 = vpack.c.bf16 %v3564, %v3563
      %v3675 = vpack.c.bf16 %v3566, %v3565
      %v3676 = vpack.c.bf16 %v3568, %v3567
      %v3677 = vpack.c.bf16 %v3570, %v3569
      %v3678 = vpack.c.bf16 %v3572, %v3571
      %v3679 = vpack.c.bf16 %v3574, %v3573
      %v3680 = vpack.c.bf16 %v3576, %v3575
      %v3681 = vpack.c.bf16 %v3578, %v3577
      %v3682 = vpack.c.bf16 %v3580, %v3579
      %v3683 = vpack.c.bf16 %v3582, %v3581
      %v3684 = vpack.c.bf16 %v3584, %v3583
      %v3685 = vpack.c.bf16 %v3586, %v3585
      %v3686 = vpack.c.bf16 %v3588, %v3587
      %v3687 = vpack.c.bf16 %v3590, %v3589
      %v3688 = vpack.c.bf16 %v3592, %v3591
      %v3689 = vpack.c.bf16 %v3594, %v3593
      %v3690 = vpack.c.bf16 %v3596, %v3595
      %v3691 = vpack.c.bf16 %v3598, %v3597
      %v3692 = vpack.c.bf16 %v3600, %v3599
      %v3693 = vpack.c.bf16 %v3602, %v3601
      %v3694 = vpack.c.bf16 %v3604, %v3603
      %v3695 = vpack.c.bf16 %v3606, %v3605
      %v3696 = vpack.c.bf16 %v3608, %v3607
      %v3697 = vpack.c.bf16 %v3610, %v3609
      %v3698 = vpack.c.bf16 %v3612, %v3611
      %v3699 = vpack.c.bf16 %v3614, %v3613
      %v3700 = vpack.c.bf16 %v3616, %v3615
      %v3701 = vpack.c.bf16 %v3618, %v3617
      %v3702 = vpack.c.bf16 %v3620, %v3619
      %v3703 = vpack.c.bf16 %v3622, %v3621
      %v3704 = vpack.c.bf16 %v3624, %v3623
      %v3705 = vpack.c.bf16 %v3626, %v3625
      %v3706 = vpack.c.bf16 %v3628, %v3627
      %v3707 = vpack.c.bf16 %v3630, %v3629
      %v3708 = vpack.c.bf16 %v3632, %v3631
      %v3709 = vpack.c.bf16 %v3634, %v3633
      %v3710 = vpack.c.bf16 %v3636, %v3635
      %v3711 = vpack.c.bf16 %v3638, %v3637
      %v3712 = vpack.c.bf16 %v3640, %v3639
      %v3713 = vld [vmem:[%s275] sm:$0xff]
      %v3714 = vld [vmem:[%s275 + $0x8] sm:$0xff]
      %v3715 = vld [vmem:[%s275 + $0x10] sm:$0xff]
      %v3716 = vld [vmem:[%s275 + $0x18] sm:$0xff]
      %v3717 = vld [vmem:[%s275 + $0x20] sm:$0xf]
      %v3718 = vld [vmem:[%s275 + $0x24] sm:$0xff]
      %v3719 = vld [vmem:[%s275 + $0x2c] sm:$0xff]
      %v3720 = vld [vmem:[%s275 + $0x34] sm:$0xff]
      %v3721 = vld [vmem:[%s275 + $0x3c] sm:$0xff]
      %v3722 = vld [vmem:[%s275 + $0x44] sm:$0xf]
      %v3723 = vld [vmem:[%s275 + $0x48] sm:$0xff]
      %v3724 = vld [vmem:[%s275 + $0x50] sm:$0xff]
      %v3725 = vld [vmem:[%s275 + $0x58] sm:$0xff]
      %v3726 = vld [vmem:[%s275 + $0x60] sm:$0xff]
      %v3727 = vld [vmem:[%s275 + $0x68] sm:$0xf]
      %v3728 = vld [vmem:[%s275 + $0x6c] sm:$0xff]
      %v3729 = vld [vmem:[%s275 + $0x74] sm:$0xff]
      %v3730 = vld [vmem:[%s275 + $0x7c] sm:$0xff]
      %v3731 = vld [vmem:[%s275 + $0x84] sm:$0xff]
      %v3732 = vld [vmem:[%s275 + $0x8c] sm:$0xf]
      %v3733 = vld [vmem:[%s275 + $0x90] sm:$0xff]
      %v3734 = vld [vmem:[%s275 + $0x98] sm:$0xff]
      %v3735 = vld [vmem:[%s275 + $0xa0] sm:$0xff]
      %v3736 = vld [vmem:[%s275 + $0xa8] sm:$0xff]
      %v3737 = vld [vmem:[%s275 + $0xb0] sm:$0xf]
      %v3738 = vld [vmem:[%s275 + $0xb4] sm:$0xff]
      %v3739 = vld [vmem:[%s275 + $0xbc] sm:$0xff]
      %v3740 = vld [vmem:[%s275 + $0xc4] sm:$0xff]
      %v3741 = vld [vmem:[%s275 + $0xcc] sm:$0xff]
      %v3742 = vld [vmem:[%s275 + $0xd4] sm:$0xf]
      %v3743 = vld [vmem:[%s275 + $0xd8] sm:$0xff]
      %v3744 = vld [vmem:[%s275 + $0xe0] sm:$0xff]
      %v3745 = vld [vmem:[%s275 + $0xe8] sm:$0xff]
      %v3746 = vld [vmem:[%s275 + $0xf0] sm:$0xff]
      %v3747 = vld [vmem:[%s275 + $0xf8] sm:$0xf]
      %v3748 = vld [vmem:[%s275 + $0xfc] sm:$0xff]
      %v3749 = vld [vmem:[%s275 + $0x104] sm:$0xff]
      %v3750 = vld [vmem:[%s275 + $0x10c] sm:$0xff]
      %v3751 = vld [vmem:[%s275 + $0x114] sm:$0xff]
      %v3752 = vld [vmem:[%s275 + $0x11c] sm:$0xf]
      %v3753 = vld [vmem:[%s275 + $0x120] sm:$0xff]
      %v3754 = vld [vmem:[%s275 + $0x128] sm:$0xff]
      %v3755 = vld [vmem:[%s275 + $0x130] sm:$0xff]
      %v3756 = vld [vmem:[%s275 + $0x138] sm:$0xff]
      %v3757 = vld [vmem:[%s275 + $0x140] sm:$0xf]
      %v3758 = vld [vmem:[%s275 + $0x144] sm:$0xff]
      %v3759 = vld [vmem:[%s275 + $0x14c] sm:$0xff]
      %v3760 = vld [vmem:[%s275 + $0x154] sm:$0xff]
      %v3761 = vld [vmem:[%s275 + $0x15c] sm:$0xff]
      %v3762 = vld [vmem:[%s275 + $0x164] sm:$0xf]
      %v3763 = vld [vmem:[%s275 + $0x168] sm:$0xff]
      %v3764 = vld [vmem:[%s275 + $0x170] sm:$0xff]
      %v3765 = vld [vmem:[%s275 + $0x178] sm:$0xff]
      %v3766 = vld [vmem:[%s275 + $0x180] sm:$0xff]
      %v3767 = vld [vmem:[%s275 + $0x188] sm:$0xf]
      %v3768 = vld [vmem:[%s275 + $0x18c] sm:$0xff]
      %v3769 = vld [vmem:[%s275 + $0x194] sm:$0xff]
      %v3770 = vld [vmem:[%s275 + $0x19c] sm:$0xff]
      %v3771 = vld [vmem:[%s275 + $0x1a4] sm:$0xff]
      %v3772 = vld [vmem:[%s275 + $0x1ac] sm:$0xf]
      %v3773 = vld [vmem:[%s275 + $0x1b0] sm:$0xff]
      %v3774 = vld [vmem:[%s275 + $0x1b8] sm:$0xff]
      %v3775 = vld [vmem:[%s275 + $0x1c0] sm:$0xff]
      %v3776 = vld [vmem:[%s275 + $0x1c8] sm:$0xff]
      %v3777 = vld [vmem:[%s275 + $0x1d0] sm:$0xf]
      %v3778 = vld [vmem:[%s275 + $0x1d4] sm:$0xff]
      %v3779 = vld [vmem:[%s275 + $0x1dc] sm:$0xff]
      %v3780 = vld [vmem:[%s275 + $0x1e4] sm:$0xff]
      %v3781 = vld [vmem:[%s275 + $0x1ec] sm:$0xff]
      %v3782 = vld [vmem:[%s275 + $0x1f4] sm:$0xf]
      %v3783 = vld [vmem:[%s275 + $0x1f8] sm:$0xff]
      %v3784 = vld [vmem:[%s275 + $0x200] sm:$0xff]
      %v3785 = vld [vmem:[%s275 + $0x208] sm:$0xff]
      %v3786 = vld [vmem:[%s275 + $0x210] sm:$0xff]
      %v3787 = vld [vmem:[%s275 + $0x218] sm:$0xf]
      %v3788 = vld [vmem:[%s275 + $0x21c] sm:$0xff]
      %v3789 = vld [vmem:[%s275 + $0x224] sm:$0xff]
      %v3790 = vld [vmem:[%s275 + $0x22c] sm:$0xff]
      %v3791 = vld [vmem:[%s275 + $0x234] sm:$0xff]
      %v3792 = vld [vmem:[%s275 + $0x23c] sm:$0xf]
      %v3793 = vld [vmem:[%s275 + $0x240] sm:$0xff]
      %v3794 = vld [vmem:[%s275 + $0x248] sm:$0xff]
      %v3795 = vld [vmem:[%s275 + $0x250] sm:$0xff]
      %v3796 = vld [vmem:[%s275 + $0x258] sm:$0xff]
      %v3797 = vld [vmem:[%s275 + $0x260] sm:$0xf]
      %v3798 = vld [vmem:[%s275 + $0x264] sm:$0xff]
      %v3799 = vld [vmem:[%s275 + $0x26c] sm:$0xff]
      %v3800 = vld [vmem:[%s275 + $0x274] sm:$0xff]
      %v3801 = vld [vmem:[%s275 + $0x27c] sm:$0xff]
      %v3802 = vld [vmem:[%s275 + $0x284] sm:$0xf]
      %v3803 = vld [vmem:[%s275 + $0x288] sm:$0xff]
      %v3804 = vld [vmem:[%s275 + $0x290] sm:$0xff]
      %v3805 = vld [vmem:[%s275 + $0x298] sm:$0xff]
      %v3806 = vld [vmem:[%s275 + $0x2a0] sm:$0xff]
      %v3807 = vld [vmem:[%s275 + $0x2a8] sm:$0xf]
      %v3808 = vld [vmem:[%s275 + $0x2ac] sm:$0xff]
      %v3809 = vld [vmem:[%s275 + $0x2b4] sm:$0xff]
      %v3810 = vld [vmem:[%s275 + $0x2bc] sm:$0xff]
      %v3811 = vld [vmem:[%s275 + $0x2c4] sm:$0xff]
      %v3812 = vld [vmem:[%s275 + $0x2cc] sm:$0xf]
      %v3813 = vld [vmem:[%s275 + $0x2d0] sm:$0xff]
      %v3814 = vld [vmem:[%s275 + $0x2d8] sm:$0xff]
      %v3815 = vld [vmem:[%s275 + $0x2e0] sm:$0xff]
      %v3816 = vld [vmem:[%s275 + $0x2e8] sm:$0xff]
      %v3817 = vld [vmem:[%s275 + $0x2f0] sm:$0xf]
      %v3818 = vld [vmem:[%s275 + $0x2f4] sm:$0xff]
      %v3819 = vld [vmem:[%s275 + $0x2fc] sm:$0xff]
      %v3820 = vld [vmem:[%s275 + $0x304] sm:$0xff]
      %v3821 = vld [vmem:[%s275 + $0x30c] sm:$0xff]
      %v3822 = vld [vmem:[%s275 + $0x314] sm:$0xf]
      %v3823 = vld [vmem:[%s275 + $0x318] sm:$0xff]
      %v3824 = vld [vmem:[%s275 + $0x320] sm:$0xff]
      %v3825 = vld [vmem:[%s275 + $0x328] sm:$0xff]
      %v3826 = vld [vmem:[%s275 + $0x330] sm:$0xff]
      %v3827 = vld [vmem:[%s275 + $0x338] sm:$0xf]
      %v3828 = vld [vmem:[%s275 + $0x33c] sm:$0xff]
      %v3829 = vld [vmem:[%s275 + $0x344] sm:$0xff]
      %v3830 = vld [vmem:[%s275 + $0x34c] sm:$0xff]
      %v3831 = vld [vmem:[%s275 + $0x354] sm:$0xff]
      %v3832 = vld [vmem:[%s275 + $0x35c] sm:$0xf]
      %v3833 = vld [vmem:[%s275 + $0x360] sm:$0xff]
      %v3834 = vld [vmem:[%s275 + $0x368] sm:$0xff]
      %v3835 = vld [vmem:[%s275 + $0x370] sm:$0xff]
      %v3836 = vld [vmem:[%s275 + $0x378] sm:$0xff]
      %v3837 = vld [vmem:[%s275 + $0x380] sm:$0xf]
      %v3838 = vld [vmem:[%s275 + $0x384] sm:$0xff]
      %v3839 = vld [vmem:[%s275 + $0x38c] sm:$0xff]
      %v3840 = vld [vmem:[%s275 + $0x394] sm:$0xff]
      %v3841 = vld [vmem:[%s275 + $0x39c] sm:$0xff]
      %v3842 = vld [vmem:[%s275 + $0x3a4] sm:$0xf]
      %v3843 = vld [vmem:[%s275 + $0x3a8] sm:$0xff]
      %v3844 = vld [vmem:[%s275 + $0x3b0] sm:$0xff]
      %v3845 = vld [vmem:[%s275 + $0x3b8] sm:$0xff]
      %v3846 = vld [vmem:[%s275 + $0x3c0] sm:$0xff]
      %v3847 = vld [vmem:[%s275 + $0x3c8] sm:$0xf]
      %v3848 = vld [vmem:[%s275 + $0x3cc] sm:$0xff]
      %v3849 = vld [vmem:[%s275 + $0x3d4] sm:$0xff]
      %v3850 = vld [vmem:[%s275 + $0x3dc] sm:$0xff]
      %v3851 = vld [vmem:[%s275 + $0x3e4] sm:$0xff]
      %v3852 = vld [vmem:[%s275 + $0x3ec] sm:$0xf]
      %v3853 = vld [vmem:[%s275 + $0x3f0] sm:$0xff]
      %v3854 = vld [vmem:[%s275 + $0x3f8] sm:$0xff]
      %v3855 = vld [vmem:[%s275 + $0x400] sm:$0xff]
      %v3856 = vld [vmem:[%s275 + $0x408] sm:$0xff]
      %v3857 = vld [vmem:[%s275 + $0x410] sm:$0xf]
      %v3858 = vld [vmem:[%s275 + $0x414] sm:$0xff]
      %v3859 = vld [vmem:[%s275 + $0x41c] sm:$0xff]
      %v3860 = vld [vmem:[%s275 + $0x424] sm:$0xff]
      %v3861 = vld [vmem:[%s275 + $0x42c] sm:$0xff]
      %v3862 = vld [vmem:[%s275 + $0x434] sm:$0xf]
      %v3863 = vld [vmem:[%s275 + $0x438] sm:$0xff]
      %v3864 = vld [vmem:[%s275 + $0x440] sm:$0xff]
      %v3865 = vld [vmem:[%s275 + $0x448] sm:$0xff]
      %v3866 = vld [vmem:[%s275 + $0x450] sm:$0xff]
      %v3867 = vld [vmem:[%s275 + $0x458] sm:$0xf]
      %v3868 = vld [vmem:[%s275 + $0x45c] sm:$0xff]
      %v3869 = vld [vmem:[%s275 + $0x464] sm:$0xff]
      %v3870 = vld [vmem:[%s275 + $0x46c] sm:$0xff]
      %v3871 = vld [vmem:[%s275 + $0x474] sm:$0xff]
      %v3872 = vld [vmem:[%s275 + $0x47c] sm:$0xf]
      %v3873 = vld [vmem:[%s275 + $0x480] sm:$0xff]
      %v3874 = vld [vmem:[%s275 + $0x488] sm:$0xff]
      %v3875 = vld [vmem:[%s275 + $0x490] sm:$0xff]
      %v3876 = vld [vmem:[%s275 + $0x498] sm:$0xff]
      %v3877 = vld [vmem:[%s275 + $0x4a0] sm:$0xf]
      %v3878 = vld [vmem:[%s275 + $0x4a4] sm:$0xff]
      %v3879 = vld [vmem:[%s275 + $0x4ac] sm:$0xff]
      %v3880 = vld [vmem:[%s275 + $0x4b4] sm:$0xff]
      %v3881 = vld [vmem:[%s275 + $0x4bc] sm:$0xff]
      %v3882 = vld [vmem:[%s275 + $0x4c4] sm:$0xf]
      %v3883 = vld [vmem:[%s275 + $0x4c8] sm:$0xff]
      %v3884 = vld [vmem:[%s275 + $0x4d0] sm:$0xff]
      %v3885 = vld [vmem:[%s275 + $0x4d8] sm:$0xff]
      %v3886 = vld [vmem:[%s275 + $0x4e0] sm:$0xff]
      %v3887 = vld [vmem:[%s275 + $0x4e8] sm:$0xf]
      %v3888 = vld [vmem:[%s275 + $0x4ec] sm:$0xff]
      %v3889 = vld [vmem:[%s275 + $0x4f4] sm:$0xff]
      %v3890 = vld [vmem:[%s275 + $0x4fc] sm:$0xff]
      %v3891 = vld [vmem:[%s275 + $0x504] sm:$0xff]
      %v3892 = vld [vmem:[%s275 + $0x50c] sm:$0xf]
      %v3893 = vld [vmem:[%s275 + $0x510] sm:$0xff]
      %v3894 = vld [vmem:[%s275 + $0x518] sm:$0xff]
      %v3895 = vld [vmem:[%s275 + $0x520] sm:$0xff]
      %v3896 = vld [vmem:[%s275 + $0x528] sm:$0xff]
      %v3897 = vld [vmem:[%s275 + $0x530] sm:$0xf]
      %v3898 = vld [vmem:[%s275 + $0x534] sm:$0xff]
      %v3899 = vld [vmem:[%s275 + $0x53c] sm:$0xff]
      %v3900 = vld [vmem:[%s275 + $0x544] sm:$0xff]
      %v3901 = vld [vmem:[%s275 + $0x54c] sm:$0xff]
      %v3902 = vld [vmem:[%s275 + $0x554] sm:$0xf]
      %v3903 = vld [vmem:[%s275 + $0x558] sm:$0xff]
      %v3904 = vld [vmem:[%s275 + $0x560] sm:$0xff]
      %v3905 = vld [vmem:[%s275 + $0x568] sm:$0xff]
      %v3906 = vld [vmem:[%s275 + $0x570] sm:$0xff]
      %v3907 = vld [vmem:[%s275 + $0x578] sm:$0xf]
      %v3908 = vld [vmem:[%s275 + $0x57c] sm:$0xff]
      %v3909 = vld [vmem:[%s275 + $0x584] sm:$0xff]
      %v3910 = vld [vmem:[%s275 + $0x58c] sm:$0xff]
      %v3911 = vld [vmem:[%s275 + $0x594] sm:$0xff]
      %v3912 = vld [vmem:[%s275 + $0x59c] sm:$0xf]
      %v3913 = vld [vmem:[%s275 + $0x5a0] sm:$0xff]
      %v3914 = vld [vmem:[%s275 + $0x5a8] sm:$0xff]
      %v3915 = vld [vmem:[%s275 + $0x5b0] sm:$0xff]
      %v3916 = vld [vmem:[%s275 + $0x5b8] sm:$0xff]
      %v3917 = vld [vmem:[%s275 + $0x5c0] sm:$0xf]
      %v3918 = vld [vmem:[%s275 + $0x5c4] sm:$0xff]
      %v3919 = vld [vmem:[%s275 + $0x5cc] sm:$0xff]
      %v3920 = vld [vmem:[%s275 + $0x5d4] sm:$0xff]
      %v3921 = vld [vmem:[%s275 + $0x5dc] sm:$0xff]
      %v3922 = vld [vmem:[%s275 + $0x5e4] sm:$0xf]
      %v3923 = vld [vmem:[%s275 + $0x5e8] sm:$0xff]
      %v3924 = vld [vmem:[%s275 + $0x5f0] sm:$0xff]
      %v3925 = vld [vmem:[%s275 + $0x5f8] sm:$0xff]
      %v3926 = vld [vmem:[%s275 + $0x600] sm:$0xff]
      %v3927 = vld [vmem:[%s275 + $0x608] sm:$0xf]
      %v3928 = vld [vmem:[%s275 + $0x60c] sm:$0xff]
      %v3929 = vld [vmem:[%s275 + $0x614] sm:$0xff]
      %v3930 = vld [vmem:[%s275 + $0x61c] sm:$0xff]
      %v3931 = vld [vmem:[%s275 + $0x624] sm:$0xff]
      %v3932 = vld [vmem:[%s275 + $0x62c] sm:$0xf]
      %v3933 = vld [vmem:[%s275 + $0x630] sm:$0xff]
      %v3934 = vld [vmem:[%s275 + $0x638] sm:$0xff]
      %v3935 = vld [vmem:[%s275 + $0x640] sm:$0xff]
      %v3936 = vld [vmem:[%s275 + $0x648] sm:$0xff]
      %v3937 = vld [vmem:[%s275 + $0x650] sm:$0xf]
      %v3938 = vld [vmem:[%s275 + $0x654] sm:$0xff]
      %v3939 = vld [vmem:[%s275 + $0x65c] sm:$0xff]
      %v3940 = vld [vmem:[%s275 + $0x664] sm:$0xff]
      %v3941 = vld [vmem:[%s275 + $0x66c] sm:$0xff]
      %v3942 = vld [vmem:[%s275 + $0x674] sm:$0xf]
      %v3943 = vld [vmem:[%s275 + $0x678] sm:$0xff]
      %v3944 = vld [vmem:[%s275 + $0x680] sm:$0xff]
      %v3945 = vld [vmem:[%s275 + $0x688] sm:$0xff]
      %v3946 = vld [vmem:[%s275 + $0x690] sm:$0xff]
      %v3947 = vld [vmem:[%s275 + $0x698] sm:$0xf]
      %v3948 = vld [vmem:[%s275 + $0x69c] sm:$0xff]
      %v3949 = vld [vmem:[%s275 + $0x6a4] sm:$0xff]
      %v3950 = vld [vmem:[%s275 + $0x6ac] sm:$0xff]
      %v3951 = vld [vmem:[%s275 + $0x6b4] sm:$0xff]
      %v3952 = vld [vmem:[%s275 + $0x6bc] sm:$0xf]
      %v4193 = vunpack.c.l.b16 %v3713
      %v4194 = vunpack.c.h.b16 %v3713
      %v4195 = vunpack.c.l.b16 %v3714
      %v4196 = vunpack.c.h.b16 %v3714
      %v4197 = vunpack.c.l.b16 %v3715
      %v4198 = vunpack.c.h.b16 %v3715
      %v4199 = vunpack.c.l.b16 %v3716
      %v4200 = vunpack.c.h.b16 %v3716
      %v4201 = vunpack.c.l.b16 %v3717
      %v4202 = vunpack.c.l.b16 %v3718
      %v4203 = vunpack.c.h.b16 %v3718
      %v4204 = vunpack.c.l.b16 %v3719
      %v4205 = vunpack.c.h.b16 %v3719
      %v4206 = vunpack.c.l.b16 %v3720
      %v4207 = vunpack.c.h.b16 %v3720
      %v4208 = vunpack.c.l.b16 %v3721
      %v4209 = vunpack.c.h.b16 %v3721
      %v4210 = vunpack.c.l.b16 %v3722
      %v4211 = vunpack.c.l.b16 %v3723
      %v4212 = vunpack.c.h.b16 %v3723
      %v4213 = vunpack.c.l.b16 %v3724
      %v4214 = vunpack.c.h.b16 %v3724
      %v4215 = vunpack.c.l.b16 %v3725
      %v4216 = vunpack.c.h.b16 %v3725
      %v4217 = vunpack.c.l.b16 %v3726
      %v4218 = vunpack.c.h.b16 %v3726
      %v4219 = vunpack.c.l.b16 %v3727
      %v4220 = vunpack.c.l.b16 %v3728
      %v4221 = vunpack.c.h.b16 %v3728
      %v4222 = vunpack.c.l.b16 %v3729
      %v4223 = vunpack.c.h.b16 %v3729
      %v4224 = vunpack.c.l.b16 %v3730
      %v4225 = vunpack.c.h.b16 %v3730
      %v4226 = vunpack.c.l.b16 %v3731
      %v4227 = vunpack.c.h.b16 %v3731
      %v4228 = vunpack.c.l.b16 %v3732
      %v4229 = vunpack.c.l.b16 %v3733
      %v4230 = vunpack.c.h.b16 %v3733
      %v4231 = vunpack.c.l.b16 %v3734
      %v4232 = vunpack.c.h.b16 %v3734
      %v4233 = vunpack.c.l.b16 %v3735
      %v4234 = vunpack.c.h.b16 %v3735
      %v4235 = vunpack.c.l.b16 %v3736
      %v4236 = vunpack.c.h.b16 %v3736
      %v4237 = vunpack.c.l.b16 %v3737
      %v4238 = vunpack.c.l.b16 %v3738
      %v4239 = vunpack.c.h.b16 %v3738
      %v4240 = vunpack.c.l.b16 %v3739
      %v4241 = vunpack.c.h.b16 %v3739
      %v4242 = vunpack.c.l.b16 %v3740
      %v4243 = vunpack.c.h.b16 %v3740
      %v4244 = vunpack.c.l.b16 %v3741
      %v4245 = vunpack.c.h.b16 %v3741
      %v4246 = vunpack.c.l.b16 %v3742
      %v4247 = vunpack.c.l.b16 %v3743
      %v4248 = vunpack.c.h.b16 %v3743
      %v4249 = vunpack.c.l.b16 %v3744
      %v4250 = vunpack.c.h.b16 %v3744
      %v4251 = vunpack.c.l.b16 %v3745
      %v4252 = vunpack.c.h.b16 %v3745
      %v4253 = vunpack.c.l.b16 %v3746
      %v4254 = vunpack.c.h.b16 %v3746
      %v4255 = vunpack.c.l.b16 %v3747
      %v4256 = vunpack.c.l.b16 %v3748
      %v4257 = vunpack.c.h.b16 %v3748
      %v4258 = vunpack.c.l.b16 %v3749
      %v4259 = vunpack.c.h.b16 %v3749
      %v4260 = vunpack.c.l.b16 %v3750
      %v4261 = vunpack.c.h.b16 %v3750
      %v4262 = vunpack.c.l.b16 %v3751
      %v4263 = vunpack.c.h.b16 %v3751
      %v4264 = vunpack.c.l.b16 %v3752
      %v4265 = vunpack.c.l.b16 %v3753
      %v4266 = vunpack.c.h.b16 %v3753
      %v4267 = vunpack.c.l.b16 %v3754
      %v4268 = vunpack.c.h.b16 %v3754
      %v4269 = vunpack.c.l.b16 %v3755
      %v4270 = vunpack.c.h.b16 %v3755
      %v4271 = vunpack.c.l.b16 %v3756
      %v4272 = vunpack.c.h.b16 %v3756
      %v4273 = vunpack.c.l.b16 %v3757
      %v4274 = vunpack.c.l.b16 %v3758
      %v4275 = vunpack.c.h.b16 %v3758
      %v4276 = vunpack.c.l.b16 %v3759
      %v4277 = vunpack.c.h.b16 %v3759
      %v4278 = vunpack.c.l.b16 %v3760
      %v4279 = vunpack.c.h.b16 %v3760
      %v4280 = vunpack.c.l.b16 %v3761
      %v4281 = vunpack.c.h.b16 %v3761
      %v4282 = vunpack.c.l.b16 %v3762
      %v4283 = vunpack.c.l.b16 %v3763
      %v4284 = vunpack.c.h.b16 %v3763
      %v4285 = vunpack.c.l.b16 %v3764
      %v4286 = vunpack.c.h.b16 %v3764
      %v4287 = vunpack.c.l.b16 %v3765
      %v4288 = vunpack.c.h.b16 %v3765
      %v4289 = vunpack.c.l.b16 %v3766
      %v4290 = vunpack.c.h.b16 %v3766
      %v4291 = vunpack.c.l.b16 %v3767
      %v4292 = vunpack.c.l.b16 %v3768
      %v4293 = vunpack.c.h.b16 %v3768
      %v4294 = vunpack.c.l.b16 %v3769
      %v4295 = vunpack.c.h.b16 %v3769
      %v4296 = vunpack.c.l.b16 %v3770
      %v4297 = vunpack.c.h.b16 %v3770
      %v4298 = vunpack.c.l.b16 %v3771
      %v4299 = vunpack.c.h.b16 %v3771
      %v4300 = vunpack.c.l.b16 %v3772
      %v4301 = vunpack.c.l.b16 %v3773
      %v4302 = vunpack.c.h.b16 %v3773
      %v4303 = vunpack.c.l.b16 %v3774
      %v4304 = vunpack.c.h.b16 %v3774
      %v4305 = vunpack.c.l.b16 %v3775
      %v4306 = vunpack.c.h.b16 %v3775
      %v4307 = vunpack.c.l.b16 %v3776
      %v4308 = vunpack.c.h.b16 %v3776
      %v4309 = vunpack.c.l.b16 %v3777
      %v4310 = vunpack.c.l.b16 %v3778
      %v4311 = vunpack.c.h.b16 %v3778
      %v4312 = vunpack.c.l.b16 %v3779
      %v4313 = vunpack.c.h.b16 %v3779
      %v4314 = vunpack.c.l.b16 %v3780
      %v4315 = vunpack.c.h.b16 %v3780
      %v4316 = vunpack.c.l.b16 %v3781
      %v4317 = vunpack.c.h.b16 %v3781
      %v4318 = vunpack.c.l.b16 %v3782
      %v4319 = vunpack.c.l.b16 %v3783
      %v4320 = vunpack.c.h.b16 %v3783
      %v4321 = vunpack.c.l.b16 %v3784
      %v4322 = vunpack.c.h.b16 %v3784
      %v4323 = vunpack.c.l.b16 %v3785
      %v4324 = vunpack.c.h.b16 %v3785
      %v4325 = vunpack.c.l.b16 %v3786
      %v4326 = vunpack.c.h.b16 %v3786
      %v4327 = vunpack.c.l.b16 %v3787
      %v4328 = vunpack.c.l.b16 %v3788
      %v4329 = vunpack.c.h.b16 %v3788
      %v4330 = vunpack.c.l.b16 %v3789
      %v4331 = vunpack.c.h.b16 %v3789
      %v4332 = vunpack.c.l.b16 %v3790
      %v4333 = vunpack.c.h.b16 %v3790
      %v4334 = vunpack.c.l.b16 %v3791
      %v4335 = vunpack.c.h.b16 %v3791
      %v4336 = vunpack.c.l.b16 %v3792
      %v4337 = vunpack.c.l.b16 %v3793
      %v4338 = vunpack.c.h.b16 %v3793
      %v4339 = vunpack.c.l.b16 %v3794
      %v4340 = vunpack.c.h.b16 %v3794
      %v4341 = vunpack.c.l.b16 %v3795
      %v4342 = vunpack.c.h.b16 %v3795
      %v4343 = vunpack.c.l.b16 %v3796
      %v4344 = vunpack.c.h.b16 %v3796
      %v4345 = vunpack.c.l.b16 %v3797
      %v4346 = vunpack.c.l.b16 %v3798
      %v4347 = vunpack.c.h.b16 %v3798
      %v4348 = vunpack.c.l.b16 %v3799
      %v4349 = vunpack.c.h.b16 %v3799
      %v4350 = vunpack.c.l.b16 %v3800
      %v4351 = vunpack.c.h.b16 %v3800
      %v4352 = vunpack.c.l.b16 %v3801
      %v4353 = vunpack.c.h.b16 %v3801
      %v4354 = vunpack.c.l.b16 %v3802
      %v4355 = vunpack.c.l.b16 %v3803
      %v4356 = vunpack.c.h.b16 %v3803
      %v4357 = vunpack.c.l.b16 %v3804
      %v4358 = vunpack.c.h.b16 %v3804
      %v4359 = vunpack.c.l.b16 %v3805
      %v4360 = vunpack.c.h.b16 %v3805
      %v4361 = vunpack.c.l.b16 %v3806
      %v4362 = vunpack.c.h.b16 %v3806
      %v4363 = vunpack.c.l.b16 %v3807
      %v4364 = vunpack.c.l.b16 %v3808
      %v4365 = vunpack.c.h.b16 %v3808
      %v4366 = vunpack.c.l.b16 %v3809
      %v4367 = vunpack.c.h.b16 %v3809
      %v4368 = vunpack.c.l.b16 %v3810
      %v4369 = vunpack.c.h.b16 %v3810
      %v4370 = vunpack.c.l.b16 %v3811
      %v4371 = vunpack.c.h.b16 %v3811
      %v4372 = vunpack.c.l.b16 %v3812
      %v4373 = vunpack.c.l.b16 %v3813
      %v4374 = vunpack.c.h.b16 %v3813
      %v4375 = vunpack.c.l.b16 %v3814
      %v4376 = vunpack.c.h.b16 %v3814
      %v4377 = vunpack.c.l.b16 %v3815
      %v4378 = vunpack.c.h.b16 %v3815
      %v4379 = vunpack.c.l.b16 %v3816
      %v4380 = vunpack.c.h.b16 %v3816
      %v4381 = vunpack.c.l.b16 %v3817
      %v4382 = vunpack.c.l.b16 %v3818
      %v4383 = vunpack.c.h.b16 %v3818
      %v4384 = vunpack.c.l.b16 %v3819
      %v4385 = vunpack.c.h.b16 %v3819
      %v4386 = vunpack.c.l.b16 %v3820
      %v4387 = vunpack.c.h.b16 %v3820
      %v4388 = vunpack.c.l.b16 %v3821
      %v4389 = vunpack.c.h.b16 %v3821
      %v4390 = vunpack.c.l.b16 %v3822
      %v4391 = vunpack.c.l.b16 %v3823
      %v4392 = vunpack.c.h.b16 %v3823
      %v4393 = vunpack.c.l.b16 %v3824
      %v4394 = vunpack.c.h.b16 %v3824
      %v4395 = vunpack.c.l.b16 %v3825
      %v4396 = vunpack.c.h.b16 %v3825
      %v4397 = vunpack.c.l.b16 %v3826
      %v4398 = vunpack.c.h.b16 %v3826
      %v4399 = vunpack.c.l.b16 %v3827
      %v4400 = vunpack.c.l.b16 %v3828
      %v4401 = vunpack.c.h.b16 %v3828
      %v4402 = vunpack.c.l.b16 %v3829
      %v4403 = vunpack.c.h.b16 %v3829
      %v4404 = vunpack.c.l.b16 %v3830
      %v4405 = vunpack.c.h.b16 %v3830
      %v4406 = vunpack.c.l.b16 %v3831
      %v4407 = vunpack.c.h.b16 %v3831
      %v4408 = vunpack.c.l.b16 %v3832
      %v4409 = vunpack.c.l.b16 %v3833
      %v4410 = vunpack.c.h.b16 %v3833
      %v4411 = vunpack.c.l.b16 %v3834
      %v4412 = vunpack.c.h.b16 %v3834
      %v4413 = vunpack.c.l.b16 %v3835
      %v4414 = vunpack.c.h.b16 %v3835
      %v4415 = vunpack.c.l.b16 %v3836
      %v4416 = vunpack.c.h.b16 %v3836
      %v4417 = vunpack.c.l.b16 %v3837
      %v4418 = vunpack.c.l.b16 %v3838
      %v4419 = vunpack.c.h.b16 %v3838
      %v4420 = vunpack.c.l.b16 %v3839
      %v4421 = vunpack.c.h.b16 %v3839
      %v4422 = vunpack.c.l.b16 %v3840
      %v4423 = vunpack.c.h.b16 %v3840
      %v4424 = vunpack.c.l.b16 %v3841
      %v4425 = vunpack.c.h.b16 %v3841
      %v4426 = vunpack.c.l.b16 %v3842
      %v4427 = vunpack.c.l.b16 %v3843
      %v4428 = vunpack.c.h.b16 %v3843
      %v4429 = vunpack.c.l.b16 %v3844
      %v4430 = vunpack.c.h.b16 %v3844
      %v4431 = vunpack.c.l.b16 %v3845
      %v4432 = vunpack.c.h.b16 %v3845
      %v4433 = vunpack.c.l.b16 %v3846
      %v4434 = vunpack.c.h.b16 %v3846
      %v4435 = vunpack.c.l.b16 %v3847
      %v4436 = vunpack.c.l.b16 %v3848
      %v4437 = vunpack.c.h.b16 %v3848
      %v4438 = vunpack.c.l.b16 %v3849
      %v4439 = vunpack.c.h.b16 %v3849
      %v4440 = vunpack.c.l.b16 %v3850
      %v4441 = vunpack.c.h.b16 %v3850
      %v4442 = vunpack.c.l.b16 %v3851
      %v4443 = vunpack.c.h.b16 %v3851
      %v4444 = vunpack.c.l.b16 %v3852
      %v4445 = vunpack.c.l.b16 %v3853
      %v4446 = vunpack.c.h.b16 %v3853
      %v4447 = vunpack.c.l.b16 %v3854
      %v4448 = vunpack.c.h.b16 %v3854
      %v4449 = vunpack.c.l.b16 %v3855
      %v4450 = vunpack.c.h.b16 %v3855
      %v4451 = vunpack.c.l.b16 %v3856
      %v4452 = vunpack.c.h.b16 %v3856
      %v4453 = vunpack.c.l.b16 %v3857
      %v4454 = vunpack.c.l.b16 %v3858
      %v4455 = vunpack.c.h.b16 %v3858
      %v4456 = vunpack.c.l.b16 %v3859
      %v4457 = vunpack.c.h.b16 %v3859
      %v4458 = vunpack.c.l.b16 %v3860
      %v4459 = vunpack.c.h.b16 %v3860
      %v4460 = vunpack.c.l.b16 %v3861
      %v4461 = vunpack.c.h.b16 %v3861
      %v4462 = vunpack.c.l.b16 %v3862
      %v4463 = vunpack.c.l.b16 %v3863
      %v4464 = vunpack.c.h.b16 %v3863
      %v4465 = vunpack.c.l.b16 %v3864
      %v4466 = vunpack.c.h.b16 %v3864
      %v4467 = vunpack.c.l.b16 %v3865
      %v4468 = vunpack.c.h.b16 %v3865
      %v4469 = vunpack.c.l.b16 %v3866
      %v4470 = vunpack.c.h.b16 %v3866
      %v4471 = vunpack.c.l.b16 %v3867
      %v4472 = vunpack.c.l.b16 %v3868
      %v4473 = vunpack.c.h.b16 %v3868
      %v4474 = vunpack.c.l.b16 %v3869
      %v4475 = vunpack.c.h.b16 %v3869
      %v4476 = vunpack.c.l.b16 %v3870
      %v4477 = vunpack.c.h.b16 %v3870
      %v4478 = vunpack.c.l.b16 %v3871
      %v4479 = vunpack.c.h.b16 %v3871
      %v4480 = vunpack.c.l.b16 %v3872
      %v4481 = vunpack.c.l.b16 %v3873
      %v4482 = vunpack.c.h.b16 %v3873
      %v4483 = vunpack.c.l.b16 %v3874
      %v4484 = vunpack.c.h.b16 %v3874
      %v4485 = vunpack.c.l.b16 %v3875
      %v4486 = vunpack.c.h.b16 %v3875
      %v4487 = vunpack.c.l.b16 %v3876
      %v4488 = vunpack.c.h.b16 %v3876
      %v4489 = vunpack.c.l.b16 %v3877
      %v4490 = vunpack.c.l.b16 %v3878
      %v4491 = vunpack.c.h.b16 %v3878
      %v4492 = vunpack.c.l.b16 %v3879
      %v4493 = vunpack.c.h.b16 %v3879
      %v4494 = vunpack.c.l.b16 %v3880
      %v4495 = vunpack.c.h.b16 %v3880
      %v4496 = vunpack.c.l.b16 %v3881
      %v4497 = vunpack.c.h.b16 %v3881
      %v4498 = vunpack.c.l.b16 %v3882
      %v4499 = vunpack.c.l.b16 %v3883
      %v4500 = vunpack.c.h.b16 %v3883
      %v4501 = vunpack.c.l.b16 %v3884
      %v4502 = vunpack.c.h.b16 %v3884
      %v4503 = vunpack.c.l.b16 %v3885
      %v4504 = vunpack.c.h.b16 %v3885
      %v4505 = vunpack.c.l.b16 %v3886
      %v4506 = vunpack.c.h.b16 %v3886
      %v4507 = vunpack.c.l.b16 %v3887
      %v4508 = vunpack.c.l.b16 %v3888
      %v4509 = vunpack.c.h.b16 %v3888
      %v4510 = vunpack.c.l.b16 %v3889
      %v4511 = vunpack.c.h.b16 %v3889
      %v4512 = vunpack.c.l.b16 %v3890
      %v4513 = vunpack.c.h.b16 %v3890
      %v4514 = vunpack.c.l.b16 %v3891
      %v4515 = vunpack.c.h.b16 %v3891
      %v4516 = vunpack.c.l.b16 %v3892
      %v4517 = vunpack.c.l.b16 %v3893
      %v4518 = vunpack.c.h.b16 %v3893
      %v4519 = vunpack.c.l.b16 %v3894
      %v4520 = vunpack.c.h.b16 %v3894
      %v4521 = vunpack.c.l.b16 %v3895
      %v4522 = vunpack.c.h.b16 %v3895
      %v4523 = vunpack.c.l.b16 %v3896
      %v4524 = vunpack.c.h.b16 %v3896
      %v4525 = vunpack.c.l.b16 %v3897
      %v4526 = vunpack.c.l.b16 %v3898
      %v4527 = vunpack.c.h.b16 %v3898
      %v4528 = vunpack.c.l.b16 %v3899
      %v4529 = vunpack.c.h.b16 %v3899
      %v4530 = vunpack.c.l.b16 %v3900
      %v4531 = vunpack.c.h.b16 %v3900
      %v4532 = vunpack.c.l.b16 %v3901
      %v4533 = vunpack.c.h.b16 %v3901
      %v4534 = vunpack.c.l.b16 %v3902
      %v4535 = vunpack.c.l.b16 %v3903
      %v4536 = vunpack.c.h.b16 %v3903
      %v4537 = vunpack.c.l.b16 %v3904
      %v4538 = vunpack.c.h.b16 %v3904
      %v4539 = vunpack.c.l.b16 %v3905
      %v4540 = vunpack.c.h.b16 %v3905
      %v4541 = vunpack.c.l.b16 %v3906
      %v4542 = vunpack.c.h.b16 %v3906
      %v4543 = vunpack.c.l.b16 %v3907
      %v4544 = vunpack.c.l.b16 %v3908
      %v4545 = vunpack.c.h.b16 %v3908
      %v4546 = vunpack.c.l.b16 %v3909
      %v4547 = vunpack.c.h.b16 %v3909
      %v4548 = vunpack.c.l.b16 %v3910
      %v4549 = vunpack.c.h.b16 %v3910
      %v4550 = vunpack.c.l.b16 %v3911
      %v4551 = vunpack.c.h.b16 %v3911
      %v4552 = vunpack.c.l.b16 %v3912
      %v4553 = vunpack.c.l.b16 %v3913
      %v4554 = vunpack.c.h.b16 %v3913
      %v4555 = vunpack.c.l.b16 %v3914
      %v4556 = vunpack.c.h.b16 %v3914
      %v4557 = vunpack.c.l.b16 %v3915
      %v4558 = vunpack.c.h.b16 %v3915
      %v4559 = vunpack.c.l.b16 %v3916
      %v4560 = vunpack.c.h.b16 %v3916
      %v4561 = vunpack.c.l.b16 %v3917
      %v4562 = vunpack.c.l.b16 %v3918
      %v4563 = vunpack.c.h.b16 %v3918
      %v4564 = vunpack.c.l.b16 %v3919
      %v4565 = vunpack.c.h.b16 %v3919
      %v4566 = vunpack.c.l.b16 %v3920
      %v4567 = vunpack.c.h.b16 %v3920
      %v4568 = vunpack.c.l.b16 %v3921
      %v4569 = vunpack.c.h.b16 %v3921
      %v4570 = vunpack.c.l.b16 %v3922
      %v4571 = vunpack.c.l.b16 %v3923
      %v4572 = vunpack.c.h.b16 %v3923
      %v4573 = vunpack.c.l.b16 %v3924
      %v4574 = vunpack.c.h.b16 %v3924
      %v4575 = vunpack.c.l.b16 %v3925
      %v4576 = vunpack.c.h.b16 %v3925
      %v4577 = vunpack.c.l.b16 %v3926
      %v4578 = vunpack.c.h.b16 %v3926
      %v4579 = vunpack.c.l.b16 %v3927
      %v4580 = vunpack.c.l.b16 %v3928
      %v4581 = vunpack.c.h.b16 %v3928
      %v4582 = vunpack.c.l.b16 %v3929
      %v4583 = vunpack.c.h.b16 %v3929
      %v4584 = vunpack.c.l.b16 %v3930
      %v4585 = vunpack.c.h.b16 %v3930
      %v4586 = vunpack.c.l.b16 %v3931
      %v4587 = vunpack.c.h.b16 %v3931
      %v4588 = vunpack.c.l.b16 %v3932
      %v4589 = vunpack.c.l.b16 %v3933
      %v4590 = vunpack.c.h.b16 %v3933
      %v4591 = vunpack.c.l.b16 %v3934
      %v4592 = vunpack.c.h.b16 %v3934
      %v4593 = vunpack.c.l.b16 %v3935
      %v4594 = vunpack.c.h.b16 %v3935
      %v4595 = vunpack.c.l.b16 %v3936
      %v4596 = vunpack.c.h.b16 %v3936
      %v4597 = vunpack.c.l.b16 %v3937
      %v4598 = vunpack.c.l.b16 %v3938
      %v4599 = vunpack.c.h.b16 %v3938
      %v4600 = vunpack.c.l.b16 %v3939
      %v4601 = vunpack.c.h.b16 %v3939
      %v4602 = vunpack.c.l.b16 %v3940
      %v4603 = vunpack.c.h.b16 %v3940
      %v4604 = vunpack.c.l.b16 %v3941
      %v4605 = vunpack.c.h.b16 %v3941
      %v4606 = vunpack.c.l.b16 %v3942
      %v4607 = vunpack.c.l.b16 %v3943
      %v4608 = vunpack.c.h.b16 %v3943
      %v4609 = vunpack.c.l.b16 %v3944
      %v4610 = vunpack.c.h.b16 %v3944
      %v4611 = vunpack.c.l.b16 %v3945
      %v4612 = vunpack.c.h.b16 %v3945
      %v4613 = vunpack.c.l.b16 %v3946
      %v4614 = vunpack.c.h.b16 %v3946
      %v4615 = vunpack.c.l.b16 %v3947
      %v4616 = vunpack.c.l.b16 %v3948
      %v4617 = vunpack.c.h.b16 %v3948
      %v4618 = vunpack.c.l.b16 %v3949
      %v4619 = vunpack.c.h.b16 %v3949
      %v4620 = vunpack.c.l.b16 %v3950
      %v4621 = vunpack.c.h.b16 %v3950
      %v4622 = vunpack.c.l.b16 %v3951
      %v4623 = vunpack.c.h.b16 %v3951
      %v4624 = vunpack.c.l.b16 %v3952
      %v4625 = vpack.c.b16 %v4202, %v4193
      %v4626 = vpack.c.b16 %v4203, %v4194
      %v4627 = vpack.c.b16 %v4204, %v4195
      %v4628 = vpack.c.b16 %v4205, %v4196
      %v4629 = vpack.c.b16 %v4206, %v4197
      %v4630 = vpack.c.b16 %v4207, %v4198
      %v4631 = vpack.c.b16 %v4208, %v4199
      %v4632 = vpack.c.b16 %v4209, %v4200
      %v4633 = vpack.c.b16 %v4210, %v4201
      %v4634 = vpack.c.b16 %v4220, %v4211
      %v4635 = vpack.c.b16 %v4221, %v4212
      %v4636 = vpack.c.b16 %v4222, %v4213
      %v4637 = vpack.c.b16 %v4223, %v4214
      %v4638 = vpack.c.b16 %v4224, %v4215
      %v4639 = vpack.c.b16 %v4225, %v4216
      %v4640 = vpack.c.b16 %v4226, %v4217
      %v4641 = vpack.c.b16 %v4227, %v4218
      %v4642 = vpack.c.b16 %v4228, %v4219
      %v4643 = vpack.c.b16 %v4238, %v4229
      %v4644 = vpack.c.b16 %v4239, %v4230
      %v4645 = vpack.c.b16 %v4240, %v4231
      %v4646 = vpack.c.b16 %v4241, %v4232
      %v4647 = vpack.c.b16 %v4242, %v4233
      %v4648 = vpack.c.b16 %v4243, %v4234
      %v4649 = vpack.c.b16 %v4244, %v4235
      %v4650 = vpack.c.b16 %v4245, %v4236
      %v4651 = vpack.c.b16 %v4246, %v4237
      %v4652 = vpack.c.b16 %v4256, %v4247
      %v4653 = vpack.c.b16 %v4257, %v4248
      %v4654 = vpack.c.b16 %v4258, %v4249
      %v4655 = vpack.c.b16 %v4259, %v4250
      %v4656 = vpack.c.b16 %v4260, %v4251
      %v4657 = vpack.c.b16 %v4261, %v4252
      %v4658 = vpack.c.b16 %v4262, %v4253
      %v4659 = vpack.c.b16 %v4263, %v4254
      %v4660 = vpack.c.b16 %v4264, %v4255
      %v4661 = vpack.c.b16 %v4274, %v4265
      %v4662 = vpack.c.b16 %v4275, %v4266
      %v4663 = vpack.c.b16 %v4276, %v4267
      %v4664 = vpack.c.b16 %v4277, %v4268
      %v4665 = vpack.c.b16 %v4278, %v4269
      %v4666 = vpack.c.b16 %v4279, %v4270
      %v4667 = vpack.c.b16 %v4280, %v4271
      %v4668 = vpack.c.b16 %v4281, %v4272
      %v4669 = vpack.c.b16 %v4282, %v4273
      %v4670 = vpack.c.b16 %v4292, %v4283
      %v4671 = vpack.c.b16 %v4293, %v4284
      %v4672 = vpack.c.b16 %v4294, %v4285
      %v4673 = vpack.c.b16 %v4295, %v4286
      %v4674 = vpack.c.b16 %v4296, %v4287
      %v4675 = vpack.c.b16 %v4297, %v4288
      %v4676 = vpack.c.b16 %v4298, %v4289
      %v4677 = vpack.c.b16 %v4299, %v4290
      %v4678 = vpack.c.b16 %v4300, %v4291
      %v4679 = vpack.c.b16 %v4310, %v4301
      %v4680 = vpack.c.b16 %v4311, %v4302
      %v4681 = vpack.c.b16 %v4312, %v4303
      %v4682 = vpack.c.b16 %v4313, %v4304
      %v4683 = vpack.c.b16 %v4314, %v4305
      %v4684 = vpack.c.b16 %v4315, %v4306
      %v4685 = vpack.c.b16 %v4316, %v4307
      %v4686 = vpack.c.b16 %v4317, %v4308
      %v4687 = vpack.c.b16 %v4318, %v4309
      %v4688 = vpack.c.b16 %v4328, %v4319
      %v4689 = vpack.c.b16 %v4329, %v4320
      %v4690 = vpack.c.b16 %v4330, %v4321
      %v4691 = vpack.c.b16 %v4331, %v4322
      %v4692 = vpack.c.b16 %v4332, %v4323
      %v4693 = vpack.c.b16 %v4333, %v4324
      %v4694 = vpack.c.b16 %v4334, %v4325
      %v4695 = vpack.c.b16 %v4335, %v4326
      %v4696 = vpack.c.b16 %v4336, %v4327
      %v4697 = vpack.c.b16 %v4346, %v4337
      %v4698 = vpack.c.b16 %v4347, %v4338
      %v4699 = vpack.c.b16 %v4348, %v4339
      %v4700 = vpack.c.b16 %v4349, %v4340
      %v4701 = vpack.c.b16 %v4350, %v4341
      %v4702 = vpack.c.b16 %v4351, %v4342
      %v4703 = vpack.c.b16 %v4352, %v4343
      %v4704 = vpack.c.b16 %v4353, %v4344
      %v4705 = vpack.c.b16 %v4354, %v4345
      %v4706 = vpack.c.b16 %v4364, %v4355
      %v4707 = vpack.c.b16 %v4365, %v4356
      %v4708 = vpack.c.b16 %v4366, %v4357
      %v4709 = vpack.c.b16 %v4367, %v4358
      %v4710 = vpack.c.b16 %v4368, %v4359
      %v4711 = vpack.c.b16 %v4369, %v4360
      %v4712 = vpack.c.b16 %v4370, %v4361
      %v4713 = vpack.c.b16 %v4371, %v4362
      %v4714 = vpack.c.b16 %v4372, %v4363
      %v4715 = vpack.c.b16 %v4382, %v4373
      %v4716 = vpack.c.b16 %v4383, %v4374
      %v4717 = vpack.c.b16 %v4384, %v4375
      %v4718 = vpack.c.b16 %v4385, %v4376
      %v4719 = vpack.c.b16 %v4386, %v4377
      %v4720 = vpack.c.b16 %v4387, %v4378
      %v4721 = vpack.c.b16 %v4388, %v4379
      %v4722 = vpack.c.b16 %v4389, %v4380
      %v4723 = vpack.c.b16 %v4390, %v4381
      %v4724 = vpack.c.b16 %v4400, %v4391
      %v4725 = vpack.c.b16 %v4401, %v4392
      %v4726 = vpack.c.b16 %v4402, %v4393
      %v4727 = vpack.c.b16 %v4403, %v4394
      %v4728 = vpack.c.b16 %v4404, %v4395
      %v4729 = vpack.c.b16 %v4405, %v4396
      %v4730 = vpack.c.b16 %v4406, %v4397
      %v4731 = vpack.c.b16 %v4407, %v4398
      %v4732 = vpack.c.b16 %v4408, %v4399
      %v4733 = vpack.c.b16 %v4418, %v4409
      %v4734 = vpack.c.b16 %v4419, %v4410
      %v4735 = vpack.c.b16 %v4420, %v4411
      %v4736 = vpack.c.b16 %v4421, %v4412
      %v4737 = vpack.c.b16 %v4422, %v4413
      %v4738 = vpack.c.b16 %v4423, %v4414
      %v4739 = vpack.c.b16 %v4424, %v4415
      %v4740 = vpack.c.b16 %v4425, %v4416
      %v4741 = vpack.c.b16 %v4426, %v4417
      %v4742 = vpack.c.b16 %v4436, %v4427
      %v4743 = vpack.c.b16 %v4437, %v4428
      %v4744 = vpack.c.b16 %v4438, %v4429
      %v4745 = vpack.c.b16 %v4439, %v4430
      %v4746 = vpack.c.b16 %v4440, %v4431
      %v4747 = vpack.c.b16 %v4441, %v4432
      %v4748 = vpack.c.b16 %v4442, %v4433
      %v4749 = vpack.c.b16 %v4443, %v4434
      %v4750 = vpack.c.b16 %v4444, %v4435
      %v4751 = vpack.c.b16 %v4454, %v4445
      %v4752 = vpack.c.b16 %v4455, %v4446
      %v4753 = vpack.c.b16 %v4456, %v4447
      %v4754 = vpack.c.b16 %v4457, %v4448
      %v4755 = vpack.c.b16 %v4458, %v4449
      %v4756 = vpack.c.b16 %v4459, %v4450
      %v4757 = vpack.c.b16 %v4460, %v4451
      %v4758 = vpack.c.b16 %v4461, %v4452
      %v4759 = vpack.c.b16 %v4462, %v4453
      %v4760 = vpack.c.b16 %v4472, %v4463
      %v4761 = vpack.c.b16 %v4473, %v4464
      %v4762 = vpack.c.b16 %v4474, %v4465
      %v4763 = vpack.c.b16 %v4475, %v4466
      %v4764 = vpack.c.b16 %v4476, %v4467
      %v4765 = vpack.c.b16 %v4477, %v4468
      %v4766 = vpack.c.b16 %v4478, %v4469
      %v4767 = vpack.c.b16 %v4479, %v4470
      %v4768 = vpack.c.b16 %v4480, %v4471
      %v4769 = vpack.c.b16 %v4490, %v4481
      %v4770 = vpack.c.b16 %v4491, %v4482
      %v4771 = vpack.c.b16 %v4492, %v4483
      %v4772 = vpack.c.b16 %v4493, %v4484
      %v4773 = vpack.c.b16 %v4494, %v4485
      %v4774 = vpack.c.b16 %v4495, %v4486
      %v4775 = vpack.c.b16 %v4496, %v4487
      %v4776 = vpack.c.b16 %v4497, %v4488
      %v4777 = vpack.c.b16 %v4498, %v4489
      %v4778 = vpack.c.b16 %v4508, %v4499
      %v4779 = vpack.c.b16 %v4509, %v4500
      %v4780 = vpack.c.b16 %v4510, %v4501
      %v4781 = vpack.c.b16 %v4511, %v4502
      %v4782 = vpack.c.b16 %v4512, %v4503
      %v4783 = vpack.c.b16 %v4513, %v4504
      %v4784 = vpack.c.b16 %v4514, %v4505
      %v4785 = vpack.c.b16 %v4515, %v4506
      %v4786 = vpack.c.b16 %v4516, %v4507
      %v4787 = vpack.c.b16 %v4526, %v4517
      %v4788 = vpack.c.b16 %v4527, %v4518
      %v4789 = vpack.c.b16 %v4528, %v4519
      %v4790 = vpack.c.b16 %v4529, %v4520
      %v4791 = vpack.c.b16 %v4530, %v4521
      %v4792 = vpack.c.b16 %v4531, %v4522
      %v4793 = vpack.c.b16 %v4532, %v4523
      %v4794 = vpack.c.b16 %v4533, %v4524
      %v4795 = vpack.c.b16 %v4534, %v4525
      %v4796 = vpack.c.b16 %v4544, %v4535
      %v4797 = vpack.c.b16 %v4545, %v4536
      %v4798 = vpack.c.b16 %v4546, %v4537
      %v4799 = vpack.c.b16 %v4547, %v4538
      %v4800 = vpack.c.b16 %v4548, %v4539
      %v4801 = vpack.c.b16 %v4549, %v4540
      %v4802 = vpack.c.b16 %v4550, %v4541
      %v4803 = vpack.c.b16 %v4551, %v4542
      %v4804 = vpack.c.b16 %v4552, %v4543
      %v4805 = vpack.c.b16 %v4562, %v4553
      %v4806 = vpack.c.b16 %v4563, %v4554
      %v4807 = vpack.c.b16 %v4564, %v4555
      %v4808 = vpack.c.b16 %v4565, %v4556
      %v4809 = vpack.c.b16 %v4566, %v4557
      %v4810 = vpack.c.b16 %v4567, %v4558
      %v4811 = vpack.c.b16 %v4568, %v4559
      %v4812 = vpack.c.b16 %v4569, %v4560
      %v4813 = vpack.c.b16 %v4570, %v4561
      %v4814 = vpack.c.b16 %v4580, %v4571
      %v4815 = vpack.c.b16 %v4581, %v4572
      %v4816 = vpack.c.b16 %v4582, %v4573
      %v4817 = vpack.c.b16 %v4583, %v4574
      %v4818 = vpack.c.b16 %v4584, %v4575
      %v4819 = vpack.c.b16 %v4585, %v4576
      %v4820 = vpack.c.b16 %v4586, %v4577
      %v4821 = vpack.c.b16 %v4587, %v4578
      %v4822 = vpack.c.b16 %v4588, %v4579
      %v4823 = vpack.c.b16 %v4598, %v4589
      %v4824 = vpack.c.b16 %v4599, %v4590
      %v4825 = vpack.c.b16 %v4600, %v4591
      %v4826 = vpack.c.b16 %v4601, %v4592
      %v4827 = vpack.c.b16 %v4602, %v4593
      %v4828 = vpack.c.b16 %v4603, %v4594
      %v4829 = vpack.c.b16 %v4604, %v4595
      %v4830 = vpack.c.b16 %v4605, %v4596
      %v4831 = vpack.c.b16 %v4606, %v4597
      %v4832 = vpack.c.b16 %v4616, %v4607
      %v4833 = vpack.c.b16 %v4617, %v4608
      %v4834 = vpack.c.b16 %v4618, %v4609
      %v4835 = vpack.c.b16 %v4619, %v4610
      %v4836 = vpack.c.b16 %v4620, %v4611
      %v4837 = vpack.c.b16 %v4621, %v4612
      %v4838 = vpack.c.b16 %v4622, %v4613
      %v4839 = vpack.c.b16 %v4623, %v4614
      %v4840 = vpack.c.b16 %v4624, %v4615
      %5057 = vmatprep.subr.bf16.mxu0 0
      %5058 = vmatpush1.bf16.msra.mxu0 %v3641
      %5059 = vmatprep.subr.bf16.mxu0 0
      %5060 = vmatpush1.bf16.msra.mxu0 %v3642
      %5061 = vmatprep.subr.bf16.mxu0 0
      %5062 = vmatpush1.bf16.msra.mxu0 %v3643
      %5063 = vmatprep.subr.bf16.mxu0 0
      %5064 = vmatpush1.bf16.msra.mxu0 %v3644
      %5065 = vmatprep.subr.bf16.mxu0 0
      %5066 = vmatpush1.bf16.msra.mxu0 %v3645
      %5067 = vmatprep.subr.bf16.mxu0 0
      %5068 = vmatpush1.bf16.msra.mxu0 %v3646
      %5069 = vmatprep.subr.bf16.mxu0 0
      %5070 = vmatpush1.bf16.msra.mxu0 %v3647
      %5071 = vmatprep.subr.bf16.mxu0 0
      %5072 = vmatpush1.bf16.msra.mxu0 %v3648
      %5073 = vmatprep.subr.bf16.mxu0 0
      %5074 = vmatpush1.bf16.msra.mxu0 %v3649
      %5075 = vmatprep.subr.bf16.mxu0 0
      %5076 = vmatpush1.bf16.msra.mxu0 %v3650
      %5077 = vmatprep.subr.bf16.mxu0 0
      %5078 = vmatpush1.bf16.msra.mxu0 %v3651
      %5079 = vmatprep.subr.bf16.mxu0 0
      %5080 = vmatpush1.bf16.msra.mxu0 %v3652
      %5081 = vmatprep.subr.bf16.mxu0 0
      %5082 = vmatpush1.bf16.msra.mxu0 %v3653
      %5083 = vmatprep.subr.bf16.mxu0 0
      %5084 = vmatpush1.bf16.msra.mxu0 %v3654
      %5085 = vmatprep.subr.bf16.mxu0 0
      %5086 = vmatpush1.bf16.msra.mxu0 %v3655
      %5087 = vmatprep.subr.bf16.mxu0 0
      %5088 = vmatpush1.bf16.msra.mxu0 %v3656
      %5089 = vmatprep.mubr.bf16.mxu0 %v4626
      %5090 = vmatmul.mubr.bf16.gmra.mrb[0].mxu0 %v4625
      %v5091 = vpop.f32.mrb[0].mxu0
      %v5092 = vadd.f32 0.0, %v5091
      %v5093 = vpop.f32.mrb[0].mxu0
      %v5094 = vpop.f32.mrb[0].mxu0
      %v5095 = vadd.f32 0.0, %v5094
      %v5096 = vpop.f32.mrb[0].mxu0
      %5097 = vmatprep.mubr.bf16.mxu0 %v4635
      %5098 = vmatmul.mubr.bf16.gmra.mrb[0].mxu0 %v4634
      %v5099 = vpop.f32.mrb[0].mxu0
      %v5100 = vadd.f32 0.0, %v5099
      %v5101 = vpop.f32.mrb[0].mxu0
      %v5102 = vpop.f32.mrb[0].mxu0
      %v5103 = vadd.f32 0.0, %v5102
      %v5104 = vpop.f32.mrb[0].mxu0
      %5105 = vmatprep.mubr.bf16.mxu0 %v4644
      %5106 = vmatmul.mubr.bf16.gmra.mrb[0].mxu0 %v4643
      %v5107 = vpop.f32.mrb[0].mxu0
      %v5108 = vadd.f32 0.0, %v5107
      %v5109 = vpop.f32.mrb[0].mxu0
      %v5110 = vpop.f32.mrb[0].mxu0
      %v5111 = vadd.f32 0.0, %v5110
      %v5112 = vpop.f32.mrb[0].mxu0
      %5113 = vmatprep.mubr.bf16.mxu0 %v4653
      %5114 = vmatmul.mubr.bf16.gmra.mrb[0].mxu0 %v4652
      %v5115 = vpop.f32.mrb[0].mxu0
      %v5116 = vadd.f32 0.0, %v5115
      %v5117 = vpop.f32.mrb[0].mxu0
      %v5118 = vpop.f32.mrb[0].mxu0
      %v5119 = vadd.f32 0.0, %v5118
      %v5120 = vpop.f32.mrb[0].mxu0
      %5121 = vmatprep.mubr.bf16.mxu0 %v4662
      %5122 = vmatmul.mubr.bf16.gmra.mrb[0].mxu0 %v4661
      %v5123 = vpop.f32.mrb[0].mxu0
      %v5124 = vadd.f32 0.0, %v5123
      %v5125 = vpop.f32.mrb[0].mxu0
      %v5126 = vpop.f32.mrb[0].mxu0
      %v5127 = vadd.f32 0.0, %v5126
      %v5128 = vpop.f32.mrb[0].mxu0
      %5129 = vmatprep.mubr.bf16.mxu0 %v4671
      %5130 = vmatmul.mubr.bf16.gmra.mrb[0].mxu0 %v4670
      %v5131 = vpop.f32.mrb[0].mxu0
      %v5132 = vadd.f32 0.0, %v5131
      %v5133 = vpop.f32.mrb[0].mxu0
      %v5134 = vpop.f32.mrb[0].mxu0
      %v5135 = vadd.f32 0.0, %v5134
      %v5136 = vpop.f32.mrb[0].mxu0
      %5137 = vmatprep.mubr.bf16.mxu0 %v4680
      %5138 = vmatmul.mubr.bf16.gmra.mrb[0].mxu0 %v4679
      %v5139 = vpop.f32.mrb[0].mxu0
      %v5140 = vadd.f32 0.0, %v5139
      %v5141 = vpop.f32.mrb[0].mxu0
      %v5142 = vpop.f32.mrb[0].mxu0
      %v5143 = vadd.f32 0.0, %v5142
      %v5144 = vpop.f32.mrb[0].mxu0
      %5145 = vmatprep.mubr.bf16.mxu0 %v4689
      %5146 = vmatmul.mubr.bf16.gmra.mrb[0].mxu0 %v4688
      %v5147 = vpop.f32.mrb[0].mxu0
      %v5148 = vadd.f32 0.0, %v5147
      %v5149 = vpop.f32.mrb[0].mxu0
      %v5150 = vpop.f32.mrb[0].mxu0
      %v5151 = vadd.f32 0.0, %v5150
      %v5152 = vpop.f32.mrb[0].mxu0
      %5153 = vmatprep.mubr.bf16.mxu0 %v4698
      %5154 = vmatmul.mubr.bf16.gmra.mrb[0].mxu0 %v4697
      %v5155 = vpop.f32.mrb[0].mxu0
      %v5156 = vadd.f32 0.0, %v5155
      %v5157 = vpop.f32.mrb[0].mxu0
      %v5158 = vpop.f32.mrb[0].mxu0
      %v5159 = vadd.f32 0.0, %v5158
      %v5160 = vpop.f32.mrb[0].mxu0
      %5161 = vmatprep.mubr.bf16.mxu0 %v4707
      %5162 = vmatmul.mubr.bf16.gmra.mrb[0].mxu0 %v4706
      %v5163 = vpop.f32.mrb[0].mxu0
      %v5164 = vadd.f32 0.0, %v5163
      %v5165 = vpop.f32.mrb[0].mxu0
      %v5166 = vpop.f32.mrb[0].mxu0
      %v5167 = vadd.f32 0.0, %v5166
      %v5168 = vpop.f32.mrb[0].mxu0
      %5169 = vmatprep.mubr.bf16.mxu0 %v4716
      %5170 = vmatmul.mubr.bf16.gmra.mrb[0].mxu0 %v4715
      %v5171 = vpop.f32.mrb[0].mxu0
      %v5172 = vadd.f32 0.0, %v5171
      %v5173 = vpop.f32.mrb[0].mxu0
      %v5174 = vpop.f32.mrb[0].mxu0
      %v5175 = vadd.f32 0.0, %v5174
      %v5176 = vpop.f32.mrb[0].mxu0
      %5177 = vmatprep.mubr.bf16.mxu0 %v4725
      %5178 = vmatmul.mubr.bf16.gmra.mrb[0].mxu0 %v4724
      %v5179 = vpop.f32.mrb[0].mxu0
      %v5180 = vadd.f32 0.0, %v5179
      %v5181 = vpop.f32.mrb[0].mxu0
      %v5182 = vpop.f32.mrb[0].mxu0
      %v5183 = vadd.f32 0.0, %v5182
      %v5184 = vpop.f32.mrb[0].mxu0
      %5185 = vmatprep.mubr.bf16.mxu0 %v4734
      %5186 = vmatmul.mubr.bf16.gmra.mrb[0].mxu0 %v4733
      %v5187 = vpop.f32.mrb[0].mxu0
      %v5188 = vadd.f32 0.0, %v5187
      %v5189 = vpop.f32.mrb[0].mxu0
      %v5190 = vpop.f32.mrb[0].mxu0
      %v5191 = vadd.f32 0.0, %v5190
      %v5192 = vpop.f32.mrb[0].mxu0
      %5193 = vmatprep.mubr.bf16.mxu0 %v4743
      %5194 = vmatmul.mubr.bf16.gmra.mrb[0].mxu0 %v4742
      %v5195 = vpop.f32.mrb[0].mxu0
      %v5196 = vadd.f32 0.0, %v5195
      %v5197 = vpop.f32.mrb[0].mxu0
      %v5198 = vpop.f32.mrb[0].mxu0
      %v5199 = vadd.f32 0.0, %v5198
      %v5200 = vpop.f32.mrb[0].mxu0
      %5201 = vmatprep.mubr.bf16.mxu0 %v4752
      %5202 = vmatmul.mubr.bf16.gmra.mrb[0].mxu0 %v4751
      %v5203 = vpop.f32.mrb[0].mxu0
      %v5204 = vadd.f32 0.0, %v5203
      %v5205 = vpop.f32.mrb[0].mxu0
      %v5206 = vpop.f32.mrb[0].mxu0
      %v5207 = vadd.f32 0.0, %v5206
      %v5208 = vpop.f32.mrb[0].mxu0
      %5209 = vmatprep.mubr.bf16.mxu0 %v4761
      %5210 = vmatmul.mubr.bf16.gmra.mrb[0].mxu0 %v4760
      %v5211 = vpop.f32.mrb[0].mxu0
      %v5212 = vadd.f32 0.0, %v5211
      %v5213 = vpop.f32.mrb[0].mxu0
      %v5214 = vpop.f32.mrb[0].mxu0
      %v5215 = vadd.f32 0.0, %v5214
      %v5216 = vpop.f32.mrb[0].mxu0
      %5217 = vmatprep.mubr.bf16.mxu0 %v4770
      %5218 = vmatmul.mubr.bf16.gmra.mrb[0].mxu0 %v4769
      %v5219 = vpop.f32.mrb[0].mxu0
      %v5220 = vadd.f32 0.0, %v5219
      %v5221 = vpop.f32.mrb[0].mxu0
      %v5222 = vpop.f32.mrb[0].mxu0
      %v5223 = vadd.f32 0.0, %v5222
      %v5224 = vpop.f32.mrb[0].mxu0
      %5225 = vmatprep.mubr.bf16.mxu0 %v4779
      %5226 = vmatmul.mubr.bf16.gmra.mrb[0].mxu0 %v4778
      %v5227 = vpop.f32.mrb[0].mxu0
      %v5228 = vadd.f32 0.0, %v5227
      %v5229 = vpop.f32.mrb[0].mxu0
      %v5230 = vpop.f32.mrb[0].mxu0
      %v5231 = vadd.f32 0.0, %v5230
      %v5232 = vpop.f32.mrb[0].mxu0
      %5233 = vmatprep.mubr.bf16.mxu0 %v4788
      %5234 = vmatmul.mubr.bf16.gmra.mrb[0].mxu0 %v4787
      %v5235 = vpop.f32.mrb[0].mxu0
      %v5236 = vadd.f32 0.0, %v5235
      %v5237 = vpop.f32.mrb[0].mxu0
      %v5238 = vpop.f32.mrb[0].mxu0
      %v5239 = vadd.f32 0.0, %v5238
      %v5240 = vpop.f32.mrb[0].mxu0
      %5241 = vmatprep.mubr.bf16.mxu0 %v4797
      %5242 = vmatmul.mubr.bf16.gmra.mrb[0].mxu0 %v4796
      %v5243 = vpop.f32.mrb[0].mxu0
      %v5244 = vadd.f32 0.0, %v5243
      %v5245 = vpop.f32.mrb[0].mxu0
      %v5246 = vpop.f32.mrb[0].mxu0
      %v5247 = vadd.f32 0.0, %v5246
      %v5248 = vpop.f32.mrb[0].mxu0
      %5249 = vmatprep.mubr.bf16.mxu0 %v4806
      %5250 = vmatmul.mubr.bf16.gmra.mrb[0].mxu0 %v4805
      %v5251 = vpop.f32.mrb[0].mxu0
      %v5252 = vadd.f32 0.0, %v5251
      %v5253 = vpop.f32.mrb[0].mxu0
      %v5254 = vpop.f32.mrb[0].mxu0
      %v5255 = vadd.f32 0.0, %v5254
      %v5256 = vpop.f32.mrb[0].mxu0
      %5257 = vmatprep.mubr.bf16.mxu0 %v4815
      %5258 = vmatmul.mubr.bf16.gmra.mrb[0].mxu0 %v4814
      %v5259 = vpop.f32.mrb[0].mxu0
      %v5260 = vadd.f32 0.0, %v5259
      %v5261 = vpop.f32.mrb[0].mxu0
      %v5262 = vpop.f32.mrb[0].mxu0
      %v5263 = vadd.f32 0.0, %v5262
      %v5264 = vpop.f32.mrb[0].mxu0
      %5265 = vmatprep.mubr.bf16.mxu0 %v4824
      %5266 = vmatmul.mubr.bf16.gmra.mrb[0].mxu0 %v4823
      %v5267 = vpop.f32.mrb[0].mxu0
      %v5268 = vadd.f32 0.0, %v5267
      %v5269 = vpop.f32.mrb[0].mxu0
      %v5270 = vpop.f32.mrb[0].mxu0
      %v5271 = vadd.f32 0.0, %v5270
      %v5272 = vpop.f32.mrb[0].mxu0
      %5273 = vmatprep.mubr.bf16.mxu0 %v4833
      %5274 = vmatmul.mubr.bf16.gmra.mrb[0].mxu0 %v4832
      %v5275 = vpop.f32.mrb[0].mxu0
      %v5276 = vadd.f32 0.0, %v5275
      %v5277 = vpop.f32.mrb[0].mxu0
      %v5278 = vpop.f32.mrb[0].mxu0
      %v5279 = vadd.f32 0.0, %v5278
      %v5280 = vpop.f32.mrb[0].mxu0
      %5281 = vdwg.mxu0
      %5282 = vmatprep.subr.bf16.mxu0 0
      %5283 = vmatpush1.bf16.msra.mxu0 %v3657
      %5284 = vmatprep.subr.bf16.mxu0 0
      %5285 = vmatpush1.bf16.msra.mxu0 %v3658
      %5286 = vmatprep.subr.bf16.mxu0 0
      %5287 = vmatpush1.bf16.msra.mxu0 %v3659
      %5288 = vmatprep.subr.bf16.mxu0 0
      %5289 = vmatpush1.bf16.msra.mxu0 %v3660
      %5290 = vmatprep.subr.bf16.mxu0 0
      %5291 = vmatpush1.bf16.msra.mxu0 %v3661
      %5292 = vmatprep.subr.bf16.mxu0 0
      %5293 = vmatpush1.bf16.msra.mxu0 %v3662
      %5294 = vmatprep.subr.bf16.mxu0 0
      %5295 = vmatpush1.bf16.msra.mxu0 %v3663
      %5296 = vmatprep.subr.bf16.mxu0 0
      %5297 = vmatpush1.bf16.msra.mxu0 %v3664
      %5298 = vmatprep.subr.bf16.mxu0 0
      %5299 = vmatpush1.bf16.msra.mxu0 %v3665
      %5300 = vmatprep.subr.bf16.mxu0 0
      %5301 = vmatpush1.bf16.msra.mxu0 %v3666
      %5302 = vmatprep.subr.bf16.mxu0 0
      %5303 = vmatpush1.bf16.msra.mxu0 %v3667
      %5304 = vmatprep.subr.bf16.mxu0 0
      %5305 = vmatpush1.bf16.msra.mxu0 %v3668
      %5306 = vmatprep.subr.bf16.mxu0 0
      %5307 = vmatpush1.bf16.msra.mxu0 %v3669
      %5308 = vmatprep.subr.bf16.mxu0 0
      %5309 = vmatpush1.bf16.msra.mxu0 %v3670
      %5310 = vmatprep.subr.bf16.mxu0 0
      %5311 = vmatpush1.bf16.msra.mxu0 %v3671
      %5312 = vmatprep.subr.bf16.mxu0 0
      %5313 = vmatpush1.bf16.msra.mxu0 %v3672
      %5314 = vmatprep.mubr.bf16.mxu0 %v4628
      %5315 = vmatmul.mubr.bf16.gmra.mrb[0].mxu0 %v4627
      %v5316 = vpop.f32.mrb[0].mxu0
      %v5317 = vadd.f32 %v5092, %v5316
      %v5318 = vpop.f32.mrb[0].mxu0
      %v5319 = vpop.f32.mrb[0].mxu0
      %v5320 = vadd.f32 %v5095, %v5319
      %v5321 = vpop.f32.mrb[0].mxu0
      %5322 = vmatprep.mubr.bf16.mxu0 %v4637
      %5323 = vmatmul.mubr.bf16.gmra.mrb[0].mxu0 %v4636
      %v5324 = vpop.f32.mrb[0].mxu0
      %v5325 = vadd.f32 %v5100, %v5324
      %v5326 = vpop.f32.mrb[0].mxu0
      %v5327 = vpop.f32.mrb[0].mxu0
      %v5328 = vadd.f32 %v5103, %v5327
      %v5329 = vpop.f32.mrb[0].mxu0
      %5330 = vmatprep.mubr.bf16.mxu0 %v4646
      %5331 = vmatmul.mubr.bf16.gmra.mrb[0].mxu0 %v4645
      %v5332 = vpop.f32.mrb[0].mxu0
      %v5333 = vadd.f32 %v5108, %v5332
      %v5334 = vpop.f32.mrb[0].mxu0
      %v5335 = vpop.f32.mrb[0].mxu0
      %v5336 = vadd.f32 %v5111, %v5335
      %v5337 = vpop.f32.mrb[0].mxu0
      %5338 = vmatprep.mubr.bf16.mxu0 %v4655
      %5339 = vmatmul.mubr.bf16.gmra.mrb[0].mxu0 %v4654
      %v5340 = vpop.f32.mrb[0].mxu0
      %v5341 = vadd.f32 %v5116, %v5340
      %v5342 = vpop.f32.mrb[0].mxu0
      %v5343 = vpop.f32.mrb[0].mxu0
      %v5344 = vadd.f32 %v5119, %v5343
      %v5345 = vpop.f32.mrb[0].mxu0
      %5346 = vmatprep.mubr.bf16.mxu0 %v4664
      %5347 = vmatmul.mubr.bf16.gmra.mrb[0].mxu0 %v4663
      %v5348 = vpop.f32.mrb[0].mxu0
      %v5349 = vadd.f32 %v5124, %v5348
      %v5350 = vpop.f32.mrb[0].mxu0
      %v5351 = vpop.f32.mrb[0].mxu0
      %v5352 = vadd.f32 %v5127, %v5351
      %v5353 = vpop.f32.mrb[0].mxu0
      %5354 = vmatprep.mubr.bf16.mxu0 %v4673
      %5355 = vmatmul.mubr.bf16.gmra.mrb[0].mxu0 %v4672
      %v5356 = vpop.f32.mrb[0].mxu0
      %v5357 = vadd.f32 %v5132, %v5356
      %v5358 = vpop.f32.mrb[0].mxu0
      %v5359 = vpop.f32.mrb[0].mxu0
      %v5360 = vadd.f32 %v5135, %v5359
      %v5361 = vpop.f32.mrb[0].mxu0
      %5362 = vmatprep.mubr.bf16.mxu0 %v4682
      %5363 = vmatmul.mubr.bf16.gmra.mrb[0].mxu0 %v4681
      %v5364 = vpop.f32.mrb[0].mxu0
      %v5365 = vadd.f32 %v5140, %v5364
      %v5366 = vpop.f32.mrb[0].mxu0
      %v5367 = vpop.f32.mrb[0].mxu0
      %v5368 = vadd.f32 %v5143, %v5367
      %v5369 = vpop.f32.mrb[0].mxu0
      %5370 = vmatprep.mubr.bf16.mxu0 %v4691
      %5371 = vmatmul.mubr.bf16.gmra.mrb[0].mxu0 %v4690
      %v5372 = vpop.f32.mrb[0].mxu0
      %v5373 = vadd.f32 %v5148, %v5372
      %v5374 = vpop.f32.mrb[0].mxu0
      %v5375 = vpop.f32.mrb[0].mxu0
      %v5376 = vadd.f32 %v5151, %v5375
      %v5377 = vpop.f32.mrb[0].mxu0
      %5378 = vmatprep.mubr.bf16.mxu0 %v4700
      %5379 = vmatmul.mubr.bf16.gmra.mrb[0].mxu0 %v4699
      %v5380 = vpop.f32.mrb[0].mxu0
      %v5381 = vadd.f32 %v5156, %v5380
      %v5382 = vpop.f32.mrb[0].mxu0
      %v5383 = vpop.f32.mrb[0].mxu0
      %v5384 = vadd.f32 %v5159, %v5383
      %v5385 = vpop.f32.mrb[0].mxu0
      %5386 = vmatprep.mubr.bf16.mxu0 %v4709
      %5387 = vmatmul.mubr.bf16.gmra.mrb[0].mxu0 %v4708
      %v5388 = vpop.f32.mrb[0].mxu0
      %v5389 = vadd.f32 %v5164, %v5388
      %v5390 = vpop.f32.mrb[0].mxu0
      %v5391 = vpop.f32.mrb[0].mxu0
      %v5392 = vadd.f32 %v5167, %v5391
      %v5393 = vpop.f32.mrb[0].mxu0
      %5394 = vmatprep.mubr.bf16.mxu0 %v4718
      %5395 = vmatmul.mubr.bf16.gmra.mrb[0].mxu0 %v4717
      %v5396 = vpop.f32.mrb[0].mxu0
      %v5397 = vadd.f32 %v5172, %v5396
      %v5398 = vpop.f32.mrb[0].mxu0
      %v5399 = vpop.f32.mrb[0].mxu0
      %v5400 = vadd.f32 %v5175, %v5399
      %v5401 = vpop.f32.mrb[0].mxu0
      %5402 = vmatprep.mubr.bf16.mxu0 %v4727
      %5403 = vmatmul.mubr.bf16.gmra.mrb[0].mxu0 %v4726
      %v5404 = vpop.f32.mrb[0].mxu0
      %v5405 = vadd.f32 %v5180, %v5404
      %v5406 = vpop.f32.mrb[0].mxu0
      %v5407 = vpop.f32.mrb[0].mxu0
      %v5408 = vadd.f32 %v5183, %v5407
      %v5409 = vpop.f32.mrb[0].mxu0
      %5410 = vmatprep.mubr.bf16.mxu0 %v4736
      %5411 = vmatmul.mubr.bf16.gmra.mrb[0].mxu0 %v4735
      %v5412 = vpop.f32.mrb[0].mxu0
      %v5413 = vadd.f32 %v5188, %v5412
      %v5414 = vpop.f32.mrb[0].mxu0
      %v5415 = vpop.f32.mrb[0].mxu0
      %v5416 = vadd.f32 %v5191, %v5415
      %v5417 = vpop.f32.mrb[0].mxu0
      %5418 = vmatprep.mubr.bf16.mxu0 %v4745
      %5419 = vmatmul.mubr.bf16.gmra.mrb[0].mxu0 %v4744
      %v5420 = vpop.f32.mrb[0].mxu0
      %v5421 = vadd.f32 %v5196, %v5420
      %v5422 = vpop.f32.mrb[0].mxu0
      %v5423 = vpop.f32.mrb[0].mxu0
      %v5424 = vadd.f32 %v5199, %v5423
      %v5425 = vpop.f32.mrb[0].mxu0
      %5426 = vmatprep.mubr.bf16.mxu0 %v4754
      %5427 = vmatmul.mubr.bf16.gmra.mrb[0].mxu0 %v4753
      %v5428 = vpop.f32.mrb[0].mxu0
      %v5429 = vadd.f32 %v5204, %v5428
      %v5430 = vpop.f32.mrb[0].mxu0
      %v5431 = vpop.f32.mrb[0].mxu0
      %v5432 = vadd.f32 %v5207, %v5431
      %v5433 = vpop.f32.mrb[0].mxu0
      %5434 = vmatprep.mubr.bf16.mxu0 %v4763
      %5435 = vmatmul.mubr.bf16.gmra.mrb[0].mxu0 %v4762
      %v5436 = vpop.f32.mrb[0].mxu0
      %v5437 = vadd.f32 %v5212, %v5436
      %v5438 = vpop.f32.mrb[0].mxu0
      %v5439 = vpop.f32.mrb[0].mxu0
      %v5440 = vadd.f32 %v5215, %v5439
      %v5441 = vpop.f32.mrb[0].mxu0
      %5442 = vmatprep.mubr.bf16.mxu0 %v4772
      %5443 = vmatmul.mubr.bf16.gmra.mrb[0].mxu0 %v4771
      %v5444 = vpop.f32.mrb[0].mxu0
      %v5445 = vadd.f32 %v5220, %v5444
      %v5446 = vpop.f32.mrb[0].mxu0
      %v5447 = vpop.f32.mrb[0].mxu0
      %v5448 = vadd.f32 %v5223, %v5447
      %v5449 = vpop.f32.mrb[0].mxu0
      %5450 = vmatprep.mubr.bf16.mxu0 %v4781
      %5451 = vmatmul.mubr.bf16.gmra.mrb[0].mxu0 %v4780
      %v5452 = vpop.f32.mrb[0].mxu0
      %v5453 = vadd.f32 %v5228, %v5452
      %v5454 = vpop.f32.mrb[0].mxu0
      %v5455 = vpop.f32.mrb[0].mxu0
      %v5456 = vadd.f32 %v5231, %v5455
      %v5457 = vpop.f32.mrb[0].mxu0
      %5458 = vmatprep.mubr.bf16.mxu0 %v4790
      %5459 = vmatmul.mubr.bf16.gmra.mrb[0].mxu0 %v4789
      %v5460 = vpop.f32.mrb[0].mxu0
      %v5461 = vadd.f32 %v5236, %v5460
      %v5462 = vpop.f32.mrb[0].mxu0
      %v5463 = vpop.f32.mrb[0].mxu0
      %v5464 = vadd.f32 %v5239, %v5463
      %v5465 = vpop.f32.mrb[0].mxu0
      %5466 = vmatprep.mubr.bf16.mxu0 %v4799
      %5467 = vmatmul.mubr.bf16.gmra.mrb[0].mxu0 %v4798
      %v5468 = vpop.f32.mrb[0].mxu0
      %v5469 = vadd.f32 %v5244, %v5468
      %v5470 = vpop.f32.mrb[0].mxu0
      %v5471 = vpop.f32.mrb[0].mxu0
      %v5472 = vadd.f32 %v5247, %v5471
      %v5473 = vpop.f32.mrb[0].mxu0
      %5474 = vmatprep.mubr.bf16.mxu0 %v4808
      %5475 = vmatmul.mubr.bf16.gmra.mrb[0].mxu0 %v4807
      %v5476 = vpop.f32.mrb[0].mxu0
      %v5477 = vadd.f32 %v5252, %v5476
      %v5478 = vpop.f32.mrb[0].mxu0
      %v5479 = vpop.f32.mrb[0].mxu0
      %v5480 = vadd.f32 %v5255, %v5479
      %v5481 = vpop.f32.mrb[0].mxu0
      %5482 = vmatprep.mubr.bf16.mxu0 %v4817
      %5483 = vmatmul.mubr.bf16.gmra.mrb[0].mxu0 %v4816
      %v5484 = vpop.f32.mrb[0].mxu0
      %v5485 = vadd.f32 %v5260, %v5484
      %v5486 = vpop.f32.mrb[0].mxu0
      %v5487 = vpop.f32.mrb[0].mxu0
      %v5488 = vadd.f32 %v5263, %v5487
      %v5489 = vpop.f32.mrb[0].mxu0
      %5490 = vmatprep.mubr.bf16.mxu0 %v4826
      %5491 = vmatmul.mubr.bf16.gmra.mrb[0].mxu0 %v4825
      %v5492 = vpop.f32.mrb[0].mxu0
      %v5493 = vadd.f32 %v5268, %v5492
      %v5494 = vpop.f32.mrb[0].mxu0
      %v5495 = vpop.f32.mrb[0].mxu0
      %v5496 = vadd.f32 %v5271, %v5495
      %v5497 = vpop.f32.mrb[0].mxu0
      %5498 = vmatprep.mubr.bf16.mxu0 %v4835
      %5499 = vmatmul.mubr.bf16.gmra.mrb[0].mxu0 %v4834
      %v5500 = vpop.f32.mrb[0].mxu0
      %v5501 = vadd.f32 %v5276, %v5500
      %v5502 = vpop.f32.mrb[0].mxu0
      %v5503 = vpop.f32.mrb[0].mxu0
      %v5504 = vadd.f32 %v5279, %v5503
      %v5505 = vpop.f32.mrb[0].mxu0
      %5506 = vdwg.mxu0
      %5507 = vmatprep.subr.bf16.mxu0 0
      %5508 = vmatpush1.bf16.msra.mxu0 %v3673
      %5509 = vmatprep.subr.bf16.mxu0 0
      %5510 = vmatpush1.bf16.msra.mxu0 %v3674
      %5511 = vmatprep.subr.bf16.mxu0 0
      %5512 = vmatpush1.bf16.msra.mxu0 %v3675
      %5513 = vmatprep.subr.bf16.mxu0 0
      %5514 = vmatpush1.bf16.msra.mxu0 %v3676
      %5515 = vmatprep.subr.bf16.mxu0 0
      %5516 = vmatpush1.bf16.msra.mxu0 %v3677
      %5517 = vmatprep.subr.bf16.mxu0 0
      %5518 = vmatpush1.bf16.msra.mxu0 %v3678
      %5519 = vmatprep.subr.bf16.mxu0 0
      %5520 = vmatpush1.bf16.msra.mxu0 %v3679
      %5521 = vmatprep.subr.bf16.mxu0 0
      %5522 = vmatpush1.bf16.msra.mxu0 %v3680
      %5523 = vmatprep.subr.bf16.mxu0 0
      %5524 = vmatpush1.bf16.msra.mxu0 %v3681
      %5525 = vmatprep.subr.bf16.mxu0 0
      %5526 = vmatpush1.bf16.msra.mxu0 %v3682
      %5527 = vmatprep.subr.bf16.mxu0 0
      %5528 = vmatpush1.bf16.msra.mxu0 %v3683
      %5529 = vmatprep.subr.bf16.mxu0 0
      %5530 = vmatpush1.bf16.msra.mxu0 %v3684
      %5531 = vmatprep.subr.bf16.mxu0 0
      %5532 = vmatpush1.bf16.msra.mxu0 %v3685
      %5533 = vmatprep.subr.bf16.mxu0 0
      %5534 = vmatpush1.bf16.msra.mxu0 %v3686
      %5535 = vmatprep.subr.bf16.mxu0 0
      %5536 = vmatpush1.bf16.msra.mxu0 %v3687
      %5537 = vmatprep.subr.bf16.mxu0 0
      %5538 = vmatpush1.bf16.msra.mxu0 %v3688
      %5539 = vmatprep.mubr.bf16.mxu0 %v4630
      %5540 = vmatmul.mubr.bf16.gmra.mrb[0].mxu0 %v4629
      %v5541 = vpop.f32.mrb[0].mxu0
      %v5542 = vadd.f32 %v5317, %v5541
      %v5543 = vpop.f32.mrb[0].mxu0
      %v5544 = vpop.f32.mrb[0].mxu0
      %v5545 = vadd.f32 %v5320, %v5544
      %v5546 = vpop.f32.mrb[0].mxu0
      %5547 = vmatprep.mubr.bf16.mxu0 %v4639
      %5548 = vmatmul.mubr.bf16.gmra.mrb[0].mxu0 %v4638
      %v5549 = vpop.f32.mrb[0].mxu0
      %v5550 = vadd.f32 %v5325, %v5549
      %v5551 = vpop.f32.mrb[0].mxu0
      %v5552 = vpop.f32.mrb[0].mxu0
      %v5553 = vadd.f32 %v5328, %v5552
      %v5554 = vpop.f32.mrb[0].mxu0
      %5555 = vmatprep.mubr.bf16.mxu0 %v4648
      %5556 = vmatmul.mubr.bf16.gmra.mrb[0].mxu0 %v4647
      %v5557 = vpop.f32.mrb[0].mxu0
      %v5558 = vadd.f32 %v5333, %v5557
      %v5559 = vpop.f32.mrb[0].mxu0
      %v5560 = vpop.f32.mrb[0].mxu0
      %v5561 = vadd.f32 %v5336, %v5560
      %v5562 = vpop.f32.mrb[0].mxu0
      %5563 = vmatprep.mubr.bf16.mxu0 %v4657
      %5564 = vmatmul.mubr.bf16.gmra.mrb[0].mxu0 %v4656
      %v5565 = vpop.f32.mrb[0].mxu0
      %v5566 = vadd.f32 %v5341, %v5565
      %v5567 = vpop.f32.mrb[0].mxu0
      %v5568 = vpop.f32.mrb[0].mxu0
      %v5569 = vadd.f32 %v5344, %v5568
      %v5570 = vpop.f32.mrb[0].mxu0
      %5571 = vmatprep.mubr.bf16.mxu0 %v4666
      %5572 = vmatmul.mubr.bf16.gmra.mrb[0].mxu0 %v4665
      %v5573 = vpop.f32.mrb[0].mxu0
      %v5574 = vadd.f32 %v5349, %v5573
      %v5575 = vpop.f32.mrb[0].mxu0
      %v5576 = vpop.f32.mrb[0].mxu0
      %v5577 = vadd.f32 %v5352, %v5576
      %v5578 = vpop.f32.mrb[0].mxu0
      %5579 = vmatprep.mubr.bf16.mxu0 %v4675
      %5580 = vmatmul.mubr.bf16.gmra.mrb[0].mxu0 %v4674
      %v5581 = vpop.f32.mrb[0].mxu0
      %v5582 = vadd.f32 %v5357, %v5581
      %v5583 = vpop.f32.mrb[0].mxu0
      %v5584 = vpop.f32.mrb[0].mxu0
      %v5585 = vadd.f32 %v5360, %v5584
      %v5586 = vpop.f32.mrb[0].mxu0
      %5587 = vmatprep.mubr.bf16.mxu0 %v4684
      %5588 = vmatmul.mubr.bf16.gmra.mrb[0].mxu0 %v4683
      %v5589 = vpop.f32.mrb[0].mxu0
      %v5590 = vadd.f32 %v5365, %v5589
      %v5591 = vpop.f32.mrb[0].mxu0
      %v5592 = vpop.f32.mrb[0].mxu0
      %v5593 = vadd.f32 %v5368, %v5592
      %v5594 = vpop.f32.mrb[0].mxu0
      %5595 = vmatprep.mubr.bf16.mxu0 %v4693
      %5596 = vmatmul.mubr.bf16.gmra.mrb[0].mxu0 %v4692
      %v5597 = vpop.f32.mrb[0].mxu0
      %v5598 = vadd.f32 %v5373, %v5597
      %v5599 = vpop.f32.mrb[0].mxu0
      %v5600 = vpop.f32.mrb[0].mxu0
      %v5601 = vadd.f32 %v5376, %v5600
      %v5602 = vpop.f32.mrb[0].mxu0
      %5603 = vmatprep.mubr.bf16.mxu0 %v4702
      %5604 = vmatmul.mubr.bf16.gmra.mrb[0].mxu0 %v4701
      %v5605 = vpop.f32.mrb[0].mxu0
      %v5606 = vadd.f32 %v5381, %v5605
      %v5607 = vpop.f32.mrb[0].mxu0
      %v5608 = vpop.f32.mrb[0].mxu0
      %v5609 = vadd.f32 %v5384, %v5608
      %v5610 = vpop.f32.mrb[0].mxu0
      %5611 = vmatprep.mubr.bf16.mxu0 %v4711
      %5612 = vmatmul.mubr.bf16.gmra.mrb[0].mxu0 %v4710
      %v5613 = vpop.f32.mrb[0].mxu0
      %v5614 = vadd.f32 %v5389, %v5613
      %v5615 = vpop.f32.mrb[0].mxu0
      %v5616 = vpop.f32.mrb[0].mxu0
      %v5617 = vadd.f32 %v5392, %v5616
      %v5618 = vpop.f32.mrb[0].mxu0
      %5619 = vmatprep.mubr.bf16.mxu0 %v4720
      %5620 = vmatmul.mubr.bf16.gmra.mrb[0].mxu0 %v4719
      %v5621 = vpop.f32.mrb[0].mxu0
      %v5622 = vadd.f32 %v5397, %v5621
      %v5623 = vpop.f32.mrb[0].mxu0
      %v5624 = vpop.f32.mrb[0].mxu0
      %v5625 = vadd.f32 %v5400, %v5624
      %v5626 = vpop.f32.mrb[0].mxu0
      %5627 = vmatprep.mubr.bf16.mxu0 %v4729
      %5628 = vmatmul.mubr.bf16.gmra.mrb[0].mxu0 %v4728
      %v5629 = vpop.f32.mrb[0].mxu0
      %v5630 = vadd.f32 %v5405, %v5629
      %v5631 = vpop.f32.mrb[0].mxu0
      %v5632 = vpop.f32.mrb[0].mxu0
      %v5633 = vadd.f32 %v5408, %v5632
      %v5634 = vpop.f32.mrb[0].mxu0
      %5635 = vmatprep.mubr.bf16.mxu0 %v4738
      %5636 = vmatmul.mubr.bf16.gmra.mrb[0].mxu0 %v4737
      %v5637 = vpop.f32.mrb[0].mxu0
      %v5638 = vadd.f32 %v5413, %v5637
      %v5639 = vpop.f32.mrb[0].mxu0
      %v5640 = vpop.f32.mrb[0].mxu0
      %v5641 = vadd.f32 %v5416, %v5640
      %v5642 = vpop.f32.mrb[0].mxu0
      %5643 = vmatprep.mubr.bf16.mxu0 %v4747
      %5644 = vmatmul.mubr.bf16.gmra.mrb[0].mxu0 %v4746
      %v5645 = vpop.f32.mrb[0].mxu0
      %v5646 = vadd.f32 %v5421, %v5645
      %v5647 = vpop.f32.mrb[0].mxu0
      %v5648 = vpop.f32.mrb[0].mxu0
      %v5649 = vadd.f32 %v5424, %v5648
      %v5650 = vpop.f32.mrb[0].mxu0
      %5651 = vmatprep.mubr.bf16.mxu0 %v4756
      %5652 = vmatmul.mubr.bf16.gmra.mrb[0].mxu0 %v4755
      %v5653 = vpop.f32.mrb[0].mxu0
      %v5654 = vadd.f32 %v5429, %v5653
      %v5655 = vpop.f32.mrb[0].mxu0
      %v5656 = vpop.f32.mrb[0].mxu0
      %v5657 = vadd.f32 %v5432, %v5656
      %v5658 = vpop.f32.mrb[0].mxu0
      %5659 = vmatprep.mubr.bf16.mxu0 %v4765
      %5660 = vmatmul.mubr.bf16.gmra.mrb[0].mxu0 %v4764
      %v5661 = vpop.f32.mrb[0].mxu0
      %v5662 = vadd.f32 %v5437, %v5661
      %v5663 = vpop.f32.mrb[0].mxu0
      %v5664 = vpop.f32.mrb[0].mxu0
      %v5665 = vadd.f32 %v5440, %v5664
      %v5666 = vpop.f32.mrb[0].mxu0
      %5667 = vmatprep.mubr.bf16.mxu0 %v4774
      %5668 = vmatmul.mubr.bf16.gmra.mrb[0].mxu0 %v4773
      %v5669 = vpop.f32.mrb[0].mxu0
      %v5670 = vadd.f32 %v5445, %v5669
      %v5671 = vpop.f32.mrb[0].mxu0
      %v5672 = vpop.f32.mrb[0].mxu0
      %v5673 = vadd.f32 %v5448, %v5672
      %v5674 = vpop.f32.mrb[0].mxu0
      %5675 = vmatprep.mubr.bf16.mxu0 %v4783
      %5676 = vmatmul.mubr.bf16.gmra.mrb[0].mxu0 %v4782
      %v5677 = vpop.f32.mrb[0].mxu0
      %v5678 = vadd.f32 %v5453, %v5677
      %v5679 = vpop.f32.mrb[0].mxu0
      %v5680 = vpop.f32.mrb[0].mxu0
      %v5681 = vadd.f32 %v5456, %v5680
      %v5682 = vpop.f32.mrb[0].mxu0
      %5683 = vmatprep.mubr.bf16.mxu0 %v4792
      %5684 = vmatmul.mubr.bf16.gmra.mrb[0].mxu0 %v4791
      %v5685 = vpop.f32.mrb[0].mxu0
      %v5686 = vadd.f32 %v5461, %v5685
      %v5687 = vpop.f32.mrb[0].mxu0
      %v5688 = vpop.f32.mrb[0].mxu0
      %v5689 = vadd.f32 %v5464, %v5688
      %v5690 = vpop.f32.mrb[0].mxu0
      %5691 = vmatprep.mubr.bf16.mxu0 %v4801
      %5692 = vmatmul.mubr.bf16.gmra.mrb[0].mxu0 %v4800
      %v5693 = vpop.f32.mrb[0].mxu0
      %v5694 = vadd.f32 %v5469, %v5693
      %v5695 = vpop.f32.mrb[0].mxu0
      %v5696 = vpop.f32.mrb[0].mxu0
      %v5697 = vadd.f32 %v5472, %v5696
      %v5698 = vpop.f32.mrb[0].mxu0
      %5699 = vmatprep.mubr.bf16.mxu0 %v4810
      %5700 = vmatmul.mubr.bf16.gmra.mrb[0].mxu0 %v4809
      %v5701 = vpop.f32.mrb[0].mxu0
      %v5702 = vadd.f32 %v5477, %v5701
      %v5703 = vpop.f32.mrb[0].mxu0
      %v5704 = vpop.f32.mrb[0].mxu0
      %v5705 = vadd.f32 %v5480, %v5704
      %v5706 = vpop.f32.mrb[0].mxu0
      %5707 = vmatprep.mubr.bf16.mxu0 %v4819
      %5708 = vmatmul.mubr.bf16.gmra.mrb[0].mxu0 %v4818
      %v5709 = vpop.f32.mrb[0].mxu0
      %v5710 = vadd.f32 %v5485, %v5709
      %v5711 = vpop.f32.mrb[0].mxu0
      %v5712 = vpop.f32.mrb[0].mxu0
      %v5713 = vadd.f32 %v5488, %v5712
      %v5714 = vpop.f32.mrb[0].mxu0
      %5715 = vmatprep.mubr.bf16.mxu0 %v4828
      %5716 = vmatmul.mubr.bf16.gmra.mrb[0].mxu0 %v4827
      %v5717 = vpop.f32.mrb[0].mxu0
      %v5718 = vadd.f32 %v5493, %v5717
      %v5719 = vpop.f32.mrb[0].mxu0
      %v5720 = vpop.f32.mrb[0].mxu0
      %v5721 = vadd.f32 %v5496, %v5720
      %v5722 = vpop.f32.mrb[0].mxu0
      %5723 = vmatprep.mubr.bf16.mxu0 %v4837
      %5724 = vmatmul.mubr.bf16.gmra.mrb[0].mxu0 %v4836
      %v5725 = vpop.f32.mrb[0].mxu0
      %v5726 = vadd.f32 %v5501, %v5725
      %v5727 = vpop.f32.mrb[0].mxu0
      %v5728 = vpop.f32.mrb[0].mxu0
      %v5729 = vadd.f32 %v5504, %v5728
      %v5730 = vpop.f32.mrb[0].mxu0
      %5731 = vdwg.mxu0
      %5732 = vmatprep.subr.bf16.mxu0 0
      %5733 = vmatpush1.bf16.msra.mxu0 %v3689
      %5734 = vmatprep.subr.bf16.mxu0 0
      %5735 = vmatpush1.bf16.msra.mxu0 %v3690
      %5736 = vmatprep.subr.bf16.mxu0 0
      %5737 = vmatpush1.bf16.msra.mxu0 %v3691
      %5738 = vmatprep.subr.bf16.mxu0 0
      %5739 = vmatpush1.bf16.msra.mxu0 %v3692
      %5740 = vmatprep.subr.bf16.mxu0 0
      %5741 = vmatpush1.bf16.msra.mxu0 %v3693
      %5742 = vmatprep.subr.bf16.mxu0 0
      %5743 = vmatpush1.bf16.msra.mxu0 %v3694
      %5744 = vmatprep.subr.bf16.mxu0 0
      %5745 = vmatpush1.bf16.msra.mxu0 %v3695
      %5746 = vmatprep.subr.bf16.mxu0 0
      %5747 = vmatpush1.bf16.msra.mxu0 %v3696
      %5748 = vmatprep.subr.bf16.mxu0 0
      %5749 = vmatpush1.bf16.msra.mxu0 %v3697
      %5750 = vmatprep.subr.bf16.mxu0 0
      %5751 = vmatpush1.bf16.msra.mxu0 %v3698
      %5752 = vmatprep.subr.bf16.mxu0 0
      %5753 = vmatpush1.bf16.msra.mxu0 %v3699
      %5754 = vmatprep.subr.bf16.mxu0 0
      %5755 = vmatpush1.bf16.msra.mxu0 %v3700
      %5756 = vmatprep.subr.bf16.mxu0 0
      %5757 = vmatpush1.bf16.msra.mxu0 %v3701
      %5758 = vmatprep.subr.bf16.mxu0 0
      %5759 = vmatpush1.bf16.msra.mxu0 %v3702
      %5760 = vmatprep.subr.bf16.mxu0 0
      %5761 = vmatpush1.bf16.msra.mxu0 %v3703
      %5762 = vmatprep.subr.bf16.mxu0 0
      %5763 = vmatpush1.bf16.msra.mxu0 %v3704
      %5764 = vmatprep.mubr.bf16.mxu0 %v4632
      %5765 = vmatmul.mubr.bf16.gmra.mrb[0].mxu0 %v4631
      %v5766 = vpop.f32.mrb[0].mxu0
      %v5767 = vadd.f32 %v5542, %v5766
      %v5768 = vpop.f32.mrb[0].mxu0
      %v5769 = vpop.f32.mrb[0].mxu0
      %v5770 = vadd.f32 %v5545, %v5769
      %v5771 = vpop.f32.mrb[0].mxu0
      %5772 = vmatprep.mubr.bf16.mxu0 %v4641
      %5773 = vmatmul.mubr.bf16.gmra.mrb[0].mxu0 %v4640
      %v5774 = vpop.f32.mrb[0].mxu0
      %v5775 = vadd.f32 %v5550, %v5774
      %v5776 = vpop.f32.mrb[0].mxu0
      %v5777 = vpop.f32.mrb[0].mxu0
      %v5778 = vadd.f32 %v5553, %v5777
      %v5779 = vpop.f32.mrb[0].mxu0
      %5780 = vmatprep.mubr.bf16.mxu0 %v4650
      %5781 = vmatmul.mubr.bf16.gmra.mrb[0].mxu0 %v4649
      %v5782 = vpop.f32.mrb[0].mxu0
      %v5783 = vadd.f32 %v5558, %v5782
      %v5784 = vpop.f32.mrb[0].mxu0
      %v5785 = vpop.f32.mrb[0].mxu0
      %v5786 = vadd.f32 %v5561, %v5785
      %v5787 = vpop.f32.mrb[0].mxu0
      %5788 = vmatprep.mubr.bf16.mxu0 %v4659
      %5789 = vmatmul.mubr.bf16.gmra.mrb[0].mxu0 %v4658
      %v5790 = vpop.f32.mrb[0].mxu0
      %v5791 = vadd.f32 %v5566, %v5790
      %v5792 = vpop.f32.mrb[0].mxu0
      %v5793 = vpop.f32.mrb[0].mxu0
      %v5794 = vadd.f32 %v5569, %v5793
      %v5795 = vpop.f32.mrb[0].mxu0
      %5796 = vmatprep.mubr.bf16.mxu0 %v4668
      %5797 = vmatmul.mubr.bf16.gmra.mrb[0].mxu0 %v4667
      %v5798 = vpop.f32.mrb[0].mxu0
      %v5799 = vadd.f32 %v5574, %v5798
      %v5800 = vpop.f32.mrb[0].mxu0
      %v5801 = vpop.f32.mrb[0].mxu0
      %v5802 = vadd.f32 %v5577, %v5801
      %v5803 = vpop.f32.mrb[0].mxu0
      %5804 = vmatprep.mubr.bf16.mxu0 %v4677
      %5805 = vmatmul.mubr.bf16.gmra.mrb[0].mxu0 %v4676
      %v5806 = vpop.f32.mrb[0].mxu0
      %v5807 = vadd.f32 %v5582, %v5806
      %v5808 = vpop.f32.mrb[0].mxu0
      %v5809 = vpop.f32.mrb[0].mxu0
      %v5810 = vadd.f32 %v5585, %v5809
      %v5811 = vpop.f32.mrb[0].mxu0
      %5812 = vmatprep.mubr.bf16.mxu0 %v4686
      %5813 = vmatmul.mubr.bf16.gmra.mrb[0].mxu0 %v4685
      %v5814 = vpop.f32.mrb[0].mxu0
      %v5815 = vadd.f32 %v5590, %v5814
      %v5816 = vpop.f32.mrb[0].mxu0
      %v5817 = vpop.f32.mrb[0].mxu0
      %v5818 = vadd.f32 %v5593, %v5817
      %v5819 = vpop.f32.mrb[0].mxu0
      %5820 = vmatprep.mubr.bf16.mxu0 %v4695
      %5821 = vmatmul.mubr.bf16.gmra.mrb[0].mxu0 %v4694
      %v5822 = vpop.f32.mrb[0].mxu0
      %v5823 = vadd.f32 %v5598, %v5822
      %v5824 = vpop.f32.mrb[0].mxu0
      %v5825 = vpop.f32.mrb[0].mxu0
      %v5826 = vadd.f32 %v5601, %v5825
      %v5827 = vpop.f32.mrb[0].mxu0
      %5828 = vmatprep.mubr.bf16.mxu0 %v4704
      %5829 = vmatmul.mubr.bf16.gmra.mrb[0].mxu0 %v4703
      %v5830 = vpop.f32.mrb[0].mxu0
      %v5831 = vadd.f32 %v5606, %v5830
      %v5832 = vpop.f32.mrb[0].mxu0
      %v5833 = vpop.f32.mrb[0].mxu0
      %v5834 = vadd.f32 %v5609, %v5833
      %v5835 = vpop.f32.mrb[0].mxu0
      %5836 = vmatprep.mubr.bf16.mxu0 %v4713
      %5837 = vmatmul.mubr.bf16.gmra.mrb[0].mxu0 %v4712
      %v5838 = vpop.f32.mrb[0].mxu0
      %v5839 = vadd.f32 %v5614, %v5838
      %v5840 = vpop.f32.mrb[0].mxu0
      %v5841 = vpop.f32.mrb[0].mxu0
      %v5842 = vadd.f32 %v5617, %v5841
      %v5843 = vpop.f32.mrb[0].mxu0
      %5844 = vmatprep.mubr.bf16.mxu0 %v4722
      %5845 = vmatmul.mubr.bf16.gmra.mrb[0].mxu0 %v4721
      %v5846 = vpop.f32.mrb[0].mxu0
      %v5847 = vadd.f32 %v5622, %v5846
      %v5848 = vpop.f32.mrb[0].mxu0
      %v5849 = vpop.f32.mrb[0].mxu0
      %v5850 = vadd.f32 %v5625, %v5849
      %v5851 = vpop.f32.mrb[0].mxu0
      %5852 = vmatprep.mubr.bf16.mxu0 %v4731
      %5853 = vmatmul.mubr.bf16.gmra.mrb[0].mxu0 %v4730
      %v5854 = vpop.f32.mrb[0].mxu0
      %v5855 = vadd.f32 %v5630, %v5854
      %v5856 = vpop.f32.mrb[0].mxu0
      %v5857 = vpop.f32.mrb[0].mxu0
      %v5858 = vadd.f32 %v5633, %v5857
      %v5859 = vpop.f32.mrb[0].mxu0
      %5860 = vmatprep.mubr.bf16.mxu0 %v4740
      %5861 = vmatmul.mubr.bf16.gmra.mrb[0].mxu0 %v4739
      %v5862 = vpop.f32.mrb[0].mxu0
      %v5863 = vadd.f32 %v5638, %v5862
      %v5864 = vpop.f32.mrb[0].mxu0
      %v5865 = vpop.f32.mrb[0].mxu0
      %v5866 = vadd.f32 %v5641, %v5865
      %v5867 = vpop.f32.mrb[0].mxu0
      %5868 = vmatprep.mubr.bf16.mxu0 %v4749
      %5869 = vmatmul.mubr.bf16.gmra.mrb[0].mxu0 %v4748
      %v5870 = vpop.f32.mrb[0].mxu0
      %v5871 = vadd.f32 %v5646, %v5870
      %v5872 = vpop.f32.mrb[0].mxu0
      %v5873 = vpop.f32.mrb[0].mxu0
      %v5874 = vadd.f32 %v5649, %v5873
      %v5875 = vpop.f32.mrb[0].mxu0
      %5876 = vmatprep.mubr.bf16.mxu0 %v4758
      %5877 = vmatmul.mubr.bf16.gmra.mrb[0].mxu0 %v4757
      %v5878 = vpop.f32.mrb[0].mxu0
      %v5879 = vadd.f32 %v5654, %v5878
      %v5880 = vpop.f32.mrb[0].mxu0
      %v5881 = vpop.f32.mrb[0].mxu0
      %v5882 = vadd.f32 %v5657, %v5881
      %v5883 = vpop.f32.mrb[0].mxu0
      %5884 = vmatprep.mubr.bf16.mxu0 %v4767
      %5885 = vmatmul.mubr.bf16.gmra.mrb[0].mxu0 %v4766
      %v5886 = vpop.f32.mrb[0].mxu0
      %v5887 = vadd.f32 %v5662, %v5886
      %v5888 = vpop.f32.mrb[0].mxu0
      %v5889 = vpop.f32.mrb[0].mxu0
      %v5890 = vadd.f32 %v5665, %v5889
      %v5891 = vpop.f32.mrb[0].mxu0
      %5892 = vmatprep.mubr.bf16.mxu0 %v4776
      %5893 = vmatmul.mubr.bf16.gmra.mrb[0].mxu0 %v4775
      %v5894 = vpop.f32.mrb[0].mxu0
      %v5895 = vadd.f32 %v5670, %v5894
      %v5896 = vpop.f32.mrb[0].mxu0
      %v5897 = vpop.f32.mrb[0].mxu0
      %v5898 = vadd.f32 %v5673, %v5897
      %v5899 = vpop.f32.mrb[0].mxu0
      %5900 = vmatprep.mubr.bf16.mxu0 %v4785
      %5901 = vmatmul.mubr.bf16.gmra.mrb[0].mxu0 %v4784
      %v5902 = vpop.f32.mrb[0].mxu0
      %v5903 = vadd.f32 %v5678, %v5902
      %v5904 = vpop.f32.mrb[0].mxu0
      %v5905 = vpop.f32.mrb[0].mxu0
      %v5906 = vadd.f32 %v5681, %v5905
      %v5907 = vpop.f32.mrb[0].mxu0
      %5908 = vmatprep.mubr.bf16.mxu0 %v4794
      %5909 = vmatmul.mubr.bf16.gmra.mrb[0].mxu0 %v4793
      %v5910 = vpop.f32.mrb[0].mxu0
      %v5911 = vadd.f32 %v5686, %v5910
      %v5912 = vpop.f32.mrb[0].mxu0
      %v5913 = vpop.f32.mrb[0].mxu0
      %v5914 = vadd.f32 %v5689, %v5913
      %v5915 = vpop.f32.mrb[0].mxu0
      %5916 = vmatprep.mubr.bf16.mxu0 %v4803
      %5917 = vmatmul.mubr.bf16.gmra.mrb[0].mxu0 %v4802
      %v5918 = vpop.f32.mrb[0].mxu0
      %v5919 = vadd.f32 %v5694, %v5918
      %v5920 = vpop.f32.mrb[0].mxu0
      %v5921 = vpop.f32.mrb[0].mxu0
      %v5922 = vadd.f32 %v5697, %v5921
      %v5923 = vpop.f32.mrb[0].mxu0
      %5924 = vmatprep.mubr.bf16.mxu0 %v4812
      %5925 = vmatmul.mubr.bf16.gmra.mrb[0].mxu0 %v4811
      %v5926 = vpop.f32.mrb[0].mxu0
      %v5927 = vadd.f32 %v5702, %v5926
      %v5928 = vpop.f32.mrb[0].mxu0
      %v5929 = vpop.f32.mrb[0].mxu0
      %v5930 = vadd.f32 %v5705, %v5929
      %v5931 = vpop.f32.mrb[0].mxu0
      %5932 = vmatprep.mubr.bf16.mxu0 %v4821
      %5933 = vmatmul.mubr.bf16.gmra.mrb[0].mxu0 %v4820
      %v5934 = vpop.f32.mrb[0].mxu0
      %v5935 = vadd.f32 %v5710, %v5934
      %v5936 = vpop.f32.mrb[0].mxu0
      %v5937 = vpop.f32.mrb[0].mxu0
      %v5938 = vadd.f32 %v5713, %v5937
      %v5939 = vpop.f32.mrb[0].mxu0
      %5940 = vmatprep.mubr.bf16.mxu0 %v4830
      %5941 = vmatmul.mubr.bf16.gmra.mrb[0].mxu0 %v4829
      %v5942 = vpop.f32.mrb[0].mxu0
      %v5943 = vadd.f32 %v5718, %v5942
      %v5944 = vpop.f32.mrb[0].mxu0
      %v5945 = vpop.f32.mrb[0].mxu0
      %v5946 = vadd.f32 %v5721, %v5945
      %v5947 = vpop.f32.mrb[0].mxu0
      %5948 = vmatprep.mubr.bf16.mxu0 %v4839
      %5949 = vmatmul.mubr.bf16.gmra.mrb[0].mxu0 %v4838
      %v5950 = vpop.f32.mrb[0].mxu0
      %v5951 = vadd.f32 %v5726, %v5950
      %v5952 = vpop.f32.mrb[0].mxu0
      %v5953 = vpop.f32.mrb[0].mxu0
      %v5954 = vadd.f32 %v5729, %v5953
      %v5955 = vpop.f32.mrb[0].mxu0
      %5956 = vdwg.mxu0
      %5957 = vmatprep.subr.bf16.mxu0 0
      %5958 = vmatpush1.bf16.msra.mxu0 %v3705
      %5959 = vmatprep.subr.bf16.mxu0 0
      %5960 = vmatpush1.bf16.msra.mxu0 %v3706
      %5961 = vmatprep.subr.bf16.mxu0 0
      %5962 = vmatpush1.bf16.msra.mxu0 %v3707
      %5963 = vmatprep.subr.bf16.mxu0 0
      %5964 = vmatpush1.bf16.msra.mxu0 %v3708
      %5965 = vmatprep.subr.bf16.mxu0 0
      %5966 = vmatpush1.bf16.msra.mxu0 %v3709
      %5967 = vmatprep.subr.bf16.mxu0 0
      %5968 = vmatpush1.bf16.msra.mxu0 %v3710
      %5969 = vmatprep.subr.bf16.mxu0 0
      %5970 = vmatpush1.bf16.msra.mxu0 %v3711
      %5971 = vmatprep.subr.bf16.mxu0 0
      %5972 = vmatpush1.bf16.msra.mxu0 %v3712
      %5973 = vmatprep.subr.bf16.mxu0 0
      %5974 = vmatpush1.bf16.msra.mxu0 0
      %5975 = vmatprep.subr.bf16.mxu0 0
      %5976 = vmatpush1.bf16.msra.mxu0 0
      %5977 = vmatprep.subr.bf16.mxu0 0
      %5978 = vmatpush1.bf16.msra.mxu0 0
      %5979 = vmatprep.subr.bf16.mxu0 0
      %5980 = vmatpush1.bf16.msra.mxu0 0
      %5981 = vmatprep.subr.bf16.mxu0 0
      %5982 = vmatpush1.bf16.msra.mxu0 0
      %5983 = vmatprep.subr.bf16.mxu0 0
      %5984 = vmatpush1.bf16.msra.mxu0 0
      %5985 = vmatprep.subr.bf16.mxu0 0
      %5986 = vmatpush1.bf16.msra.mxu0 0
      %5987 = vmatprep.subr.bf16.mxu0 0
      %5988 = vmatpush1.bf16.msra.mxu0 0
      %5989 = vmatprep.mubr.bf16.mxu0 0
      %5990 = vmatmul.mubr.bf16.gmra.mrb[0].mxu0 %v4633
      %v5991 = vpop.f32.mrb[0].mxu0
      %v5992 = vadd.f32 %v5767, %v5991
      %v5993 = vpop.f32.mrb[0].mxu0
      %v5994 = vpop.f32.mrb[0].mxu0
      %v5995 = vadd.f32 %v5770, %v5994
      %v5996 = vpop.f32.mrb[0].mxu0
      %5997 = vmatprep.mubr.bf16.mxu0 0
      %5998 = vmatmul.mubr.bf16.gmra.mrb[0].mxu0 %v4642
      %v5999 = vpop.f32.mrb[0].mxu0
      %v6000 = vadd.f32 %v5775, %v5999
      %v6001 = vpop.f32.mrb[0].mxu0
      %v6002 = vpop.f32.mrb[0].mxu0
      %v6003 = vadd.f32 %v5778, %v6002
      %v6004 = vpop.f32.mrb[0].mxu0
      %6005 = vmatprep.mubr.bf16.mxu0 0
      %6006 = vmatmul.mubr.bf16.gmra.mrb[0].mxu0 %v4651
      %v6007 = vpop.f32.mrb[0].mxu0
      %v6008 = vadd.f32 %v5783, %v6007
      %v6009 = vpop.f32.mrb[0].mxu0
      %v6010 = vpop.f32.mrb[0].mxu0
      %v6011 = vadd.f32 %v5786, %v6010
      %v6012 = vpop.f32.mrb[0].mxu0
      %6013 = vmatprep.mubr.bf16.mxu0 0
      %6014 = vmatmul.mubr.bf16.gmra.mrb[0].mxu0 %v4660
      %v6015 = vpop.f32.mrb[0].mxu0
      %v6016 = vadd.f32 %v5791, %v6015
      %v6017 = vpop.f32.mrb[0].mxu0
      %v6018 = vpop.f32.mrb[0].mxu0
      %v6019 = vadd.f32 %v5794, %v6018
      %v6020 = vpop.f32.mrb[0].mxu0
      %6021 = vmatprep.mubr.bf16.mxu0 0
      %6022 = vmatmul.mubr.bf16.gmra.mrb[0].mxu0 %v4669
      %v6023 = vpop.f32.mrb[0].mxu0
      %v6024 = vadd.f32 %v5799, %v6023
      %v6025 = vpop.f32.mrb[0].mxu0
      %v6026 = vpop.f32.mrb[0].mxu0
      %v6027 = vadd.f32 %v5802, %v6026
      %v6028 = vpop.f32.mrb[0].mxu0
      %6029 = vmatprep.mubr.bf16.mxu0 0
      %6030 = vmatmul.mubr.bf16.gmra.mrb[0].mxu0 %v4678
      %v6031 = vpop.f32.mrb[0].mxu0
      %v6032 = vadd.f32 %v5807, %v6031
      %v6033 = vpop.f32.mrb[0].mxu0
      %v6034 = vpop.f32.mrb[0].mxu0
      %v6035 = vadd.f32 %v5810, %v6034
      %v6036 = vpop.f32.mrb[0].mxu0
      %6037 = vmatprep.mubr.bf16.mxu0 0
      %6038 = vmatmul.mubr.bf16.gmra.mrb[0].mxu0 %v4687
      %v6039 = vpop.f32.mrb[0].mxu0
      %v6040 = vadd.f32 %v5815, %v6039
      %v6041 = vpop.f32.mrb[0].mxu0
      %v6042 = vpop.f32.mrb[0].mxu0
      %v6043 = vadd.f32 %v5818, %v6042
      %v6044 = vpop.f32.mrb[0].mxu0
      %6045 = vmatprep.mubr.bf16.mxu0 0
      %6046 = vmatmul.mubr.bf16.gmra.mrb[0].mxu0 %v4696
      %v6047 = vpop.f32.mrb[0].mxu0
      %v6048 = vadd.f32 %v5823, %v6047
      %v6049 = vpop.f32.mrb[0].mxu0
      %v6050 = vpop.f32.mrb[0].mxu0
      %v6051 = vadd.f32 %v5826, %v6050
      %v6052 = vpop.f32.mrb[0].mxu0
      %6053 = vmatprep.mubr.bf16.mxu0 0
      %6054 = vmatmul.mubr.bf16.gmra.mrb[0].mxu0 %v4705
      %v6055 = vpop.f32.mrb[0].mxu0
      %v6056 = vadd.f32 %v5831, %v6055
      %v6057 = vpop.f32.mrb[0].mxu0
      %v6058 = vpop.f32.mrb[0].mxu0
      %v6059 = vadd.f32 %v5834, %v6058
      %v6060 = vpop.f32.mrb[0].mxu0
      %6061 = vmatprep.mubr.bf16.mxu0 0
      %6062 = vmatmul.mubr.bf16.gmra.mrb[0].mxu0 %v4714
      %v6063 = vpop.f32.mrb[0].mxu0
      %v6064 = vadd.f32 %v5839, %v6063
      %v6065 = vpop.f32.mrb[0].mxu0
      %v6066 = vpop.f32.mrb[0].mxu0
      %v6067 = vadd.f32 %v5842, %v6066
      %v6068 = vpop.f32.mrb[0].mxu0
      %6069 = vmatprep.mubr.bf16.mxu0 0
      %6070 = vmatmul.mubr.bf16.gmra.mrb[0].mxu0 %v4723
      %v6071 = vpop.f32.mrb[0].mxu0
      %v6072 = vadd.f32 %v5847, %v6071
      %v6073 = vpop.f32.mrb[0].mxu0
      %v6074 = vpop.f32.mrb[0].mxu0
      %v6075 = vadd.f32 %v5850, %v6074
      %v6076 = vpop.f32.mrb[0].mxu0
      %6077 = vmatprep.mubr.bf16.mxu0 0
      %6078 = vmatmul.mubr.bf16.gmra.mrb[0].mxu0 %v4732
      %v6079 = vpop.f32.mrb[0].mxu0
      %v6080 = vadd.f32 %v5855, %v6079
      %v6081 = vpop.f32.mrb[0].mxu0
      %v6082 = vpop.f32.mrb[0].mxu0
      %v6083 = vadd.f32 %v5858, %v6082
      %v6084 = vpop.f32.mrb[0].mxu0
      %6085 = vmatprep.mubr.bf16.mxu0 0
      %6086 = vmatmul.mubr.bf16.gmra.mrb[0].mxu0 %v4741
      %v6087 = vpop.f32.mrb[0].mxu0
      %v6088 = vadd.f32 %v5863, %v6087
      %v6089 = vpop.f32.mrb[0].mxu0
      %v6090 = vpop.f32.mrb[0].mxu0
      %v6091 = vadd.f32 %v5866, %v6090
      %v6092 = vpop.f32.mrb[0].mxu0
      %6093 = vmatprep.mubr.bf16.mxu0 0
      %6094 = vmatmul.mubr.bf16.gmra.mrb[0].mxu0 %v4750
      %v6095 = vpop.f32.mrb[0].mxu0
      %v6096 = vadd.f32 %v5871, %v6095
      %v6097 = vpop.f32.mrb[0].mxu0
      %v6098 = vpop.f32.mrb[0].mxu0
      %v6099 = vadd.f32 %v5874, %v6098
      %v6100 = vpop.f32.mrb[0].mxu0
      %6101 = vmatprep.mubr.bf16.mxu0 0
      %6102 = vmatmul.mubr.bf16.gmra.mrb[0].mxu0 %v4759
      %v6103 = vpop.f32.mrb[0].mxu0
      %v6104 = vadd.f32 %v5879, %v6103
      %v6105 = vpop.f32.mrb[0].mxu0
      %v6106 = vpop.f32.mrb[0].mxu0
      %v6107 = vadd.f32 %v5882, %v6106
      %v6108 = vpop.f32.mrb[0].mxu0
      %6109 = vmatprep.mubr.bf16.mxu0 0
      %6110 = vmatmul.mubr.bf16.gmra.mrb[0].mxu0 %v4768
      %v6111 = vpop.f32.mrb[0].mxu0
      %v6112 = vadd.f32 %v5887, %v6111
      %v6113 = vpop.f32.mrb[0].mxu0
      %v6114 = vpop.f32.mrb[0].mxu0
      %v6115 = vadd.f32 %v5890, %v6114
      %v6116 = vpop.f32.mrb[0].mxu0
      %6117 = vmatprep.mubr.bf16.mxu0 0
      %6118 = vmatmul.mubr.bf16.gmra.mrb[0].mxu0 %v4777
      %v6119 = vpop.f32.mrb[0].mxu0
      %v6120 = vadd.f32 %v5895, %v6119
      %v6121 = vpop.f32.mrb[0].mxu0
      %v6122 = vpop.f32.mrb[0].mxu0
      %v6123 = vadd.f32 %v5898, %v6122
      %v6124 = vpop.f32.mrb[0].mxu0
      %6125 = vmatprep.mubr.bf16.mxu0 0
      %6126 = vmatmul.mubr.bf16.gmra.mrb[0].mxu0 %v4786
      %v6127 = vpop.f32.mrb[0].mxu0
      %v6128 = vadd.f32 %v5903, %v6127
      %v6129 = vpop.f32.mrb[0].mxu0
      %v6130 = vpop.f32.mrb[0].mxu0
      %v6131 = vadd.f32 %v5906, %v6130
      %v6132 = vpop.f32.mrb[0].mxu0
      %6133 = vmatprep.mubr.bf16.mxu0 0
      %6134 = vmatmul.mubr.bf16.gmra.mrb[0].mxu0 %v4795
      %v6135 = vpop.f32.mrb[0].mxu0
      %v6136 = vadd.f32 %v5911, %v6135
      %v6137 = vpop.f32.mrb[0].mxu0
      %v6138 = vpop.f32.mrb[0].mxu0
      %v6139 = vadd.f32 %v5914, %v6138
      %v6140 = vpop.f32.mrb[0].mxu0
      %6141 = vmatprep.mubr.bf16.mxu0 0
      %6142 = vmatmul.mubr.bf16.gmra.mrb[0].mxu0 %v4804
      %v6143 = vpop.f32.mrb[0].mxu0
      %v6144 = vadd.f32 %v5919, %v6143
      %v6145 = vpop.f32.mrb[0].mxu0
      %v6146 = vpop.f32.mrb[0].mxu0
      %v6147 = vadd.f32 %v5922, %v6146
      %v6148 = vpop.f32.mrb[0].mxu0
      %6149 = vmatprep.mubr.bf16.mxu0 0
      %6150 = vmatmul.mubr.bf16.gmra.mrb[0].mxu0 %v4813
      %v6151 = vpop.f32.mrb[0].mxu0
      %v6152 = vadd.f32 %v5927, %v6151
      %v6153 = vpop.f32.mrb[0].mxu0
      %v6154 = vpop.f32.mrb[0].mxu0
      %v6155 = vadd.f32 %v5930, %v6154
      %v6156 = vpop.f32.mrb[0].mxu0
      %6157 = vmatprep.mubr.bf16.mxu0 0
      %6158 = vmatmul.mubr.bf16.gmra.mrb[0].mxu0 %v4822
      %v6159 = vpop.f32.mrb[0].mxu0
      %v6160 = vadd.f32 %v5935, %v6159
      %v6161 = vpop.f32.mrb[0].mxu0
      %v6162 = vpop.f32.mrb[0].mxu0
      %v6163 = vadd.f32 %v5938, %v6162
      %v6164 = vpop.f32.mrb[0].mxu0
      %6165 = vmatprep.mubr.bf16.mxu0 0
      %6166 = vmatmul.mubr.bf16.gmra.mrb[0].mxu0 %v4831
      %v6167 = vpop.f32.mrb[0].mxu0
      %v6168 = vadd.f32 %v5943, %v6167
      %v6169 = vpop.f32.mrb[0].mxu0
      %v6170 = vpop.f32.mrb[0].mxu0
      %v6171 = vadd.f32 %v5946, %v6170
      %v6172 = vpop.f32.mrb[0].mxu0
      %6173 = vmatprep.mubr.bf16.mxu0 0
      %6174 = vmatmul.mubr.bf16.gmra.mrb[0].mxu0 %v4840
      %v6175 = vpop.f32.mrb[0].mxu0
      %v6176 = vadd.f32 %v5951, %v6175
      %v6177 = vpop.f32.mrb[0].mxu0
      %v6178 = vpop.f32.mrb[0].mxu0
      %v6179 = vadd.f32 %v5954, %v6178
      %v6180 = vpop.f32.mrb[0].mxu0
      %6181 = vdwg.mxu0
      %p6182 = scmp.eq.s32.totalorder %s16, 0
      // Predicated region
      $region41: #{se_block.1} parent=39 // pred_check
        %p6183 = pneg %p6182
      $region42: #{se_block.1} parent=39 // pred_check_branch
        %6185 = sbr.rel (%p6183) target = $region44
      $region43: #{se_block.1} parent=39 // pred_region
        %vm6186 = vcmask 400384
        %6187 = vst.msk [vmem:[%s5] sm:$0xff] %vm6186, 0.0
        %6188 = vst.msk [vmem:[%s5 + $0x8] sm:$0xff] %vm6186, 0.0
        %6189 = vst.msk [vmem:[%s5 + $0x10] sm:$0xff] %vm6186, 0.0
        %6190 = vst.msk [vmem:[%s5 + $0x18] sm:$0xff] %vm6186, 0.0
        %6191 = vst.msk [vmem:[%s5 + $0x20] sm:$0xff] %vm6186, 0.0
        %6192 = vst.msk [vmem:[%s5 + $0x28] sm:$0xff] %vm6186, 0.0
        %6193 = vst.msk [vmem:[%s5 + $0x30] sm:$0xff] %vm6186, 0.0
        %6194 = vst.msk [vmem:[%s5 + $0x38] sm:$0xff] %vm6186, 0.0
        %6195 = vst.msk [vmem:[%s5 + $0x40] sm:$0xff] %vm6186, 0.0
        %6196 = vst.msk [vmem:[%s5 + $0x48] sm:$0xff] %vm6186, 0.0
        %6197 = vst.msk [vmem:[%s5 + $0x50] sm:$0xff] %vm6186, 0.0
        %6198 = vst.msk [vmem:[%s5 + $0x58] sm:$0xff] %vm6186, 0.0
        %6199 = vst.msk [vmem:[%s5 + $0x60] sm:$0xff] %vm6186, 0.0
        %6200 = vst.msk [vmem:[%s5 + $0x68] sm:$0xff] %vm6186, 0.0
        %6201 = vst.msk [vmem:[%s5 + $0x70] sm:$0xff] %vm6186, 0.0
        %6202 = vst.msk [vmem:[%s5 + $0x78] sm:$0xff] %vm6186, 0.0
        %6203 = vst.msk [vmem:[%s5 + $0x80] sm:$0xff] %vm6186, 0.0
        %6204 = vst.msk [vmem:[%s5 + $0x88] sm:$0xff] %vm6186, 0.0
        %6205 = vst.msk [vmem:[%s5 + $0x90] sm:$0xff] %vm6186, 0.0
        %6206 = vst.msk [vmem:[%s5 + $0x98] sm:$0xff] %vm6186, 0.0
        %6207 = vst.msk [vmem:[%s5 + $0xa0] sm:$0xff] %vm6186, 0.0
        %6208 = vst.msk [vmem:[%s5 + $0xa8] sm:$0xff] %vm6186, 0.0
        %6209 = vst.msk [vmem:[%s5 + $0xb0] sm:$0xff] %vm6186, 0.0
        %6210 = vst.msk [vmem:[%s5 + $0xb8] sm:$0xff] %vm6186, 0.0
        %6211 = vst.msk [vmem:[%s5 + $0xc0] sm:$0xff] %vm6186, 0.0
        %6212 = vst.msk [vmem:[%s5 + $0xc8] sm:$0xff] %vm6186, 0.0
        %6213 = vst.msk [vmem:[%s5 + $0xd0] sm:$0xff] %vm6186, 0.0
        %6214 = vst.msk [vmem:[%s5 + $0xd8] sm:$0xff] %vm6186, 0.0
        %6215 = vst.msk [vmem:[%s5 + $0xe0] sm:$0xff] %vm6186, 0.0
        %6216 = vst.msk [vmem:[%s5 + $0xe8] sm:$0xff] %vm6186, 0.0
        %6217 = vst.msk [vmem:[%s5 + $0xf0] sm:$0xff] %vm6186, 0.0
        %6218 = vst.msk [vmem:[%s5 + $0xf8] sm:$0xff] %vm6186, 0.0
        %6219 = vst.msk [vmem:[%s5 + $0x100] sm:$0xff] %vm6186, 0.0
        %6220 = vst.msk [vmem:[%s5 + $0x108] sm:$0xff] %vm6186, 0.0
        %6221 = vst.msk [vmem:[%s5 + $0x110] sm:$0xff] %vm6186, 0.0
        %6222 = vst.msk [vmem:[%s5 + $0x118] sm:$0xff] %vm6186, 0.0
        %6223 = vst.msk [vmem:[%s5 + $0x120] sm:$0xff] %vm6186, 0.0
        %6224 = vst.msk [vmem:[%s5 + $0x128] sm:$0xff] %vm6186, 0.0
        %6225 = vst.msk [vmem:[%s5 + $0x130] sm:$0xff] %vm6186, 0.0
        %6226 = vst.msk [vmem:[%s5 + $0x138] sm:$0xff] %vm6186, 0.0
        %6227 = vst.msk [vmem:[%s5 + $0x140] sm:$0xff] %vm6186, 0.0
        %6228 = vst.msk [vmem:[%s5 + $0x148] sm:$0xff] %vm6186, 0.0
        %6229 = vst.msk [vmem:[%s5 + $0x150] sm:$0xff] %vm6186, 0.0
        %6230 = vst.msk [vmem:[%s5 + $0x158] sm:$0xff] %vm6186, 0.0
        %6231 = vst.msk [vmem:[%s5 + $0x160] sm:$0xff] %vm6186, 0.0
        %6232 = vst.msk [vmem:[%s5 + $0x168] sm:$0xff] %vm6186, 0.0
        %6233 = vst.msk [vmem:[%s5 + $0x170] sm:$0xff] %vm6186, 0.0
        %6234 = vst.msk [vmem:[%s5 + $0x178] sm:$0xff] %vm6186, 0.0
      $region44: #{se_block.1} parent=39 // pred_fallthru
        _
      %v6235 = vld [vmem:[%s5] sm:$0xff]
      %v6236 = vld [vmem:[%s5 + $0x8] sm:$0xff]
      %v6237 = vld [vmem:[%s5 + $0x10] sm:$0xff]
      %v6238 = vld [vmem:[%s5 + $0x18] sm:$0xff]
      %v6239 = vld [vmem:[%s5 + $0x20] sm:$0xff]
      %v6240 = vld [vmem:[%s5 + $0x28] sm:$0xff]
      %v6241 = vld [vmem:[%s5 + $0x30] sm:$0xff]
      %v6242 = vld [vmem:[%s5 + $0x38] sm:$0xff]
      %v6243 = vld [vmem:[%s5 + $0x40] sm:$0xff]
      %v6244 = vld [vmem:[%s5 + $0x48] sm:$0xff]
      %v6245 = vld [vmem:[%s5 + $0x50] sm:$0xff]
      %v6246 = vld [vmem:[%s5 + $0x58] sm:$0xff]
      %v6247 = vld [vmem:[%s5 + $0x60] sm:$0xff]
      %v6248 = vld [vmem:[%s5 + $0x68] sm:$0xff]
      %v6249 = vld [vmem:[%s5 + $0x70] sm:$0xff]
      %v6250 = vld [vmem:[%s5 + $0x78] sm:$0xff]
      %v6251 = vld [vmem:[%s5 + $0x80] sm:$0xff]
      %v6252 = vld [vmem:[%s5 + $0x88] sm:$0xff]
      %v6253 = vld [vmem:[%s5 + $0x90] sm:$0xff]
      %v6254 = vld [vmem:[%s5 + $0x98] sm:$0xff]
      %v6255 = vld [vmem:[%s5 + $0xa0] sm:$0xff]
      %v6256 = vld [vmem:[%s5 + $0xa8] sm:$0xff]
      %v6257 = vld [vmem:[%s5 + $0xb0] sm:$0xff]
      %v6258 = vld [vmem:[%s5 + $0xb8] sm:$0xff]
      %v6259 = vld [vmem:[%s5 + $0xc0] sm:$0xff]
      %v6260 = vld [vmem:[%s5 + $0xc8] sm:$0xff]
      %v6261 = vld [vmem:[%s5 + $0xd0] sm:$0xff]
      %v6262 = vld [vmem:[%s5 + $0xd8] sm:$0xff]
      %v6263 = vld [vmem:[%s5 + $0xe0] sm:$0xff]
      %v6264 = vld [vmem:[%s5 + $0xe8] sm:$0xff]
      %v6265 = vld [vmem:[%s5 + $0xf0] sm:$0xff]
      %v6266 = vld [vmem:[%s5 + $0xf8] sm:$0xff]
      %v6267 = vld [vmem:[%s5 + $0x100] sm:$0xff]
      %v6268 = vld [vmem:[%s5 + $0x108] sm:$0xff]
      %v6269 = vld [vmem:[%s5 + $0x110] sm:$0xff]
      %v6270 = vld [vmem:[%s5 + $0x118] sm:$0xff]
      %v6271 = vld [vmem:[%s5 + $0x120] sm:$0xff]
      %v6272 = vld [vmem:[%s5 + $0x128] sm:$0xff]
      %v6273 = vld [vmem:[%s5 + $0x130] sm:$0xff]
      %v6274 = vld [vmem:[%s5 + $0x138] sm:$0xff]
      %v6275 = vld [vmem:[%s5 + $0x140] sm:$0xff]
      %v6276 = vld [vmem:[%s5 + $0x148] sm:$0xff]
      %v6277 = vld [vmem:[%s5 + $0x150] sm:$0xff]
      %v6278 = vld [vmem:[%s5 + $0x158] sm:$0xff]
      %v6279 = vld [vmem:[%s5 + $0x160] sm:$0xff]
      %v6280 = vld [vmem:[%s5 + $0x168] sm:$0xff]
      %v6281 = vld [vmem:[%s5 + $0x170] sm:$0xff]
      %v6282 = vld [vmem:[%s5 + $0x178] sm:$0xff]
      %v6283 = vadd.f32 %v6235, %v5992
      %v6284 = vadd.f32 %v6236, %v5995
      %v6285 = vadd.f32 %v6237, %v6000
      %v6286 = vadd.f32 %v6238, %v6003
      %v6287 = vadd.f32 %v6239, %v6008
      %v6288 = vadd.f32 %v6240, %v6011
      %v6289 = vadd.f32 %v6241, %v6016
      %v6290 = vadd.f32 %v6242, %v6019
      %v6291 = vadd.f32 %v6243, %v6024
      %v6292 = vadd.f32 %v6244, %v6027
      %v6293 = vadd.f32 %v6245, %v6032
      %v6294 = vadd.f32 %v6246, %v6035
      %v6295 = vadd.f32 %v6247, %v6040
      %v6296 = vadd.f32 %v6248, %v6043
      %v6297 = vadd.f32 %v6249, %v6048
      %v6298 = vadd.f32 %v6250, %v6051
      %v6299 = vadd.f32 %v6251, %v6056
      %v6300 = vadd.f32 %v6252, %v6059
      %v6301 = vadd.f32 %v6253, %v6064
      %v6302 = vadd.f32 %v6254, %v6067
      %v6303 = vadd.f32 %v6255, %v6072
      %v6304 = vadd.f32 %v6256, %v6075
      %v6305 = vadd.f32 %v6257, %v6080
      %v6306 = vadd.f32 %v6258, %v6083
      %v6307 = vadd.f32 %v6259, %v6088
      %v6308 = vadd.f32 %v6260, %v6091
      %v6309 = vadd.f32 %v6261, %v6096
      %v6310 = vadd.f32 %v6262, %v6099
      %v6311 = vadd.f32 %v6263, %v6104
      %v6312 = vadd.f32 %v6264, %v6107
      %v6313 = vadd.f32 %v6265, %v6112
      %v6314 = vadd.f32 %v6266, %v6115
      %v6315 = vadd.f32 %v6267, %v6120
      %v6316 = vadd.f32 %v6268, %v6123
      %v6317 = vadd.f32 %v6269, %v6128
      %v6318 = vadd.f32 %v6270, %v6131
      %v6319 = vadd.f32 %v6271, %v6136
      %v6320 = vadd.f32 %v6272, %v6139
      %v6321 = vadd.f32 %v6273, %v6144
      %v6322 = vadd.f32 %v6274, %v6147
      %v6323 = vadd.f32 %v6275, %v6152
      %v6324 = vadd.f32 %v6276, %v6155
      %v6325 = vadd.f32 %v6277, %v6160
      %v6326 = vadd.f32 %v6278, %v6163
      %v6327 = vadd.f32 %v6279, %v6168
      %v6328 = vadd.f32 %v6280, %v6171
      %v6329 = vadd.f32 %v6281, %v6176
      %v6330 = vadd.f32 %v6282, %v6179
      %vm6331 = vcmask 400384
      %6332 = vst.msk [vmem:[%s5] sm:$0xff] %vm6331, %v6283
      %6333 = vst.msk [vmem:[%s5 + $0x8] sm:$0xff] %vm6331, %v6284
      %6334 = vst.msk [vmem:[%s5 + $0x10] sm:$0xff] %vm6331, %v6285
      %6335 = vst.msk [vmem:[%s5 + $0x18] sm:$0xff] %vm6331, %v6286
      %6336 = vst.msk [vmem:[%s5 + $0x20] sm:$0xff] %vm6331, %v6287
      %6337 = vst.msk [vmem:[%s5 + $0x28] sm:$0xff] %vm6331, %v6288
      %6338 = vst.msk [vmem:[%s5 + $0x30] sm:$0xff] %vm6331, %v6289
      %6339 = vst.msk [vmem:[%s5 + $0x38] sm:$0xff] %vm6331, %v6290
      %6340 = vst.msk [vmem:[%s5 + $0x40] sm:$0xff] %vm6331, %v6291
      %6341 = vst.msk [vmem:[%s5 + $0x48] sm:$0xff] %vm6331, %v6292
      %6342 = vst.msk [vmem:[%s5 + $0x50] sm:$0xff] %vm6331, %v6293
      %6343 = vst.msk [vmem:[%s5 + $0x58] sm:$0xff] %vm6331, %v6294
      %6344 = vst.msk [vmem:[%s5 + $0x60] sm:$0xff] %vm6331, %v6295
      %6345 = vst.msk [vmem:[%s5 + $0x68] sm:$0xff] %vm6331, %v6296
      %6346 = vst.msk [vmem:[%s5 + $0x70] sm:$0xff] %vm6331, %v6297
      %6347 = vst.msk [vmem:[%s5 + $0x78] sm:$0xff] %vm6331, %v6298
      %6348 = vst.msk [vmem:[%s5 + $0x80] sm:$0xff] %vm6331, %v6299
      %6349 = vst.msk [vmem:[%s5 + $0x88] sm:$0xff] %vm6331, %v6300
      %6350 = vst.msk [vmem:[%s5 + $0x90] sm:$0xff] %vm6331, %v6301
      %6351 = vst.msk [vmem:[%s5 + $0x98] sm:$0xff] %vm6331, %v6302
      %6352 = vst.msk [vmem:[%s5 + $0xa0] sm:$0xff] %vm6331, %v6303
      %6353 = vst.msk [vmem:[%s5 + $0xa8] sm:$0xff] %vm6331, %v6304
      %6354 = vst.msk [vmem:[%s5 + $0xb0] sm:$0xff] %vm6331, %v6305
      %6355 = vst.msk [vmem:[%s5 + $0xb8] sm:$0xff] %vm6331, %v6306
      %6356 = vst.msk [vmem:[%s5 + $0xc0] sm:$0xff] %vm6331, %v6307
      %6357 = vst.msk [vmem:[%s5 + $0xc8] sm:$0xff] %vm6331, %v6308
      %6358 = vst.msk [vmem:[%s5 + $0xd0] sm:$0xff] %vm6331, %v6309
      %6359 = vst.msk [vmem:[%s5 + $0xd8] sm:$0xff] %vm6331, %v6310
      %6360 = vst.msk [vmem:[%s5 + $0xe0] sm:$0xff] %vm6331, %v6311
      %6361 = vst.msk [vmem:[%s5 + $0xe8] sm:$0xff] %vm6331, %v6312
      %6362 = vst.msk [vmem:[%s5 + $0xf0] sm:$0xff] %vm6331, %v6313
      %6363 = vst.msk [vmem:[%s5 + $0xf8] sm:$0xff] %vm6331, %v6314
      %6364 = vst.msk [vmem:[%s5 + $0x100] sm:$0xff] %vm6331, %v6315
      %6365 = vst.msk [vmem:[%s5 + $0x108] sm:$0xff] %vm6331, %v6316
      %6366 = vst.msk [vmem:[%s5 + $0x110] sm:$0xff] %vm6331, %v6317
      %6367 = vst.msk [vmem:[%s5 + $0x118] sm:$0xff] %vm6331, %v6318
      %6368 = vst.msk [vmem:[%s5 + $0x120] sm:$0xff] %vm6331, %v6319
      %6369 = vst.msk [vmem:[%s5 + $0x128] sm:$0xff] %vm6331, %v6320
      %6370 = vst.msk [vmem:[%s5 + $0x130] sm:$0xff] %vm6331, %v6321
      %6371 = vst.msk [vmem:[%s5 + $0x138] sm:$0xff] %vm6331, %v6322
      %6372 = vst.msk [vmem:[%s5 + $0x140] sm:$0xff] %vm6331, %v6323
      %6373 = vst.msk [vmem:[%s5 + $0x148] sm:$0xff] %vm6331, %v6324
      %6374 = vst.msk [vmem:[%s5 + $0x150] sm:$0xff] %vm6331, %v6325
      %6375 = vst.msk [vmem:[%s5 + $0x158] sm:$0xff] %vm6331, %v6326
      %6376 = vst.msk [vmem:[%s5 + $0x160] sm:$0xff] %vm6331, %v6327
      %6377 = vst.msk [vmem:[%s5 + $0x168] sm:$0xff] %vm6331, %v6328
      %6378 = vst.msk [vmem:[%s5 + $0x170] sm:$0xff] %vm6331, %v6329
      %6379 = vst.msk [vmem:[%s5 + $0x178] sm:$0xff] %vm6331, %v6330
      // Predicated region
      $region45: #{se_block.1} parent=39 // pred_check
        %p6380 = pneg %p154
      $region46: #{se_block.1} parent=39 // pred_check_branch
        %6382 = sbr.rel (%p6380) target = $region48
      $region47: #{se_block.1} parent=39 // pred_region
        _
      $region48: #{se_block.1} parent=39 // pred_fallthru
        _
      // Predicated region
      $region49: #{se_block.1} parent=39 // pred_check
        %p6383 = pneg %p154
      $region50: #{se_block.1} parent=39 // pred_check_branch
        %6385 = sbr.rel (%p6383) target = $region52
      $region51: #{se_block.1} parent=39 // pred_region
        _
      $region52: #{se_block.1} parent=39 // pred_fallthru
        _
    $region40: #{se_block.1} parent=5 // pred_fallthru
      _
    %p6386 = scmp.le.s32.totalorder 2, %s11
    // Predicated region
    $region53: #{se_block.1} parent=5 // pred_check
      %p6387 = pneg %p6386
    $region54: #{se_block.1} parent=5 // pred_check_branch
      %6389 = sbr.rel (%p6387) target = $region56
    $region55: #{se_block.1} parent=5 // pred_region
      %s6390 = ssub.s32 %s11, 2
    $region56: #{se_block.1} parent=5 // pred_fallthru
      _
  $region6: #{se_block.1} parent=0 // loop_footer
    %s15 = sadd.s32 1, %s11
  $region7: #{se_block.1} parent=0 // loop_footer_branch
    %10 = sbr.rel target = $region3
  $region8: #{se_block.1} parent=0 // loop_exit
    _

</llo_original>
